<compile_context>
chip_gen: v6e
topology: v6e:2x2x1
jax: 0.10.0
libtpu: 0.0.40
codegen_flags: <defaults>
</compile_context>

<pallas_src>
import functools

import jax
import jax.numpy as jnp
from jax import lax
from jax.experimental import pallas as pl
from jax.experimental.pallas import tpu as pltpu

HIDDEN = 32
FC2 = 16
NUM_CLASSES = 11
IN_FEAT = 2
SEQ_LEN = 8

# Row offsets inside the packed parameter slabs (all section starts 8-aligned).
PA_ROWS = 200          # wide slab: (200, 128)
_PA_WIH1, _PA_WHH1, _PA_B1 = 0, 8, 40
_PA_WIH2, _PA_WHH2, _PA_B2 = 48, 80, 112
_PA_WOUT, _PA_BOUT = 120, 152
_PA_WFC3, _PA_BFC3 = 160, 192

PB_ROWS = 80           # fc slab: (80, 32)
_PB_WFC1, _PB_BFC1, _PB_G1, _PB_BE1 = 0, 32, 33, 34
_PB_WFC2, _PB_BFC2, _PB_G2, _PB_BE2 = 40, 72, 73, 74


def dae6_kernel(x_ref, pa_ref, pb_ref, out_ref, *, seq_len, batch):
    T, B, H = seq_len, batch, HIDDEN
    G = 4 * H  # 128

    # ---- prologue: static slices of the two packed parameter slabs ----------
    wih1 = pa_ref[_PA_WIH1:_PA_WIH1 + IN_FEAT, :]       # (2, 128)
    whh1 = pa_ref[_PA_WHH1:_PA_WHH1 + H, :]             # (32, 128)
    b1 = pa_ref[_PA_B1:_PA_B1 + 1, :]                   # (1, 128)
    wih2 = pa_ref[_PA_WIH2:_PA_WIH2 + H, :]             # (32, 128)
    whh2 = pa_ref[_PA_WHH2:_PA_WHH2 + H, :]             # (32, 128)
    b2 = pa_ref[_PA_B2:_PA_B2 + 1, :]                   # (1, 128)
    w_out = pa_ref[_PA_WOUT:_PA_WOUT + H, :]            # (32, 128) = [wtd | I | 0]
    b_out = pa_ref[_PA_BOUT:_PA_BOUT + 1, :]            # (1, 128)  = [btd | 0 ]
    wfc3 = pa_ref[_PA_WFC3:_PA_WFC3 + H, :]             # (32, 128) zero-padded
    bfc3 = pa_ref[_PA_BFC3:_PA_BFC3 + 1, :]             # (1, 128)  zero-padded

    wfc1 = pb_ref[_PB_WFC1:_PB_WFC1 + H, :]             # (32, 32)
    bfc1 = pb_ref[_PB_BFC1:_PB_BFC1 + 1, :]
    gamma1 = pb_ref[_PB_G1:_PB_G1 + 1, :]
    beta1 = pb_ref[_PB_BE1:_PB_BE1 + 1, :]
    wfc2 = pb_ref[_PB_WFC2:_PB_WFC2 + H, :]             # (32, 32) cols 16: zero
    bfc2 = pb_ref[_PB_BFC2:_PB_BFC2 + 1, :]
    gamma2 = pb_ref[_PB_G2:_PB_G2 + 1, :]
    beta2 = pb_ref[_PB_BE2:_PB_BE2 + 1, :]

    # Hoisted bias broadcasts (avoid re-materializing broadcast_in_dim in the
    # fully-unrolled loop).
    b1_b = jnp.broadcast_to(b1, (B, G))
    b2_b = jnp.broadcast_to(b2, (B, G))

    def lstm_cell(z, c):
        # g-gate pre-activations were pre-scaled by 2 in the wrapper, so
        # tanh(g_orig) == 2*sigmoid(z_g) - 1 reuses the full-vreg sigmoid:
        # only 2 EUP pushes per cell (sigmoid over (B,4H) + tanh(c_new)).
        s = jax.nn.sigmoid(z)
        i = s[:, 0:H]
        f = s[:, H:2 * H]
        g = 2.0 * s[:, 2 * H:3 * H] - 1.0
        o = s[:, 3 * H:4 * H]
        c_new = f * c + i * g
        h_new = o * jnp.tanh(c_new)
        return h_new, c_new

    zeros_bh = jnp.zeros((B, H), jnp.float32)
    h1, c1 = zeros_bh, zeros_bh
    h2, c2 = zeros_bh, zeros_bh
    h2_hist = []

    # Fully-unrolled 2-layer recurrence (T static & small). Per layer-step the
    # serial chain is one (B,H)x(H,4H) matmul + the cell; x@wih1 and h1@wih2
    # are off the recurrence of their consuming layer and schedule early.
    for t in range(T):
        xt = x_ref[t]                                    # (B, 2) leading-index load
        z1 = (jnp.dot(xt, wih1, preferred_element_type=jnp.float32)
              + jnp.dot(h1, whh1, preferred_element_type=jnp.float32)
              + b1_b)
        h1, c1 = lstm_cell(z1, c1)

        z2 = (jnp.dot(h1, wih2, preferred_element_type=jnp.float32)
              + jnp.dot(h2, whh2, preferred_element_type=jnp.float32)
              + b2_b)
        h2, c2 = lstm_cell(z2, c2)
        h2_hist.append(h2)                               # stays in vregs

    # ---- epilogue ------------------------------------------------------------
    h2_all = jnp.concatenate(h2_hist, axis=0)            # (T*B, H)

    # TimeDistributed Linear(32,2) + identity copy of the h2 history fused into
    # one lane-dense matmul: cols 0:2 = decoder, cols 2:34 = h2 history, rest 0.
    main = jnp.dot(h2_all, w_out, preferred_element_type=jnp.float32) + b_out
    out_ref[0:T * B, :] = main                           # unmasked (T*B,128) store

    # fc head on the final hidden state:
    # Linear(32,32) -> ReLU -> BN(32) -> Linear(32,16) -> ReLU -> BN(16) -> Linear(16,11)
    eps = 1e-5

    y = jnp.dot(h2, wfc1, preferred_element_type=jnp.float32) + bfc1
    y = jnp.maximum(y, 0.0)
    mu = jnp.mean(y, axis=0, keepdims=True)
    var = jnp.mean((y - mu) * (y - mu), axis=0, keepdims=True)   # biased (training) var
    y = (y - mu) * lax.rsqrt(var + eps) * gamma1 + beta1

    y = jnp.dot(y, wfc2, preferred_element_type=jnp.float32) + bfc2
    y = jnp.maximum(y, 0.0)
    mu = jnp.mean(y, axis=0, keepdims=True)
    var = jnp.mean((y - mu) * (y - mu), axis=0, keepdims=True)
    y = (y - mu) * lax.rsqrt(var + eps) * gamma2 + beta2
    # (padded cols 16:32 stay exactly 0 through ReLU/BN and are killed by the
    #  zero rows of wfc3 below, so no slicing is needed.)

    logits = jnp.dot(y, wfc3, preferred_element_type=jnp.float32) + bfc3  # (B,128)

    pad_rows = (-B) % 8
    if pad_rows:
        logits = jnp.concatenate(
            [logits, jnp.zeros((pad_rows, G), jnp.float32)], axis=0)
    out_ref[T * B:T * B + B + pad_rows, :] = logits       # unmasked store


def init_params(key):
    """Same 18-tensor parameter list as the original implementation."""
    H = HIDDEN
    ks = jax.random.split(key, 14)

    def nrm(k, shape, scale=0.1):
        return (scale * jax.random.normal(k, shape)).astype(jnp.float32)

    wih1 = nrm(ks[0], (IN_FEAT, 4 * H))   # LSTM1 weight_ih^T, gate order [i,f,g,o]
    whh1 = nrm(ks[1], (H, 4 * H))
    b1 = nrm(ks[2], (1, 4 * H))           # b_ih + b_hh combined
    wih2 = nrm(ks[3], (H, 4 * H))
    whh2 = nrm(ks[4], (H, 4 * H))
    b2 = nrm(ks[5], (1, 4 * H))
    wtd = nrm(ks[6], (H, 2))              # TimeDistributed Linear(32, 2), W^T
    btd = nrm(ks[7], (1, 2))
    wfc1 = nrm(ks[8], (H, H))
    bfc1 = nrm(ks[9], (1, H))
    gamma1 = jnp.ones((1, H), jnp.float32)
    beta1 = jnp.zeros((1, H), jnp.float32)
    wfc2 = nrm(ks[10], (H, FC2))
    bfc2 = nrm(ks[11], (1, FC2))
    gamma2 = jnp.ones((1, FC2), jnp.float32)
    beta2 = jnp.zeros((1, FC2), jnp.float32)
    wfc3 = nrm(ks[12], (FC2, NUM_CLASSES))
    bfc3 = nrm(ks[13], (1, NUM_CLASSES))

    return [wih1, whh1, b1, wih2, whh2, b2, wtd, btd,
            wfc1, bfc1, gamma1, beta1,
            wfc2, bfc2, gamma2, beta2,
            wfc3, bfc3]


def pack_params(params):
    """Pack the 18 parameter arrays into two contiguous VMEM slabs."""
    (wih1, whh1, b1, wih2, whh2, b2, wtd, btd,
     wfc1, bfc1, gamma1, beta1,
     wfc2, bfc2, gamma2, beta2,
     wfc3, bfc3) = params
    H, G = HIDDEN, 4 * HIDDEN

    def scale_g(w):
        # Fold the 2x of tanh(x) = 2*sigmoid(2x) - 1 into the g-gate columns.
        return w.at[..., 2 * H:3 * H].multiply(2.0)

    wih1s, whh1s, b1s = scale_g(wih1), scale_g(whh1), scale_g(b1)
    wih2s, whh2s, b2s = scale_g(wih2), scale_g(whh2), scale_g(b2)

    # Fused TD + identity output projection: [wtd | I_32 | 0], bias [btd | 0].
    w_out = jnp.zeros((H, G), jnp.float32)
    w_out = w_out.at[:, 0:2].set(wtd)
    w_out = w_out.at[:, 2:2 + H].set(jnp.eye(H, dtype=jnp.float32))
    b_out = jnp.zeros((1, G), jnp.float32).at[:, 0:2].set(btd)

    # Final fc3 padded to (32, 128): rows 16:32 and cols 11:128 are zero.
    wfc3p = jnp.zeros((H, G), jnp.float32).at[0:FC2, 0:NUM_CLASSES].set(wfc3)
    bfc3p = jnp.zeros((1, G), jnp.float32).at[:, 0:NUM_CLASSES].set(bfc3)

    pa = jnp.zeros((PA_ROWS, G), jnp.float32)
    pa = pa.at[_PA_WIH1:_PA_WIH1 + IN_FEAT].set(wih1s)
    pa = pa.at[_PA_WHH1:_PA_WHH1 + H].set(whh1s)
    pa = pa.at[_PA_B1:_PA_B1 + 1].set(b1s)
    pa = pa.at[_PA_WIH2:_PA_WIH2 + H].set(wih2s)
    pa = pa.at[_PA_WHH2:_PA_WHH2 + H].set(whh2s)
    pa = pa.at[_PA_B2:_PA_B2 + 1].set(b2s)
    pa = pa.at[_PA_WOUT:_PA_WOUT + H].set(w_out)
    pa = pa.at[_PA_BOUT:_PA_BOUT + 1].set(b_out)
    pa = pa.at[_PA_WFC3:_PA_WFC3 + H].set(wfc3p)
    pa = pa.at[_PA_BFC3:_PA_BFC3 + 1].set(bfc3p)

    pb = jnp.zeros((PB_ROWS, H), jnp.float32)
    pb = pb.at[_PB_WFC1:_PB_WFC1 + H].set(wfc1)
    pb = pb.at[_PB_BFC1:_PB_BFC1 + 1].set(bfc1)
    pb = pb.at[_PB_G1:_PB_G1 + 1].set(gamma1)
    pb = pb.at[_PB_BE1:_PB_BE1 + 1].set(beta1)
    pb = pb.at[_PB_WFC2:_PB_WFC2 + H, 0:FC2].set(wfc2)
    pb = pb.at[_PB_BFC2:_PB_BFC2 + 1, 0:FC2].set(bfc2)
    pb = pb.at[_PB_G2:_PB_G2 + 1, 0:FC2].set(gamma2)
    pb = pb.at[_PB_BE2:_PB_BE2 + 1, 0:FC2].set(beta2)
    return pa, pb


def dae6_forward(x, params):
    """x: (B, T, 2) float32. Returns (logits (B,11), decoder (B,T,2), h2 (B,32))."""
    B, T, F = x.shape
    assert F == IN_FEAT
    pa, pb = pack_params(params)

    # Time-major input: kernel reads x_ref[t] -> (B, 2) with layout-free loads.
    x_tm = jnp.transpose(x, (1, 0, 2)).astype(jnp.float32)        # (T, B, 2)

    pad_rows = (-B) % 8
    out_rows = T * B + B + pad_rows                               # 24 for B=2, T=8

    vmem = lambda: pl.BlockSpec(memory_space=pltpu.MemorySpace.VMEM)
    kernel = functools.partial(dae6_kernel, seq_len=T, batch=B)

    out = pl.pallas_call(
        kernel,
        out_shape=jax.ShapeDtypeStruct((out_rows, 4 * HIDDEN), jnp.float32),
        in_specs=[vmem(), vmem(), vmem()],
        out_specs=vmem(),
    )(x_tm, pa, pb)

    # Unpack the fused lane-dense output slab.
    dec_flat = out[0:T * B, 0:2]                                  # (T*B, 2), row = t*B + b
    decoder = jnp.transpose(dec_flat.reshape(T, B, 2), (1, 0, 2))  # (B, T, 2)
    h2 = out[(T - 1) * B:T * B, 2:2 + HIDDEN]                     # (B, 32)
    logits = out[T * B:T * B + B, 0:NUM_CLASSES]                  # (B, 11)
    return logits, decoder, h2


if __name__ == "__main__":
    key = jax.random.PRNGKey(0)
    k_x, k_p = jax.random.split(key)

    B, T = 2, SEQ_LEN
    x = jax.random.normal(k_x, (B, T, IN_FEAT), jnp.float32)
    params = init_params(k_p)

    logits, decoder, h2 = jax.jit(dae6_forward)(x, params)
    jax.block_until_ready((logits, decoder, h2))

    assert logits.shape == (B, NUM_CLASSES)
    assert decoder.shape == (B, T, 2)
    assert h2.shape == (B, HIDDEN)
    assert bool(jnp.all(jnp.isfinite(logits)))
    assert bool(jnp.all(jnp.isfinite(decoder)))
    assert bool(jnp.all(jnp.isfinite(h2)))
    print("KERNEL_OK")
</pallas_src>

<mosaic_0001>
module attributes {stable_mosaic.version = 11 : i64} {
  func.func @dae6_kernel(%arg0: memref<8x2x2xf32, #tpu.memory_space<vmem>>, %arg1: memref<200x128xf32, #tpu.memory_space<vmem>>, %arg2: memref<80x32xf32, #tpu.memory_space<vmem>>, %arg3: memref<24x128xf32, #tpu.memory_space<vmem>>) attributes {dimension_semantics = [], scalar_prefetch = 0 : i64, scratch_operands = 0 : i64, tpu.core_type = #tpu.core_type<tc>} {
    %c0 = arith.constant 0 : index
    %c0_0 = arith.constant 0 : index
    %0 = vector.load %arg1[%c0, %c0_0] : memref<200x128xf32, #tpu.memory_space<vmem>>, vector<2x128xf32>
    %c8 = arith.constant 8 : index
    %c0_1 = arith.constant 0 : index
    %1 = vector.load %arg1[%c8, %c0_1] : memref<200x128xf32, #tpu.memory_space<vmem>>, vector<32x128xf32>
    %c40 = arith.constant 40 : index
    %c0_2 = arith.constant 0 : index
    %2 = vector.load %arg1[%c40, %c0_2] : memref<200x128xf32, #tpu.memory_space<vmem>>, vector<1x128xf32>
    %c48 = arith.constant 48 : index
    %c0_3 = arith.constant 0 : index
    %3 = vector.load %arg1[%c48, %c0_3] : memref<200x128xf32, #tpu.memory_space<vmem>>, vector<32x128xf32>
    %c80 = arith.constant 80 : index
    %c0_4 = arith.constant 0 : index
    %4 = vector.load %arg1[%c80, %c0_4] : memref<200x128xf32, #tpu.memory_space<vmem>>, vector<32x128xf32>
    %c112 = arith.constant 112 : index
    %c0_5 = arith.constant 0 : index
    %5 = vector.load %arg1[%c112, %c0_5] : memref<200x128xf32, #tpu.memory_space<vmem>>, vector<1x128xf32>
    %c120 = arith.constant 120 : index
    %c0_6 = arith.constant 0 : index
    %6 = vector.load %arg1[%c120, %c0_6] : memref<200x128xf32, #tpu.memory_space<vmem>>, vector<32x128xf32>
    %c152 = arith.constant 152 : index
    %c0_7 = arith.constant 0 : index
    %7 = vector.load %arg1[%c152, %c0_7] : memref<200x128xf32, #tpu.memory_space<vmem>>, vector<1x128xf32>
    %c160 = arith.constant 160 : index
    %c0_8 = arith.constant 0 : index
    %8 = vector.load %arg1[%c160, %c0_8] : memref<200x128xf32, #tpu.memory_space<vmem>>, vector<32x128xf32>
    %c192 = arith.constant 192 : index
    %c0_9 = arith.constant 0 : index
    %9 = vector.load %arg1[%c192, %c0_9] : memref<200x128xf32, #tpu.memory_space<vmem>>, vector<1x128xf32>
    %c0_10 = arith.constant 0 : index
    %c0_11 = arith.constant 0 : index
    %10 = vector.load %arg2[%c0_10, %c0_11] : memref<80x32xf32, #tpu.memory_space<vmem>>, vector<32x32xf32>
    %c32 = arith.constant 32 : index
    %c0_12 = arith.constant 0 : index
    %11 = vector.load %arg2[%c32, %c0_12] : memref<80x32xf32, #tpu.memory_space<vmem>>, vector<1x32xf32>
    %c33 = arith.constant 33 : index
    %c0_13 = arith.constant 0 : index
    %12 = vector.load %arg2[%c33, %c0_13] : memref<80x32xf32, #tpu.memory_space<vmem>>, vector<1x32xf32>
    %c34 = arith.constant 34 : index
    %c0_14 = arith.constant 0 : index
    %13 = vector.load %arg2[%c34, %c0_14] : memref<80x32xf32, #tpu.memory_space<vmem>>, vector<1x32xf32>
    %c40_15 = arith.constant 40 : index
    %c0_16 = arith.constant 0 : index
    %14 = vector.load %arg2[%c40_15, %c0_16] : memref<80x32xf32, #tpu.memory_space<vmem>>, vector<32x32xf32>
    %c72 = arith.constant 72 : index
    %c0_17 = arith.constant 0 : index
    %15 = vector.load %arg2[%c72, %c0_17] : memref<80x32xf32, #tpu.memory_space<vmem>>, vector<1x32xf32>
    %c73 = arith.constant 73 : index
    %c0_18 = arith.constant 0 : index
    %16 = vector.load %arg2[%c73, %c0_18] : memref<80x32xf32, #tpu.memory_space<vmem>>, vector<1x32xf32>
    %c74 = arith.constant 74 : index
    %c0_19 = arith.constant 0 : index
    %17 = vector.load %arg2[%c74, %c0_19] : memref<80x32xf32, #tpu.memory_space<vmem>>, vector<1x32xf32>
    %18 = vector.shape_cast %2 : vector<1x128xf32> to vector<1x128xf32>
    %19 = vector.broadcast %18 : vector<1x128xf32> to vector<2x128xf32>
    %20 = vector.shape_cast %5 : vector<1x128xf32> to vector<1x128xf32>
    %21 = vector.broadcast %20 : vector<1x128xf32> to vector<2x128xf32>
    %cst = arith.constant 0.000000e+00 : f32
    %22 = vector.broadcast %cst : f32 to vector<2x32xf32>
    %c0_20 = arith.constant 0 : index
    %c0_21 = arith.constant 0 : index
    %c0_22 = arith.constant 0 : index
    %23 = vector.load %arg0[%c0_20, %c0_21, %c0_22] : memref<8x2x2xf32, #tpu.memory_space<vmem>>, vector<1x2x2xf32>
    %24 = vector.shape_cast %23 : vector<1x2x2xf32> to vector<2x2xf32>
    %cst_23 = arith.constant dense<0.000000e+00> : vector<2x128xf32>
    %25 = tpu.matmul %24, %0, %cst_23 {dimension_numbers = #tpu.dot_dimension_numbers<[1], [0], [0], [1], [0, 0, 1, 1], [], []>} : vector<2x2xf32>, vector<2x128xf32>, vector<2x128xf32> -> vector<2x128xf32>
    %cst_24 = arith.constant dense<0.000000e+00> : vector<2x128xf32>
    %26 = tpu.matmul %22, %1, %cst_24 {dimension_numbers = #tpu.dot_dimension_numbers<[1], [0], [0], [1], [0, 0, 1, 1], [], []>} : vector<2x32xf32>, vector<32x128xf32>, vector<2x128xf32> -> vector<2x128xf32>
    %27 = arith.addf %25, %26 : vector<2x128xf32>
    %28 = arith.addf %27, %19 : vector<2x128xf32>
    %29 = arith.negf %28 : vector<2x128xf32>
    %30 = math.exp %29 : vector<2x128xf32>
    %cst_25 = arith.constant 1.000000e+00 : f32
    %31 = vector.broadcast %cst_25 : f32 to vector<2x128xf32>
    %32 = arith.addf %31, %30 : vector<2x128xf32>
    %33 = arith.divf %31, %32 : vector<2x128xf32>
    %34 = vector.extract_strided_slice %33 {offsets = [0, 0], sizes = [2, 32], strides = [1, 1]} : vector<2x128xf32> to vector<2x32xf32>
    %35 = vector.extract_strided_slice %33 {offsets = [0, 32], sizes = [2, 32], strides = [1, 1]} : vector<2x128xf32> to vector<2x32xf32>
    %36 = vector.extract_strided_slice %33 {offsets = [0, 64], sizes = [2, 32], strides = [1, 1]} : vector<2x128xf32> to vector<2x32xf32>
    %cst_26 = arith.constant 2.000000e+00 : f32
    %37 = vector.broadcast %cst_26 : f32 to vector<2x32xf32>
    %38 = arith.mulf %37, %36 : vector<2x32xf32>
    %cst_27 = arith.constant 1.000000e+00 : f32
    %39 = vector.broadcast %cst_27 : f32 to vector<2x32xf32>
    %40 = arith.subf %38, %39 : vector<2x32xf32>
    %41 = vector.extract_strided_slice %33 {offsets = [0, 96], sizes = [2, 32], strides = [1, 1]} : vector<2x128xf32> to vector<2x32xf32>
    %42 = arith.mulf %35, %22 : vector<2x32xf32>
    %43 = arith.mulf %34, %40 : vector<2x32xf32>
    %44 = arith.addf %42, %43 : vector<2x32xf32>
    %45 = math.tanh %44 : vector<2x32xf32>
    %46 = arith.mulf %41, %45 : vector<2x32xf32>
    %cst_28 = arith.constant dense<0.000000e+00> : vector<2x128xf32>
    %47 = tpu.matmul %46, %3, %cst_28 {dimension_numbers = #tpu.dot_dimension_numbers<[1], [0], [0], [1], [0, 0, 1, 1], [], []>} : vector<2x32xf32>, vector<32x128xf32>, vector<2x128xf32> -> vector<2x128xf32>
    %cst_29 = arith.constant dense<0.000000e+00> : vector<2x128xf32>
    %48 = tpu.matmul %22, %4, %cst_29 {dimension_numbers = #tpu.dot_dimension_numbers<[1], [0], [0], [1], [0, 0, 1, 1], [], []>} : vector<2x32xf32>, vector<32x128xf32>, vector<2x128xf32> -> vector<2x128xf32>
    %49 = arith.addf %47, %48 : vector<2x128xf32>
    %50 = arith.addf %49, %21 : vector<2x128xf32>
    %51 = arith.negf %50 : vector<2x128xf32>
    %52 = math.exp %51 : vector<2x128xf32>
    %cst_30 = arith.constant 1.000000e+00 : f32
    %53 = vector.broadcast %cst_30 : f32 to vector<2x128xf32>
    %54 = arith.addf %53, %52 : vector<2x128xf32>
    %55 = arith.divf %53, %54 : vector<2x128xf32>
    %56 = vector.extract_strided_slice %55 {offsets = [0, 0], sizes = [2, 32], strides = [1, 1]} : vector<2x128xf32> to vector<2x32xf32>
    %57 = vector.extract_strided_slice %55 {offsets = [0, 32], sizes = [2, 32], strides = [1, 1]} : vector<2x128xf32> to vector<2x32xf32>
    %58 = vector.extract_strided_slice %55 {offsets = [0, 64], sizes = [2, 32], strides = [1, 1]} : vector<2x128xf32> to vector<2x32xf32>
    %cst_31 = arith.constant 2.000000e+00 : f32
    %59 = vector.broadcast %cst_31 : f32 to vector<2x32xf32>
    %60 = arith.mulf %59, %58 : vector<2x32xf32>
    %cst_32 = arith.constant 1.000000e+00 : f32
    %61 = vector.broadcast %cst_32 : f32 to vector<2x32xf32>
    %62 = arith.subf %60, %61 : vector<2x32xf32>
    %63 = vector.extract_strided_slice %55 {offsets = [0, 96], sizes = [2, 32], strides = [1, 1]} : vector<2x128xf32> to vector<2x32xf32>
    %64 = arith.mulf %57, %22 : vector<2x32xf32>
    %65 = arith.mulf %56, %62 : vector<2x32xf32>
    %66 = arith.addf %64, %65 : vector<2x32xf32>
    %67 = math.tanh %66 : vector<2x32xf32>
    %68 = arith.mulf %63, %67 : vector<2x32xf32>
    %c1 = arith.constant 1 : index
    %c0_33 = arith.constant 0 : index
    %c0_34 = arith.constant 0 : index
    %69 = vector.load %arg0[%c1, %c0_33, %c0_34] : memref<8x2x2xf32, #tpu.memory_space<vmem>>, vector<1x2x2xf32>
    %70 = vector.shape_cast %69 : vector<1x2x2xf32> to vector<2x2xf32>
    %cst_35 = arith.constant dense<0.000000e+00> : vector<2x128xf32>
    %71 = tpu.matmul %70, %0, %cst_35 {dimension_numbers = #tpu.dot_dimension_numbers<[1], [0], [0], [1], [0, 0, 1, 1], [], []>} : vector<2x2xf32>, vector<2x128xf32>, vector<2x128xf32> -> vector<2x128xf32>
    %cst_36 = arith.constant dense<0.000000e+00> : vector<2x128xf32>
    %72 = tpu.matmul %46, %1, %cst_36 {dimension_numbers = #tpu.dot_dimension_numbers<[1], [0], [0], [1], [0, 0, 1, 1], [], []>} : vector<2x32xf32>, vector<32x128xf32>, vector<2x128xf32> -> vector<2x128xf32>
    %73 = arith.addf %71, %72 : vector<2x128xf32>
    %74 = arith.addf %73, %19 : vector<2x128xf32>
    %75 = arith.negf %74 : vector<2x128xf32>
    %76 = math.exp %75 : vector<2x128xf32>
    %cst_37 = arith.constant 1.000000e+00 : f32
    %77 = vector.broadcast %cst_37 : f32 to vector<2x128xf32>
    %78 = arith.addf %77, %76 : vector<2x128xf32>
    %79 = arith.divf %77, %78 : vector<2x128xf32>
    %80 = vector.extract_strided_slice %79 {offsets = [0, 0], sizes = [2, 32], strides = [1, 1]} : vector<2x128xf32> to vector<2x32xf32>
    %81 = vector.extract_strided_slice %79 {offsets = [0, 32], sizes = [2, 32], strides = [1, 1]} : vector<2x128xf32> to vector<2x32xf32>
    %82 = vector.extract_strided_slice %79 {offsets = [0, 64], sizes = [2, 32], strides = [1, 1]} : vector<2x128xf32> to vector<2x32xf32>
    %cst_38 = arith.constant 2.000000e+00 : f32
    %83 = vector.broadcast %cst_38 : f32 to vector<2x32xf32>
    %84 = arith.mulf %83, %82 : vector<2x32xf32>
    %cst_39 = arith.constant 1.000000e+00 : f32
    %85 = vector.broadcast %cst_39 : f32 to vector<2x32xf32>
    %86 = arith.subf %84, %85 : vector<2x32xf32>
    %87 = vector.extract_strided_slice %79 {offsets = [0, 96], sizes = [2, 32], strides = [1, 1]} : vector<2x128xf32> to vector<2x32xf32>
    %88 = arith.mulf %81, %44 : vector<2x32xf32>
    %89 = arith.mulf %80, %86 : vector<2x32xf32>
    %90 = arith.addf %88, %89 : vector<2x32xf32>
    %91 = math.tanh %90 : vector<2x32xf32>
    %92 = arith.mulf %87, %91 : vector<2x32xf32>
    %cst_40 = arith.constant dense<0.000000e+00> : vector<2x128xf32>
    %93 = tpu.matmul %92, %3, %cst_40 {dimension_numbers = #tpu.dot_dimension_numbers<[1], [0], [0], [1], [0, 0, 1, 1], [], []>} : vector<2x32xf32>, vector<32x128xf32>, vector<2x128xf32> -> vector<2x128xf32>
    %cst_41 = arith.constant dense<0.000000e+00> : vector<2x128xf32>
    %94 = tpu.matmul %68, %4, %cst_41 {dimension_numbers = #tpu.dot_dimension_numbers<[1], [0], [0], [1], [0, 0, 1, 1], [], []>} : vector<2x32xf32>, vector<32x128xf32>, vector<2x128xf32> -> vector<2x128xf32>
    %95 = arith.addf %93, %94 : vector<2x128xf32>
    %96 = arith.addf %95, %21 : vector<2x128xf32>
    %97 = arith.negf %96 : vector<2x128xf32>
    %98 = math.exp %97 : vector<2x128xf32>
    %cst_42 = arith.constant 1.000000e+00 : f32
    %99 = vector.broadcast %cst_42 : f32 to vector<2x128xf32>
    %100 = arith.addf %99, %98 : vector<2x128xf32>
    %101 = arith.divf %99, %100 : vector<2x128xf32>
    %102 = vector.extract_strided_slice %101 {offsets = [0, 0], sizes = [2, 32], strides = [1, 1]} : vector<2x128xf32> to vector<2x32xf32>
    %103 = vector.extract_strided_slice %101 {offsets = [0, 32], sizes = [2, 32], strides = [1, 1]} : vector<2x128xf32> to vector<2x32xf32>
    %104 = vector.extract_strided_slice %101 {offsets = [0, 64], sizes = [2, 32], strides = [1, 1]} : vector<2x128xf32> to vector<2x32xf32>
    %cst_43 = arith.constant 2.000000e+00 : f32
    %105 = vector.broadcast %cst_43 : f32 to vector<2x32xf32>
    %106 = arith.mulf %105, %104 : vector<2x32xf32>
    %cst_44 = arith.constant 1.000000e+00 : f32
    %107 = vector.broadcast %cst_44 : f32 to vector<2x32xf32>
    %108 = arith.subf %106, %107 : vector<2x32xf32>
    %109 = vector.extract_strided_slice %101 {offsets = [0, 96], sizes = [2, 32], strides = [1, 1]} : vector<2x128xf32> to vector<2x32xf32>
    %110 = arith.mulf %103, %66 : vector<2x32xf32>
    %111 = arith.mulf %102, %108 : vector<2x32xf32>
    %112 = arith.addf %110, %111 : vector<2x32xf32>
    %113 = math.tanh %112 : vector<2x32xf32>
    %114 = arith.mulf %109, %113 : vector<2x32xf32>
    %c2 = arith.constant 2 : index
    %c0_45 = arith.constant 0 : index
    %c0_46 = arith.constant 0 : index
    %115 = vector.load %arg0[%c2, %c0_45, %c0_46] : memref<8x2x2xf32, #tpu.memory_space<vmem>>, vector<1x2x2xf32>
    %116 = vector.shape_cast %115 : vector<1x2x2xf32> to vector<2x2xf32>
    %cst_47 = arith.constant dense<0.000000e+00> : vector<2x128xf32>
    %117 = tpu.matmul %116, %0, %cst_47 {dimension_numbers = #tpu.dot_dimension_numbers<[1], [0], [0], [1], [0, 0, 1, 1], [], []>} : vector<2x2xf32>, vector<2x128xf32>, vector<2x128xf32> -> vector<2x128xf32>
    %cst_48 = arith.constant dense<0.000000e+00> : vector<2x128xf32>
    %118 = tpu.matmul %92, %1, %cst_48 {dimension_numbers = #tpu.dot_dimension_numbers<[1], [0], [0], [1], [0, 0, 1, 1], [], []>} : vector<2x32xf32>, vector<32x128xf32>, vector<2x128xf32> -> vector<2x128xf32>
    %119 = arith.addf %117, %118 : vector<2x128xf32>
    %120 = arith.addf %119, %19 : vector<2x128xf32>
    %121 = arith.negf %120 : vector<2x128xf32>
    %122 = math.exp %121 : vector<2x128xf32>
    %cst_49 = arith.constant 1.000000e+00 : f32
    %123 = vector.broadcast %cst_49 : f32 to vector<2x128xf32>
    %124 = arith.addf %123, %122 : vector<2x128xf32>
    %125 = arith.divf %123, %124 : vector<2x128xf32>
    %126 = vector.extract_strided_slice %125 {offsets = [0, 0], sizes = [2, 32], strides = [1, 1]} : vector<2x128xf32> to vector<2x32xf32>
    %127 = vector.extract_strided_slice %125 {offsets = [0, 32], sizes = [2, 32], strides = [1, 1]} : vector<2x128xf32> to vector<2x32xf32>
    %128 = vector.extract_strided_slice %125 {offsets = [0, 64], sizes = [2, 32], strides = [1, 1]} : vector<2x128xf32> to vector<2x32xf32>
    %cst_50 = arith.constant 2.000000e+00 : f32
    %129 = vector.broadcast %cst_50 : f32 to vector<2x32xf32>
    %130 = arith.mulf %129, %128 : vector<2x32xf32>
    %cst_51 = arith.constant 1.000000e+00 : f32
    %131 = vector.broadcast %cst_51 : f32 to vector<2x32xf32>
    %132 = arith.subf %130, %131 : vector<2x32xf32>
    %133 = vector.extract_strided_slice %125 {offsets = [0, 96], sizes = [2, 32], strides = [1, 1]} : vector<2x128xf32> to vector<2x32xf32>
    %134 = arith.mulf %127, %90 : vector<2x32xf32>
    %135 = arith.mulf %126, %132 : vector<2x32xf32>
    %136 = arith.addf %134, %135 : vector<2x32xf32>
    %137 = math.tanh %136 : vector<2x32xf32>
    %138 = arith.mulf %133, %137 : vector<2x32xf32>
    %cst_52 = arith.constant dense<0.000000e+00> : vector<2x128xf32>
    %139 = tpu.matmul %138, %3, %cst_52 {dimension_numbers = #tpu.dot_dimension_numbers<[1], [0], [0], [1], [0, 0, 1, 1], [], []>} : vector<2x32xf32>, vector<32x128xf32>, vector<2x128xf32> -> vector<2x128xf32>
    %cst_53 = arith.constant dense<0.000000e+00> : vector<2x128xf32>
    %140 = tpu.matmul %114, %4, %cst_53 {dimension_numbers = #tpu.dot_dimension_numbers<[1], [0], [0], [1], [0, 0, 1, 1], [], []>} : vector<2x32xf32>, vector<32x128xf32>, vector<2x128xf32> -> vector<2x128xf32>
    %141 = arith.addf %139, %140 : vector<2x128xf32>
    %142 = arith.addf %141, %21 : vector<2x128xf32>
    %143 = arith.negf %142 : vector<2x128xf32>
    %144 = math.exp %143 : vector<2x128xf32>
    %cst_54 = arith.constant 1.000000e+00 : f32
    %145 = vector.broadcast %cst_54 : f32 to vector<2x128xf32>
    %146 = arith.addf %145, %144 : vector<2x128xf32>
    %147 = arith.divf %145, %146 : vector<2x128xf32>
    %148 = vector.extract_strided_slice %147 {offsets = [0, 0], sizes = [2, 32], strides = [1, 1]} : vector<2x128xf32> to vector<2x32xf32>
    %149 = vector.extract_strided_slice %147 {offsets = [0, 32], sizes = [2, 32], strides = [1, 1]} : vector<2x128xf32> to vector<2x32xf32>
    %150 = vector.extract_strided_slice %147 {offsets = [0, 64], sizes = [2, 32], strides = [1, 1]} : vector<2x128xf32> to vector<2x32xf32>
    %cst_55 = arith.constant 2.000000e+00 : f32
    %151 = vector.broadcast %cst_55 : f32 to vector<2x32xf32>
    %152 = arith.mulf %151, %150 : vector<2x32xf32>
    %cst_56 = arith.constant 1.000000e+00 : f32
    %153 = vector.broadcast %cst_56 : f32 to vector<2x32xf32>
    %154 = arith.subf %152, %153 : vector<2x32xf32>
    %155 = vector.extract_strided_slice %147 {offsets = [0, 96], sizes = [2, 32], strides = [1, 1]} : vector<2x128xf32> to vector<2x32xf32>
    %156 = arith.mulf %149, %112 : vector<2x32xf32>
    %157 = arith.mulf %148, %154 : vector<2x32xf32>
    %158 = arith.addf %156, %157 : vector<2x32xf32>
    %159 = math.tanh %158 : vector<2x32xf32>
    %160 = arith.mulf %155, %159 : vector<2x32xf32>
    %c3 = arith.constant 3 : index
    %c0_57 = arith.constant 0 : index
    %c0_58 = arith.constant 0 : index
    %161 = vector.load %arg0[%c3, %c0_57, %c0_58] : memref<8x2x2xf32, #tpu.memory_space<vmem>>, vector<1x2x2xf32>
    %162 = vector.shape_cast %161 : vector<1x2x2xf32> to vector<2x2xf32>
    %cst_59 = arith.constant dense<0.000000e+00> : vector<2x128xf32>
    %163 = tpu.matmul %162, %0, %cst_59 {dimension_numbers = #tpu.dot_dimension_numbers<[1], [0], [0], [1], [0, 0, 1, 1], [], []>} : vector<2x2xf32>, vector<2x128xf32>, vector<2x128xf32> -> vector<2x128xf32>
    %cst_60 = arith.constant dense<0.000000e+00> : vector<2x128xf32>
    %164 = tpu.matmul %138, %1, %cst_60 {dimension_numbers = #tpu.dot_dimension_numbers<[1], [0], [0], [1], [0, 0, 1, 1], [], []>} : vector<2x32xf32>, vector<32x128xf32>, vector<2x128xf32> -> vector<2x128xf32>
    %165 = arith.addf %163, %164 : vector<2x128xf32>
    %166 = arith.addf %165, %19 : vector<2x128xf32>
    %167 = arith.negf %166 : vector<2x128xf32>
    %168 = math.exp %167 : vector<2x128xf32>
    %cst_61 = arith.constant 1.000000e+00 : f32
    %169 = vector.broadcast %cst_61 : f32 to vector<2x128xf32>
    %170 = arith.addf %169, %168 : vector<2x128xf32>
    %171 = arith.divf %169, %170 : vector<2x128xf32>
    %172 = vector.extract_strided_slice %171 {offsets = [0, 0], sizes = [2, 32], strides = [1, 1]} : vector<2x128xf32> to vector<2x32xf32>
    %173 = vector.extract_strided_slice %171 {offsets = [0, 32], sizes = [2, 32], strides = [1, 1]} : vector<2x128xf32> to vector<2x32xf32>
    %174 = vector.extract_strided_slice %171 {offsets = [0, 64], sizes = [2, 32], strides = [1, 1]} : vector<2x128xf32> to vector<2x32xf32>
    %cst_62 = arith.constant 2.000000e+00 : f32
    %175 = vector.broadcast %cst_62 : f32 to vector<2x32xf32>
    %176 = arith.mulf %175, %174 : vector<2x32xf32>
    %cst_63 = arith.constant 1.000000e+00 : f32
    %177 = vector.broadcast %cst_63 : f32 to vector<2x32xf32>
    %178 = arith.subf %176, %177 : vector<2x32xf32>
    %179 = vector.extract_strided_slice %171 {offsets = [0, 96], sizes = [2, 32], strides = [1, 1]} : vector<2x128xf32> to vector<2x32xf32>
    %180 = arith.mulf %173, %136 : vector<2x32xf32>
    %181 = arith.mulf %172, %178 : vector<2x32xf32>
    %182 = arith.addf %180, %181 : vector<2x32xf32>
    %183 = math.tanh %182 : vector<2x32xf32>
    %184 = arith.mulf %179, %183 : vector<2x32xf32>
    %cst_64 = arith.constant dense<0.000000e+00> : vector<2x128xf32>
    %185 = tpu.matmul %184, %3, %cst_64 {dimension_numbers = #tpu.dot_dimension_numbers<[1], [0], [0], [1], [0, 0, 1, 1], [], []>} : vector<2x32xf32>, vector<32x128xf32>, vector<2x128xf32> -> vector<2x128xf32>
    %cst_65 = arith.constant dense<0.000000e+00> : vector<2x128xf32>
    %186 = tpu.matmul %160, %4, %cst_65 {dimension_numbers = #tpu.dot_dimension_numbers<[1], [0], [0], [1], [0, 0, 1, 1], [], []>} : vector<2x32xf32>, vector<32x128xf32>, vector<2x128xf32> -> vector<2x128xf32>
    %187 = arith.addf %185, %186 : vector<2x128xf32>
    %188 = arith.addf %187, %21 : vector<2x128xf32>
    %189 = arith.negf %188 : vector<2x128xf32>
    %190 = math.exp %189 : vector<2x128xf32>
    %cst_66 = arith.constant 1.000000e+00 : f32
    %191 = vector.broadcast %cst_66 : f32 to vector<2x128xf32>
    %192 = arith.addf %191, %190 : vector<2x128xf32>
    %193 = arith.divf %191, %192 : vector<2x128xf32>
    %194 = vector.extract_strided_slice %193 {offsets = [0, 0], sizes = [2, 32], strides = [1, 1]} : vector<2x128xf32> to vector<2x32xf32>
    %195 = vector.extract_strided_slice %193 {offsets = [0, 32], sizes = [2, 32], strides = [1, 1]} : vector<2x128xf32> to vector<2x32xf32>
    %196 = vector.extract_strided_slice %193 {offsets = [0, 64], sizes = [2, 32], strides = [1, 1]} : vector<2x128xf32> to vector<2x32xf32>
    %cst_67 = arith.constant 2.000000e+00 : f32
    %197 = vector.broadcast %cst_67 : f32 to vector<2x32xf32>
    %198 = arith.mulf %197, %196 : vector<2x32xf32>
    %cst_68 = arith.constant 1.000000e+00 : f32
    %199 = vector.broadcast %cst_68 : f32 to vector<2x32xf32>
    %200 = arith.subf %198, %199 : vector<2x32xf32>
    %201 = vector.extract_strided_slice %193 {offsets = [0, 96], sizes = [2, 32], strides = [1, 1]} : vector<2x128xf32> to vector<2x32xf32>
    %202 = arith.mulf %195, %158 : vector<2x32xf32>
    %203 = arith.mulf %194, %200 : vector<2x32xf32>
    %204 = arith.addf %202, %203 : vector<2x32xf32>
    %205 = math.tanh %204 : vector<2x32xf32>
    %206 = arith.mulf %201, %205 : vector<2x32xf32>
    %c4 = arith.constant 4 : index
    %c0_69 = arith.constant 0 : index
    %c0_70 = arith.constant 0 : index
    %207 = vector.load %arg0[%c4, %c0_69, %c0_70] : memref<8x2x2xf32, #tpu.memory_space<vmem>>, vector<1x2x2xf32>
    %208 = vector.shape_cast %207 : vector<1x2x2xf32> to vector<2x2xf32>
    %cst_71 = arith.constant dense<0.000000e+00> : vector<2x128xf32>
    %209 = tpu.matmul %208, %0, %cst_71 {dimension_numbers = #tpu.dot_dimension_numbers<[1], [0], [0], [1], [0, 0, 1, 1], [], []>} : vector<2x2xf32>, vector<2x128xf32>, vector<2x128xf32> -> vector<2x128xf32>
    %cst_72 = arith.constant dense<0.000000e+00> : vector<2x128xf32>
    %210 = tpu.matmul %184, %1, %cst_72 {dimension_numbers = #tpu.dot_dimension_numbers<[1], [0], [0], [1], [0, 0, 1, 1], [], []>} : vector<2x32xf32>, vector<32x128xf32>, vector<2x128xf32> -> vector<2x128xf32>
    %211 = arith.addf %209, %210 : vector<2x128xf32>
    %212 = arith.addf %211, %19 : vector<2x128xf32>
    %213 = arith.negf %212 : vector<2x128xf32>
    %214 = math.exp %213 : vector<2x128xf32>
    %cst_73 = arith.constant 1.000000e+00 : f32
    %215 = vector.broadcast %cst_73 : f32 to vector<2x128xf32>
    %216 = arith.addf %215, %214 : vector<2x128xf32>
    %217 = arith.divf %215, %216 : vector<2x128xf32>
    %218 = vector.extract_strided_slice %217 {offsets = [0, 0], sizes = [2, 32], strides = [1, 1]} : vector<2x128xf32> to vector<2x32xf32>
    %219 = vector.extract_strided_slice %217 {offsets = [0, 32], sizes = [2, 32], strides = [1, 1]} : vector<2x128xf32> to vector<2x32xf32>
    %220 = vector.extract_strided_slice %217 {offsets = [0, 64], sizes = [2, 32], strides = [1, 1]} : vector<2x128xf32> to vector<2x32xf32>
    %cst_74 = arith.constant 2.000000e+00 : f32
    %221 = vector.broadcast %cst_74 : f32 to vector<2x32xf32>
    %222 = arith.mulf %221, %220 : vector<2x32xf32>
    %cst_75 = arith.constant 1.000000e+00 : f32
    %223 = vector.broadcast %cst_75 : f32 to vector<2x32xf32>
    %224 = arith.subf %222, %223 : vector<2x32xf32>
    %225 = vector.extract_strided_slice %217 {offsets = [0, 96], sizes = [2, 32], strides = [1, 1]} : vector<2x128xf32> to vector<2x32xf32>
    %226 = arith.mulf %219, %182 : vector<2x32xf32>
    %227 = arith.mulf %218, %224 : vector<2x32xf32>
    %228 = arith.addf %226, %227 : vector<2x32xf32>
    %229 = math.tanh %228 : vector<2x32xf32>
    %230 = arith.mulf %225, %229 : vector<2x32xf32>
    %cst_76 = arith.constant dense<0.000000e+00> : vector<2x128xf32>
    %231 = tpu.matmul %230, %3, %cst_76 {dimension_numbers = #tpu.dot_dimension_numbers<[1], [0], [0], [1], [0, 0, 1, 1], [], []>} : vector<2x32xf32>, vector<32x128xf32>, vector<2x128xf32> -> vector<2x128xf32>
    %cst_77 = arith.constant dense<0.000000e+00> : vector<2x128xf32>
    %232 = tpu.matmul %206, %4, %cst_77 {dimension_numbers = #tpu.dot_dimension_numbers<[1], [0], [0], [1], [0, 0, 1, 1], [], []>} : vector<2x32xf32>, vector<32x128xf32>, vector<2x128xf32> -> vector<2x128xf32>
    %233 = arith.addf %231, %232 : vector<2x128xf32>
    %234 = arith.addf %233, %21 : vector<2x128xf32>
    %235 = arith.negf %234 : vector<2x128xf32>
    %236 = math.exp %235 : vector<2x128xf32>
    %cst_78 = arith.constant 1.000000e+00 : f32
    %237 = vector.broadcast %cst_78 : f32 to vector<2x128xf32>
    %238 = arith.addf %237, %236 : vector<2x128xf32>
    %239 = arith.divf %237, %238 : vector<2x128xf32>
    %240 = vector.extract_strided_slice %239 {offsets = [0, 0], sizes = [2, 32], strides = [1, 1]} : vector<2x128xf32> to vector<2x32xf32>
    %241 = vector.extract_strided_slice %239 {offsets = [0, 32], sizes = [2, 32], strides = [1, 1]} : vector<2x128xf32> to vector<2x32xf32>
    %242 = vector.extract_strided_slice %239 {offsets = [0, 64], sizes = [2, 32], strides = [1, 1]} : vector<2x128xf32> to vector<2x32xf32>
    %cst_79 = arith.constant 2.000000e+00 : f32
    %243 = vector.broadcast %cst_79 : f32 to vector<2x32xf32>
    %244 = arith.mulf %243, %242 : vector<2x32xf32>
    %cst_80 = arith.constant 1.000000e+00 : f32
    %245 = vector.broadcast %cst_80 : f32 to vector<2x32xf32>
    %246 = arith.subf %244, %245 : vector<2x32xf32>
    %247 = vector.extract_strided_slice %239 {offsets = [0, 96], sizes = [2, 32], strides = [1, 1]} : vector<2x128xf32> to vector<2x32xf32>
    %248 = arith.mulf %241, %204 : vector<2x32xf32>
    %249 = arith.mulf %240, %246 : vector<2x32xf32>
    %250 = arith.addf %248, %249 : vector<2x32xf32>
    %251 = math.tanh %250 : vector<2x32xf32>
    %252 = arith.mulf %247, %251 : vector<2x32xf32>
    %c5 = arith.constant 5 : index
    %c0_81 = arith.constant 0 : index
    %c0_82 = arith.constant 0 : index
    %253 = vector.load %arg0[%c5, %c0_81, %c0_82] : memref<8x2x2xf32, #tpu.memory_space<vmem>>, vector<1x2x2xf32>
    %254 = vector.shape_cast %253 : vector<1x2x2xf32> to vector<2x2xf32>
    %cst_83 = arith.constant dense<0.000000e+00> : vector<2x128xf32>
    %255 = tpu.matmul %254, %0, %cst_83 {dimension_numbers = #tpu.dot_dimension_numbers<[1], [0], [0], [1], [0, 0, 1, 1], [], []>} : vector<2x2xf32>, vector<2x128xf32>, vector<2x128xf32> -> vector<2x128xf32>
    %cst_84 = arith.constant dense<0.000000e+00> : vector<2x128xf32>
    %256 = tpu.matmul %230, %1, %cst_84 {dimension_numbers = #tpu.dot_dimension_numbers<[1], [0], [0], [1], [0, 0, 1, 1], [], []>} : vector<2x32xf32>, vector<32x128xf32>, vector<2x128xf32> -> vector<2x128xf32>
    %257 = arith.addf %255, %256 : vector<2x128xf32>
    %258 = arith.addf %257, %19 : vector<2x128xf32>
    %259 = arith.negf %258 : vector<2x128xf32>
    %260 = math.exp %259 : vector<2x128xf32>
    %cst_85 = arith.constant 1.000000e+00 : f32
    %261 = vector.broadcast %cst_85 : f32 to vector<2x128xf32>
    %262 = arith.addf %261, %260 : vector<2x128xf32>
    %263 = arith.divf %261, %262 : vector<2x128xf32>
    %264 = vector.extract_strided_slice %263 {offsets = [0, 0], sizes = [2, 32], strides = [1, 1]} : vector<2x128xf32> to vector<2x32xf32>
    %265 = vector.extract_strided_slice %263 {offsets = [0, 32], sizes = [2, 32], strides = [1, 1]} : vector<2x128xf32> to vector<2x32xf32>
    %266 = vector.extract_strided_slice %263 {offsets = [0, 64], sizes = [2, 32], strides = [1, 1]} : vector<2x128xf32> to vector<2x32xf32>
    %cst_86 = arith.constant 2.000000e+00 : f32
    %267 = vector.broadcast %cst_86 : f32 to vector<2x32xf32>
    %268 = arith.mulf %267, %266 : vector<2x32xf32>
    %cst_87 = arith.constant 1.000000e+00 : f32
    %269 = vector.broadcast %cst_87 : f32 to vector<2x32xf32>
    %270 = arith.subf %268, %269 : vector<2x32xf32>
    %271 = vector.extract_strided_slice %263 {offsets = [0, 96], sizes = [2, 32], strides = [1, 1]} : vector<2x128xf32> to vector<2x32xf32>
    %272 = arith.mulf %265, %228 : vector<2x32xf32>
    %273 = arith.mulf %264, %270 : vector<2x32xf32>
    %274 = arith.addf %272, %273 : vector<2x32xf32>
    %275 = math.tanh %274 : vector<2x32xf32>
    %276 = arith.mulf %271, %275 : vector<2x32xf32>
    %cst_88 = arith.constant dense<0.000000e+00> : vector<2x128xf32>
    %277 = tpu.matmul %276, %3, %cst_88 {dimension_numbers = #tpu.dot_dimension_numbers<[1], [0], [0], [1], [0, 0, 1, 1], [], []>} : vector<2x32xf32>, vector<32x128xf32>, vector<2x128xf32> -> vector<2x128xf32>
    %cst_89 = arith.constant dense<0.000000e+00> : vector<2x128xf32>
    %278 = tpu.matmul %252, %4, %cst_89 {dimension_numbers = #tpu.dot_dimension_numbers<[1], [0], [0], [1], [0, 0, 1, 1], [], []>} : vector<2x32xf32>, vector<32x128xf32>, vector<2x128xf32> -> vector<2x128xf32>
    %279 = arith.addf %277, %278 : vector<2x128xf32>
    %280 = arith.addf %279, %21 : vector<2x128xf32>
    %281 = arith.negf %280 : vector<2x128xf32>
    %282 = math.exp %281 : vector<2x128xf32>
    %cst_90 = arith.constant 1.000000e+00 : f32
    %283 = vector.broadcast %cst_90 : f32 to vector<2x128xf32>
    %284 = arith.addf %283, %282 : vector<2x128xf32>
    %285 = arith.divf %283, %284 : vector<2x128xf32>
    %286 = vector.extract_strided_slice %285 {offsets = [0, 0], sizes = [2, 32], strides = [1, 1]} : vector<2x128xf32> to vector<2x32xf32>
    %287 = vector.extract_strided_slice %285 {offsets = [0, 32], sizes = [2, 32], strides = [1, 1]} : vector<2x128xf32> to vector<2x32xf32>
    %288 = vector.extract_strided_slice %285 {offsets = [0, 64], sizes = [2, 32], strides = [1, 1]} : vector<2x128xf32> to vector<2x32xf32>
    %cst_91 = arith.constant 2.000000e+00 : f32
    %289 = vector.broadcast %cst_91 : f32 to vector<2x32xf32>
    %290 = arith.mulf %289, %288 : vector<2x32xf32>
    %cst_92 = arith.constant 1.000000e+00 : f32
    %291 = vector.broadcast %cst_92 : f32 to vector<2x32xf32>
    %292 = arith.subf %290, %291 : vector<2x32xf32>
    %293 = vector.extract_strided_slice %285 {offsets = [0, 96], sizes = [2, 32], strides = [1, 1]} : vector<2x128xf32> to vector<2x32xf32>
    %294 = arith.mulf %287, %250 : vector<2x32xf32>
    %295 = arith.mulf %286, %292 : vector<2x32xf32>
    %296 = arith.addf %294, %295 : vector<2x32xf32>
    %297 = math.tanh %296 : vector<2x32xf32>
    %298 = arith.mulf %293, %297 : vector<2x32xf32>
    %c6 = arith.constant 6 : index
    %c0_93 = arith.constant 0 : index
    %c0_94 = arith.constant 0 : index
    %299 = vector.load %arg0[%c6, %c0_93, %c0_94] : memref<8x2x2xf32, #tpu.memory_space<vmem>>, vector<1x2x2xf32>
    %300 = vector.shape_cast %299 : vector<1x2x2xf32> to vector<2x2xf32>
    %cst_95 = arith.constant dense<0.000000e+00> : vector<2x128xf32>
    %301 = tpu.matmul %300, %0, %cst_95 {dimension_numbers = #tpu.dot_dimension_numbers<[1], [0], [0], [1], [0, 0, 1, 1], [], []>} : vector<2x2xf32>, vector<2x128xf32>, vector<2x128xf32> -> vector<2x128xf32>
    %cst_96 = arith.constant dense<0.000000e+00> : vector<2x128xf32>
    %302 = tpu.matmul %276, %1, %cst_96 {dimension_numbers = #tpu.dot_dimension_numbers<[1], [0], [0], [1], [0, 0, 1, 1], [], []>} : vector<2x32xf32>, vector<32x128xf32>, vector<2x128xf32> -> vector<2x128xf32>
    %303 = arith.addf %301, %302 : vector<2x128xf32>
    %304 = arith.addf %303, %19 : vector<2x128xf32>
    %305 = arith.negf %304 : vector<2x128xf32>
    %306 = math.exp %305 : vector<2x128xf32>
    %cst_97 = arith.constant 1.000000e+00 : f32
    %307 = vector.broadcast %cst_97 : f32 to vector<2x128xf32>
    %308 = arith.addf %307, %306 : vector<2x128xf32>
    %309 = arith.divf %307, %308 : vector<2x128xf32>
    %310 = vector.extract_strided_slice %309 {offsets = [0, 0], sizes = [2, 32], strides = [1, 1]} : vector<2x128xf32> to vector<2x32xf32>
    %311 = vector.extract_strided_slice %309 {offsets = [0, 32], sizes = [2, 32], strides = [1, 1]} : vector<2x128xf32> to vector<2x32xf32>
    %312 = vector.extract_strided_slice %309 {offsets = [0, 64], sizes = [2, 32], strides = [1, 1]} : vector<2x128xf32> to vector<2x32xf32>
    %cst_98 = arith.constant 2.000000e+00 : f32
    %313 = vector.broadcast %cst_98 : f32 to vector<2x32xf32>
    %314 = arith.mulf %313, %312 : vector<2x32xf32>
    %cst_99 = arith.constant 1.000000e+00 : f32
    %315 = vector.broadcast %cst_99 : f32 to vector<2x32xf32>
    %316 = arith.subf %314, %315 : vector<2x32xf32>
    %317 = vector.extract_strided_slice %309 {offsets = [0, 96], sizes = [2, 32], strides = [1, 1]} : vector<2x128xf32> to vector<2x32xf32>
    %318 = arith.mulf %311, %274 : vector<2x32xf32>
    %319 = arith.mulf %310, %316 : vector<2x32xf32>
    %320 = arith.addf %318, %319 : vector<2x32xf32>
    %321 = math.tanh %320 : vector<2x32xf32>
    %322 = arith.mulf %317, %321 : vector<2x32xf32>
    %cst_100 = arith.constant dense<0.000000e+00> : vector<2x128xf32>
    %323 = tpu.matmul %322, %3, %cst_100 {dimension_numbers = #tpu.dot_dimension_numbers<[1], [0], [0], [1], [0, 0, 1, 1], [], []>} : vector<2x32xf32>, vector<32x128xf32>, vector<2x128xf32> -> vector<2x128xf32>
    %cst_101 = arith.constant dense<0.000000e+00> : vector<2x128xf32>
    %324 = tpu.matmul %298, %4, %cst_101 {dimension_numbers = #tpu.dot_dimension_numbers<[1], [0], [0], [1], [0, 0, 1, 1], [], []>} : vector<2x32xf32>, vector<32x128xf32>, vector<2x128xf32> -> vector<2x128xf32>
    %325 = arith.addf %323, %324 : vector<2x128xf32>
    %326 = arith.addf %325, %21 : vector<2x128xf32>
    %327 = arith.negf %326 : vector<2x128xf32>
    %328 = math.exp %327 : vector<2x128xf32>
    %cst_102 = arith.constant 1.000000e+00 : f32
    %329 = vector.broadcast %cst_102 : f32 to vector<2x128xf32>
    %330 = arith.addf %329, %328 : vector<2x128xf32>
    %331 = arith.divf %329, %330 : vector<2x128xf32>
    %332 = vector.extract_strided_slice %331 {offsets = [0, 0], sizes = [2, 32], strides = [1, 1]} : vector<2x128xf32> to vector<2x32xf32>
    %333 = vector.extract_strided_slice %331 {offsets = [0, 32], sizes = [2, 32], strides = [1, 1]} : vector<2x128xf32> to vector<2x32xf32>
    %334 = vector.extract_strided_slice %331 {offsets = [0, 64], sizes = [2, 32], strides = [1, 1]} : vector<2x128xf32> to vector<2x32xf32>
    %cst_103 = arith.constant 2.000000e+00 : f32
    %335 = vector.broadcast %cst_103 : f32 to vector<2x32xf32>
    %336 = arith.mulf %335, %334 : vector<2x32xf32>
    %cst_104 = arith.constant 1.000000e+00 : f32
    %337 = vector.broadcast %cst_104 : f32 to vector<2x32xf32>
    %338 = arith.subf %336, %337 : vector<2x32xf32>
    %339 = vector.extract_strided_slice %331 {offsets = [0, 96], sizes = [2, 32], strides = [1, 1]} : vector<2x128xf32> to vector<2x32xf32>
    %340 = arith.mulf %333, %296 : vector<2x32xf32>
    %341 = arith.mulf %332, %338 : vector<2x32xf32>
    %342 = arith.addf %340, %341 : vector<2x32xf32>
    %343 = math.tanh %342 : vector<2x32xf32>
    %344 = arith.mulf %339, %343 : vector<2x32xf32>
    %c7 = arith.constant 7 : index
    %c0_105 = arith.constant 0 : index
    %c0_106 = arith.constant 0 : index
    %345 = vector.load %arg0[%c7, %c0_105, %c0_106] : memref<8x2x2xf32, #tpu.memory_space<vmem>>, vector<1x2x2xf32>
    %346 = vector.shape_cast %345 : vector<1x2x2xf32> to vector<2x2xf32>
    %cst_107 = arith.constant dense<0.000000e+00> : vector<2x128xf32>
    %347 = tpu.matmul %346, %0, %cst_107 {dimension_numbers = #tpu.dot_dimension_numbers<[1], [0], [0], [1], [0, 0, 1, 1], [], []>} : vector<2x2xf32>, vector<2x128xf32>, vector<2x128xf32> -> vector<2x128xf32>
    %cst_108 = arith.constant dense<0.000000e+00> : vector<2x128xf32>
    %348 = tpu.matmul %322, %1, %cst_108 {dimension_numbers = #tpu.dot_dimension_numbers<[1], [0], [0], [1], [0, 0, 1, 1], [], []>} : vector<2x32xf32>, vector<32x128xf32>, vector<2x128xf32> -> vector<2x128xf32>
    %349 = arith.addf %347, %348 : vector<2x128xf32>
    %350 = arith.addf %349, %19 : vector<2x128xf32>
    %351 = arith.negf %350 : vector<2x128xf32>
    %352 = math.exp %351 : vector<2x128xf32>
    %cst_109 = arith.constant 1.000000e+00 : f32
    %353 = vector.broadcast %cst_109 : f32 to vector<2x128xf32>
    %354 = arith.addf %353, %352 : vector<2x128xf32>
    %355 = arith.divf %353, %354 : vector<2x128xf32>
    %356 = vector.extract_strided_slice %355 {offsets = [0, 0], sizes = [2, 32], strides = [1, 1]} : vector<2x128xf32> to vector<2x32xf32>
    %357 = vector.extract_strided_slice %355 {offsets = [0, 32], sizes = [2, 32], strides = [1, 1]} : vector<2x128xf32> to vector<2x32xf32>
    %358 = vector.extract_strided_slice %355 {offsets = [0, 64], sizes = [2, 32], strides = [1, 1]} : vector<2x128xf32> to vector<2x32xf32>
    %cst_110 = arith.constant 2.000000e+00 : f32
    %359 = vector.broadcast %cst_110 : f32 to vector<2x32xf32>
    %360 = arith.mulf %359, %358 : vector<2x32xf32>
    %cst_111 = arith.constant 1.000000e+00 : f32
    %361 = vector.broadcast %cst_111 : f32 to vector<2x32xf32>
    %362 = arith.subf %360, %361 : vector<2x32xf32>
    %363 = vector.extract_strided_slice %355 {offsets = [0, 96], sizes = [2, 32], strides = [1, 1]} : vector<2x128xf32> to vector<2x32xf32>
    %364 = arith.mulf %357, %320 : vector<2x32xf32>
    %365 = arith.mulf %356, %362 : vector<2x32xf32>
    %366 = arith.addf %364, %365 : vector<2x32xf32>
    %367 = math.tanh %366 : vector<2x32xf32>
    %368 = arith.mulf %363, %367 : vector<2x32xf32>
    %cst_112 = arith.constant dense<0.000000e+00> : vector<2x128xf32>
    %369 = tpu.matmul %368, %3, %cst_112 {dimension_numbers = #tpu.dot_dimension_numbers<[1], [0], [0], [1], [0, 0, 1, 1], [], []>} : vector<2x32xf32>, vector<32x128xf32>, vector<2x128xf32> -> vector<2x128xf32>
    %cst_113 = arith.constant dense<0.000000e+00> : vector<2x128xf32>
    %370 = tpu.matmul %344, %4, %cst_113 {dimension_numbers = #tpu.dot_dimension_numbers<[1], [0], [0], [1], [0, 0, 1, 1], [], []>} : vector<2x32xf32>, vector<32x128xf32>, vector<2x128xf32> -> vector<2x128xf32>
    %371 = arith.addf %369, %370 : vector<2x128xf32>
    %372 = arith.addf %371, %21 : vector<2x128xf32>
    %373 = arith.negf %372 : vector<2x128xf32>
    %374 = math.exp %373 : vector<2x128xf32>
    %cst_114 = arith.constant 1.000000e+00 : f32
    %375 = vector.broadcast %cst_114 : f32 to vector<2x128xf32>
    %376 = arith.addf %375, %374 : vector<2x128xf32>
    %377 = arith.divf %375, %376 : vector<2x128xf32>
    %378 = vector.extract_strided_slice %377 {offsets = [0, 0], sizes = [2, 32], strides = [1, 1]} : vector<2x128xf32> to vector<2x32xf32>
    %379 = vector.extract_strided_slice %377 {offsets = [0, 32], sizes = [2, 32], strides = [1, 1]} : vector<2x128xf32> to vector<2x32xf32>
    %380 = vector.extract_strided_slice %377 {offsets = [0, 64], sizes = [2, 32], strides = [1, 1]} : vector<2x128xf32> to vector<2x32xf32>
    %cst_115 = arith.constant 2.000000e+00 : f32
    %381 = vector.broadcast %cst_115 : f32 to vector<2x32xf32>
    %382 = arith.mulf %381, %380 : vector<2x32xf32>
    %cst_116 = arith.constant 1.000000e+00 : f32
    %383 = vector.broadcast %cst_116 : f32 to vector<2x32xf32>
    %384 = arith.subf %382, %383 : vector<2x32xf32>
    %385 = vector.extract_strided_slice %377 {offsets = [0, 96], sizes = [2, 32], strides = [1, 1]} : vector<2x128xf32> to vector<2x32xf32>
    %386 = arith.mulf %379, %342 : vector<2x32xf32>
    %387 = arith.mulf %378, %384 : vector<2x32xf32>
    %388 = arith.addf %386, %387 : vector<2x32xf32>
    %389 = math.tanh %388 : vector<2x32xf32>
    %390 = arith.mulf %385, %389 : vector<2x32xf32>
    %391 = tpu.concatenate %68, %114, %160, %206, %252, %298, %344, %390 in 0 : vector<2x32xf32>, vector<2x32xf32>, vector<2x32xf32>, vector<2x32xf32>, vector<2x32xf32>, vector<2x32xf32>, vector<2x32xf32>, vector<2x32xf32> -> vector<16x32xf32>
    %cst_117 = arith.constant dense<0.000000e+00> : vector<16x128xf32>
    %392 = tpu.matmul %391, %6, %cst_117 {dimension_numbers = #tpu.dot_dimension_numbers<[1], [0], [0], [1], [0, 0, 1, 1], [], []>} : vector<16x32xf32>, vector<32x128xf32>, vector<16x128xf32> -> vector<16x128xf32>
    %393 = vector.broadcast %7 : vector<1x128xf32> to vector<16x128xf32>
    %394 = arith.addf %392, %393 : vector<16x128xf32>
    %c0_118 = arith.constant 0 : index
    %c0_119 = arith.constant 0 : index
    %395 = vector.load %arg3[%c0_118, %c0_119] : memref<24x128xf32, #tpu.memory_space<vmem>>, vector<16x128xf32>
    tpu.vector_store %arg3[%c0_118, %c0_119], %394 {strides = array<i32>} : memref<24x128xf32, #tpu.memory_space<vmem>>, vector<16x128xf32>,
    %cst_120 = arith.constant dense<0.000000e+00> : vector<2x32xf32>
    %396 = tpu.matmul %390, %10, %cst_120 {dimension_numbers = #tpu.dot_dimension_numbers<[1], [0], [0], [1], [0, 0, 1, 1], [], []>} : vector<2x32xf32>, vector<32x32xf32>, vector<2x32xf32> -> vector<2x32xf32>
    %397 = vector.broadcast %11 : vector<1x32xf32> to vector<2x32xf32>
    %398 = arith.addf %396, %397 : vector<2x32xf32>
    %cst_121 = arith.constant 0.000000e+00 : f32
    %399 = vector.broadcast %cst_121 : f32 to vector<2x32xf32>
    %400 = arith.maximumf %398, %399 : vector<2x32xf32>
    %cst_122 = arith.constant dense<0.000000e+00> : vector<32xf32>
    %401 = vector.multi_reduction <add>, %400, %cst_122 [0] : vector<2x32xf32> to vector<32xf32>
    %402 = vector.shape_cast %401 : vector<32xf32> to vector<1x32xf32>
    %cst_123 = arith.constant 2.000000e+00 : f32
    %403 = vector.broadcast %cst_123 : f32 to vector<1x32xf32>
    %404 = arith.divf %402, %403 : vector<1x32xf32>
    %405 = vector.broadcast %404 : vector<1x32xf32> to vector<2x32xf32>
    %406 = arith.subf %400, %405 : vector<2x32xf32>
    %407 = vector.broadcast %404 : vector<1x32xf32> to vector<2x32xf32>
    %408 = arith.subf %400, %407 : vector<2x32xf32>
    %409 = arith.mulf %406, %408 : vector<2x32xf32>
    %cst_124 = arith.constant dense<0.000000e+00> : vector<32xf32>
    %410 = vector.multi_reduction <add>, %409, %cst_124 [0] : vector<2x32xf32> to vector<32xf32>
    %411 = vector.shape_cast %410 : vector<32xf32> to vector<1x32xf32>
    %cst_125 = arith.constant 2.000000e+00 : f32
    %412 = vector.broadcast %cst_125 : f32 to vector<1x32xf32>
    %413 = arith.divf %411, %412 : vector<1x32xf32>
    %414 = vector.broadcast %404 : vector<1x32xf32> to vector<2x32xf32>
    %415 = arith.subf %400, %414 : vector<2x32xf32>
    %cst_126 = arith.constant 9.99999974E-6 : f32
    %416 = vector.broadcast %cst_126 : f32 to vector<1x32xf32>
    %417 = arith.addf %413, %416 : vector<1x32xf32>
    %418 = math.rsqrt %417 : vector<1x32xf32>
    %419 = vector.broadcast %418 : vector<1x32xf32> to vector<2x32xf32>
    %420 = arith.mulf %415, %419 : vector<2x32xf32>
    %421 = vector.broadcast %12 : vector<1x32xf32> to vector<2x32xf32>
    %422 = arith.mulf %420, %421 : vector<2x32xf32>
    %423 = vector.broadcast %13 : vector<1x32xf32> to vector<2x32xf32>
    %424 = arith.addf %422, %423 : vector<2x32xf32>
    %cst_127 = arith.constant dense<0.000000e+00> : vector<2x32xf32>
    %425 = tpu.matmul %424, %14, %cst_127 {dimension_numbers = #tpu.dot_dimension_numbers<[1], [0], [0], [1], [0, 0, 1, 1], [], []>} : vector<2x32xf32>, vector<32x32xf32>, vector<2x32xf32> -> vector<2x32xf32>
    %426 = vector.broadcast %15 : vector<1x32xf32> to vector<2x32xf32>
    %427 = arith.addf %425, %426 : vector<2x32xf32>
    %cst_128 = arith.constant 0.000000e+00 : f32
    %428 = vector.broadcast %cst_128 : f32 to vector<2x32xf32>
    %429 = arith.maximumf %427, %428 : vector<2x32xf32>
    %cst_129 = arith.constant dense<0.000000e+00> : vector<32xf32>
    %430 = vector.multi_reduction <add>, %429, %cst_129 [0] : vector<2x32xf32> to vector<32xf32>
    %431 = vector.shape_cast %430 : vector<32xf32> to vector<1x32xf32>
    %cst_130 = arith.constant 2.000000e+00 : f32
    %432 = vector.broadcast %cst_130 : f32 to vector<1x32xf32>
    %433 = arith.divf %431, %432 : vector<1x32xf32>
    %434 = vector.broadcast %433 : vector<1x32xf32> to vector<2x32xf32>
    %435 = arith.subf %429, %434 : vector<2x32xf32>
    %436 = vector.broadcast %433 : vector<1x32xf32> to vector<2x32xf32>
    %437 = arith.subf %429, %436 : vector<2x32xf32>
    %438 = arith.mulf %435, %437 : vector<2x32xf32>
    %cst_131 = arith.constant dense<0.000000e+00> : vector<32xf32>
    %439 = vector.multi_reduction <add>, %438, %cst_131 [0] : vector<2x32xf32> to vector<32xf32>
    %440 = vector.shape_cast %439 : vector<32xf32> to vector<1x32xf32>
    %cst_132 = arith.constant 2.000000e+00 : f32
    %441 = vector.broadcast %cst_132 : f32 to vector<1x32xf32>
    %442 = arith.divf %440, %441 : vector<1x32xf32>
    %443 = vector.broadcast %433 : vector<1x32xf32> to vector<2x32xf32>
    %444 = arith.subf %429, %443 : vector<2x32xf32>
    %cst_133 = arith.constant 9.99999974E-6 : f32
    %445 = vector.broadcast %cst_133 : f32 to vector<1x32xf32>
    %446 = arith.addf %442, %445 : vector<1x32xf32>
    %447 = math.rsqrt %446 : vector<1x32xf32>
    %448 = vector.broadcast %447 : vector<1x32xf32> to vector<2x32xf32>
    %449 = arith.mulf %444, %448 : vector<2x32xf32>
    %450 = vector.broadcast %16 : vector<1x32xf32> to vector<2x32xf32>
    %451 = arith.mulf %449, %450 : vector<2x32xf32>
    %452 = vector.broadcast %17 : vector<1x32xf32> to vector<2x32xf32>
    %453 = arith.addf %451, %452 : vector<2x32xf32>
    %cst_134 = arith.constant dense<0.000000e+00> : vector<2x128xf32>
    %454 = tpu.matmul %453, %8, %cst_134 {dimension_numbers = #tpu.dot_dimension_numbers<[1], [0], [0], [1], [0, 0, 1, 1], [], []>} : vector<2x32xf32>, vector<32x128xf32>, vector<2x128xf32> -> vector<2x128xf32>
    %455 = vector.broadcast %9 : vector<1x128xf32> to vector<2x128xf32>
    %456 = arith.addf %454, %455 : vector<2x128xf32>
    %cst_135 = arith.constant 0.000000e+00 : f32
    %457 = vector.broadcast %cst_135 : f32 to vector<6x128xf32>
    %458 = tpu.concatenate %456, %457 in 0 : vector<2x128xf32>, vector<6x128xf32> -> vector<8x128xf32>
    %c16 = arith.constant 16 : index
    %c0_136 = arith.constant 0 : index
    %459 = vector.load %arg3[%c16, %c0_136] : memref<24x128xf32, #tpu.memory_space<vmem>>, vector<8x128xf32>
    tpu.vector_store %arg3[%c16, %c0_136], %458 {strides = array<i32>} : memref<24x128xf32, #tpu.memory_space<vmem>>, vector<8x128xf32>,
    return
  }
}

</mosaic_0001>

<llo_original>
// kernel: dae6_forward.1
$region0: #{dae6_forward.1}
  #allocation0 [shape = 'u32[]', space=smem, size = 0x4, offset = 0x4, fixed_abs, tag = 'smem constant byte address 0x4 - core index']
  #allocation1 [shape = 'u32[144,128]{1,0:T(1,128)}', space=vmem, size = 0x12000, scoped, tag = 'internal scratch']
  %s0 = inlined_call_operand.vmem [shape: f32[8,2,2], index: 0, kind: input, shape index: {}]
  %s1 = inlined_call_operand.vmem [shape: f32[200,128], index: 1, kind: input, shape index: {}]
  %s2 = inlined_call_operand.vmem [shape: f32[80,32], index: 2, kind: input, shape index: {}]
  %s3 = inlined_call_operand.vmem [shape: f32[24,128], index: 3, kind: output, shape index: {}]
  %s4 = sld [smem:[#allocation0]]
  $region22: #{dae6_forward.1} parent=0
    _
  %s6 = ssub.s32 1, %s4
  %s7 = scalar_select 0, %s6, %s4
  // Predicated region
  $region2: #{dae6_forward.1} parent=0 // pred_check
    _
  $region3: #{dae6_forward.1} parent=0 // pred_check_branch
    %9 = sbr.rel (0) target = $region5
  $region4: #{dae6_forward.1} parent=0 // pred_region
    _
  $region5: #{dae6_forward.1} parent=0 // pred_fallthru
    _
  // Predicated region
  $region6: #{dae6_forward.1} parent=0 // pred_check
    _
  $region7: #{dae6_forward.1} parent=0 // pred_check_branch
    %11 = sbr.rel (0) target = $region9
  $region8: #{dae6_forward.1} parent=0 // pred_region
    _
  $region9: #{dae6_forward.1} parent=0 // pred_fallthru
    _
  // Predicated region
  $region10: #{dae6_forward.1} parent=0 // pred_check
    _
  $region11: #{dae6_forward.1} parent=0 // pred_check_branch
    %13 = sbr.rel (0) target = $region13
  $region12: #{dae6_forward.1} parent=0 // pred_region
    _
  $region13: #{dae6_forward.1} parent=0 // pred_fallthru
    _
  %v14 = vld [vmem:[%s1] sm:$0x3]
  %v15 = vld [vmem:[%s1 + $0x8] sm:$0xff]
  %v16 = vld [vmem:[%s1 + $0x10] sm:$0xff]
  %v17 = vld [vmem:[%s1 + $0x18] sm:$0xff]
  %v18 = vld [vmem:[%s1 + $0x20] sm:$0xff]
  %v19 = vld [vmem:[%s1 + $0x28] sm:$0x1]
  %v20 = vld [vmem:[%s1 + $0x30] sm:$0xff]
  %v21 = vld [vmem:[%s1 + $0x38] sm:$0xff]
  %v22 = vld [vmem:[%s1 + $0x40] sm:$0xff]
  %v23 = vld [vmem:[%s1 + $0x48] sm:$0xff]
  %v24 = vld [vmem:[%s1 + $0x50] sm:$0xff]
  %v25 = vld [vmem:[%s1 + $0x58] sm:$0xff]
  %v26 = vld [vmem:[%s1 + $0x60] sm:$0xff]
  %v27 = vld [vmem:[%s1 + $0x68] sm:$0xff]
  %v28 = vld [vmem:[%s1 + $0x70] sm:$0x1]
  %v29 = vld [vmem:[%s1 + $0x78] sm:$0xff]
  %v30 = vld [vmem:[%s1 + $0x80] sm:$0xff]
  %v31 = vld [vmem:[%s1 + $0x88] sm:$0xff]
  %v32 = vld [vmem:[%s1 + $0x90] sm:$0xff]
  %v33 = vld [vmem:[%s1 + $0x98] sm:$0x1]
  %v34 = vld [vmem:[%s1 + $0xa0] sm:$0xff]
  %v35 = vld [vmem:[%s1 + $0xa8] sm:$0xff]
  %v36 = vld [vmem:[%s1 + $0xb0] sm:$0xff]
  %v37 = vld [vmem:[%s1 + $0xb8] sm:$0xff]
  %v38 = vld [vmem:[%s1 + $0xc0] sm:$0x1]
  %v39 = vld [vmem:[%s2] sm:$0xff]
  %v40 = vld [vmem:[%s2 + $0x8] sm:$0xff]
  %v41 = vld [vmem:[%s2 + $0x10] sm:$0xff]
  %v42 = vld [vmem:[%s2 + $0x18] sm:$0xff]
  %v43 = vld [vmem:[%s2 + $0x20] sm:$0x1]
  %v44 = vld [vmem:[%s2 + $0x21] sm:$0x1]
  %v45 = vld [vmem:[%s2 + $0x22] sm:$0x1]
  %v46 = vld [vmem:[%s2 + $0x28] sm:$0xff]
  %v47 = vld [vmem:[%s2 + $0x30] sm:$0xff]
  %v48 = vld [vmem:[%s2 + $0x38] sm:$0xff]
  %v49 = vld [vmem:[%s2 + $0x40] sm:$0xff]
  %v50 = vld [vmem:[%s2 + $0x48] sm:$0x1]
  %v51 = vld [vmem:[%s2 + $0x49] sm:$0x1]
  %v52 = vld [vmem:[%s2 + $0x4a] sm:$0x1]
  %v53 = vlaneseq
  %v54 = vshrl.u32 %v53, 7
  %v55 = vsub.s32 0, %v54
  %v56 = vrot.slane %v19, %v55
  %v57 = vlaneseq
  %v58 = vshrl.u32 %v57, 7
  %v59 = vsub.s32 0, %v58
  %v60 = vrot.slane %v28, %v59
  %v61 = vld [vmem:[%s0] sm:$0x3]
  %vm62 = vcmask 261120
  %v64 = vsel %vm62, 0.0, 0
  %66 = vmatprep.subr.mxu0 0.0
  %67 = vmatpush1.msra.mxu0 0.0
  %68 = vmatprep.subr.mxu0 0.0
  %69 = vmatpush1.msra.mxu0 0.0
  %70 = vmatprep.subr.mxu0 0.0
  %71 = vmatpush1.msra.mxu0 0.0
  %72 = vmatprep.subr.mxu0 0.0
  %73 = vmatpush1.msra.mxu0 0.0
  %74 = vmatprep.subr.mxu0 0.0
  %75 = vmatpush1.msra.mxu0 0.0
  %76 = vmatprep.subr.mxu0 0.0
  %77 = vmatpush1.msra.mxu0 0.0
  %78 = vmatprep.subr.mxu0 0.0
  %79 = vmatpush1.msra.mxu0 0.0
  %80 = vmatprep.subr.mxu0 0.0
  %81 = vmatpush1.msra.mxu0 0.0
  %82 = vmatprep.subr.mxu0 0.0
  %83 = vmatpush1.msra.mxu0 0.0
  %84 = vmatprep.subr.mxu0 0.0
  %85 = vmatpush1.msra.mxu0 0.0
  %86 = vmatprep.subr.mxu0 0.0
  %87 = vmatpush1.msra.mxu0 0.0
  %88 = vmatprep.subr.mxu0 0.0
  %89 = vmatpush1.msra.mxu0 0.0
  %90 = vmatprep.subr.mxu0 0.0
  %91 = vmatpush1.msra.mxu0 %v18
  %92 = vmatprep.subr.mxu0 0.0
  %93 = vmatpush1.msra.mxu0 %v17
  %94 = vmatprep.subr.mxu0 0.0
  %95 = vmatpush1.msra.mxu0 %v16
  %96 = vmatprep.subr.mxu0 0.0
  %97 = vmatpush1.msra.mxu0 %v15
  %98 = vmatprep.subr.mxu0 0.0
  %99 = vmatpush2.msra.mxu0 0.0
  %100 = vmatprep.subr.mxu0 0.0
  %101 = vmatpush2.msra.mxu0 0.0
  %102 = vmatprep.subr.mxu0 0.0
  %103 = vmatpush2.msra.mxu0 0.0
  %104 = vmatprep.subr.mxu0 0.0
  %105 = vmatpush2.msra.mxu0 0.0
  %106 = vmatprep.subr.mxu0 0.0
  %107 = vmatpush2.msra.mxu0 0.0
  %108 = vmatprep.subr.mxu0 0.0
  %109 = vmatpush2.msra.mxu0 0.0
  %110 = vmatprep.subr.mxu0 0.0
  %111 = vmatpush2.msra.mxu0 0.0
  %112 = vmatprep.subr.mxu0 0.0
  %113 = vmatpush2.msra.mxu0 0.0
  %114 = vmatprep.subr.mxu0 0.0
  %115 = vmatpush2.msra.mxu0 0.0
  %116 = vmatprep.subr.mxu0 0.0
  %117 = vmatpush2.msra.mxu0 0.0
  %118 = vmatprep.subr.mxu0 0.0
  %119 = vmatpush2.msra.mxu0 0.0
  %120 = vmatprep.subr.mxu0 0.0
  %121 = vmatpush2.msra.mxu0 0.0
  %122 = vmatprep.subr.mxu0 0.0
  %123 = vmatpush2.msra.mxu0 0.0
  %124 = vmatprep.subr.mxu0 0.0
  %125 = vmatpush2.msra.mxu0 0.0
  %126 = vmatprep.subr.mxu0 0.0
  %127 = vmatpush2.msra.mxu0 0.0
  %128 = vmatprep.subr.mxu0 0.0
  %129 = vmatpush2.msra.mxu0 0.0
  %130 = vmatprep.mubr.f32.mxu0 0.0
  %131 = vmatmul.mubr.f32.gmra.mxu0 %v64
  %v132 = vpop.f32.mrf.mxu0
  %v133 = vadd.f32 0.0, %v132
  %v134 = vpop.f32.mrf.mxu0
  %135 = vdwg.mxu0
  %vm136 = vcmask 15360
  %v138 = vsel %vm136, %v61, 0
  %vm140 = vcmask 1041408
  %v142 = vsel %vm140, %v14, 0
  %144 = vmatprep.subr.mxu0 0.0
  %145 = vmatpush1.msra.mxu0 0.0
  %146 = vmatprep.subr.mxu0 0.0
  %147 = vmatpush1.msra.mxu0 0.0
  %148 = vmatprep.subr.mxu0 0.0
  %149 = vmatpush1.msra.mxu0 0.0
  %150 = vmatprep.subr.mxu0 0.0
  %151 = vmatpush1.msra.mxu0 0.0
  %152 = vmatprep.subr.mxu0 0.0
  %153 = vmatpush1.msra.mxu0 0.0
  %154 = vmatprep.subr.mxu0 0.0
  %155 = vmatpush1.msra.mxu0 0.0
  %156 = vmatprep.subr.mxu0 0.0
  %157 = vmatpush1.msra.mxu0 0.0
  %158 = vmatprep.subr.mxu0 0.0
  %159 = vmatpush1.msra.mxu0 0.0
  %160 = vmatprep.subr.mxu0 0.0
  %161 = vmatpush1.msra.mxu0 0.0
  %162 = vmatprep.subr.mxu0 0.0
  %163 = vmatpush1.msra.mxu0 0.0
  %164 = vmatprep.subr.mxu0 0.0
  %165 = vmatpush1.msra.mxu0 0.0
  %166 = vmatprep.subr.mxu0 0.0
  %167 = vmatpush1.msra.mxu0 0.0
  %168 = vmatprep.subr.mxu0 0.0
  %169 = vmatpush1.msra.mxu0 0.0
  %170 = vmatprep.subr.mxu0 0.0
  %171 = vmatpush1.msra.mxu0 0.0
  %172 = vmatprep.subr.mxu0 0.0
  %173 = vmatpush1.msra.mxu0 0.0
  %174 = vmatprep.subr.mxu0 0.0
  %175 = vmatpush1.msra.mxu0 %v142
  %176 = vmatprep.subr.mxu0 0.0
  %177 = vmatpush2.msra.mxu0 0.0
  %178 = vmatprep.subr.mxu0 0.0
  %179 = vmatpush2.msra.mxu0 0.0
  %180 = vmatprep.subr.mxu0 0.0
  %181 = vmatpush2.msra.mxu0 0.0
  %182 = vmatprep.subr.mxu0 0.0
  %183 = vmatpush2.msra.mxu0 0.0
  %184 = vmatprep.subr.mxu0 0.0
  %185 = vmatpush2.msra.mxu0 0.0
  %186 = vmatprep.subr.mxu0 0.0
  %187 = vmatpush2.msra.mxu0 0.0
  %188 = vmatprep.subr.mxu0 0.0
  %189 = vmatpush2.msra.mxu0 0.0
  %190 = vmatprep.subr.mxu0 0.0
  %191 = vmatpush2.msra.mxu0 0.0
  %192 = vmatprep.subr.mxu0 0.0
  %193 = vmatpush2.msra.mxu0 0.0
  %194 = vmatprep.subr.mxu0 0.0
  %195 = vmatpush2.msra.mxu0 0.0
  %196 = vmatprep.subr.mxu0 0.0
  %197 = vmatpush2.msra.mxu0 0.0
  %198 = vmatprep.subr.mxu0 0.0
  %199 = vmatpush2.msra.mxu0 0.0
  %200 = vmatprep.subr.mxu0 0.0
  %201 = vmatpush2.msra.mxu0 0.0
  %202 = vmatprep.subr.mxu0 0.0
  %203 = vmatpush2.msra.mxu0 0.0
  %204 = vmatprep.subr.mxu0 0.0
  %205 = vmatpush2.msra.mxu0 0.0
  %206 = vmatprep.subr.mxu0 0.0
  %207 = vmatpush2.msra.mxu0 0.0
  %208 = vmatprep.mubr.f32.mxu0 0.0
  %209 = vmatmul.mubr.f32.gmra.mxu0 %v138
  %v210 = vpop.f32.mrf.mxu0
  %v211 = vadd.f32 %v133, %v210
  %v212 = vpop.f32.mrf.mxu0
  %213 = vdwg.mxu0
  %v214 = vadd.f32 %v211, %v56
  %v215 = vxor.u32 %v214, 2147483648
  %v216 = vmul.f32 %v215, 1.442695
  %v217 = vpow.pop %v216
  %v218 = vadd.f32 %v217, 1.0
  %v219 = vrcp.pop %v218
  %v220 = vmul.f32 1.0, %v219
  %v221 = vmul.f32 %v220, 2.0
  %v222 = vsub.f32 %v221, 1.0
  %v223 = vmul.f32 %v220, 0.0
  %225 = vrot.lane.b32.xlu0 %v222, 64
  %v226 = vpop.permute.xlu0 %225
  %v228 = vmul.f32 %v220, %v226
  %230 = vrot.lane.b32.xlu0 %v228, 32
  %v231 = vpop.permute.xlu0 %230
  %v233 = vadd.f32 %v223, %v231
  %v234 = vtanh.pop %v233
  %236 = vrot.lane.b32.xlu0 %v234, 64
  %v237 = vpop.permute.xlu0 %236
  %v239 = vmul.f32 %v220, %v237
  %240 = vmatprep.subr.mxu0 0.0
  %241 = vmatpush1.msra.mxu0 0.0
  %242 = vmatprep.subr.mxu0 0.0
  %243 = vmatpush1.msra.mxu0 0.0
  %244 = vmatprep.subr.mxu0 0.0
  %245 = vmatpush1.msra.mxu0 0.0
  %246 = vmatprep.subr.mxu0 0.0
  %247 = vmatpush1.msra.mxu0 0.0
  %248 = vmatprep.subr.mxu0 0.0
  %249 = vmatpush1.msra.mxu0 0.0
  %250 = vmatprep.subr.mxu0 0.0
  %251 = vmatpush1.msra.mxu0 0.0
  %252 = vmatprep.subr.mxu0 0.0
  %253 = vmatpush1.msra.mxu0 0.0
  %254 = vmatprep.subr.mxu0 0.0
  %255 = vmatpush1.msra.mxu0 0.0
  %256 = vmatprep.subr.mxu0 0.0
  %257 = vmatpush1.msra.mxu0 0.0
  %258 = vmatprep.subr.mxu0 0.0
  %259 = vmatpush1.msra.mxu0 0.0
  %260 = vmatprep.subr.mxu0 0.0
  %261 = vmatpush1.msra.mxu0 0.0
  %262 = vmatprep.subr.mxu0 0.0
  %263 = vmatpush1.msra.mxu0 0.0
  %264 = vmatprep.subr.mxu0 0.0
  %265 = vmatpush1.msra.mxu0 %v27
  %266 = vmatprep.subr.mxu0 0.0
  %267 = vmatpush1.msra.mxu0 %v26
  %268 = vmatprep.subr.mxu0 0.0
  %269 = vmatpush1.msra.mxu0 %v25
  %270 = vmatprep.subr.mxu0 0.0
  %271 = vmatpush1.msra.mxu0 %v24
  %272 = vmatprep.subr.mxu0 0.0
  %273 = vmatpush2.msra.mxu0 0.0
  %274 = vmatprep.subr.mxu0 0.0
  %275 = vmatpush2.msra.mxu0 0.0
  %276 = vmatprep.subr.mxu0 0.0
  %277 = vmatpush2.msra.mxu0 0.0
  %278 = vmatprep.subr.mxu0 0.0
  %279 = vmatpush2.msra.mxu0 0.0
  %280 = vmatprep.subr.mxu0 0.0
  %281 = vmatpush2.msra.mxu0 0.0
  %282 = vmatprep.subr.mxu0 0.0
  %283 = vmatpush2.msra.mxu0 0.0
  %284 = vmatprep.subr.mxu0 0.0
  %285 = vmatpush2.msra.mxu0 0.0
  %286 = vmatprep.subr.mxu0 0.0
  %287 = vmatpush2.msra.mxu0 0.0
  %288 = vmatprep.subr.mxu0 0.0
  %289 = vmatpush2.msra.mxu0 0.0
  %290 = vmatprep.subr.mxu0 0.0
  %291 = vmatpush2.msra.mxu0 0.0
  %292 = vmatprep.subr.mxu0 0.0
  %293 = vmatpush2.msra.mxu0 0.0
  %294 = vmatprep.subr.mxu0 0.0
  %295 = vmatpush2.msra.mxu0 0.0
  %296 = vmatprep.subr.mxu0 0.0
  %297 = vmatpush2.msra.mxu0 0.0
  %298 = vmatprep.subr.mxu0 0.0
  %299 = vmatpush2.msra.mxu0 0.0
  %300 = vmatprep.subr.mxu0 0.0
  %301 = vmatpush2.msra.mxu0 0.0
  %302 = vmatprep.subr.mxu0 0.0
  %303 = vmatpush2.msra.mxu0 0.0
  %304 = vmatprep.mubr.f32.mxu0 0.0
  %305 = vmatmul.mubr.f32.gmra.mxu0 %v64
  %v306 = vpop.f32.mrf.mxu0
  %v307 = vadd.f32 0.0, %v306
  %v308 = vpop.f32.mrf.mxu0
  %309 = vdwg.mxu0
  %311 = vrot.lane.b32.xlu0 %v239, 32
  %v312 = vpop.permute.xlu0 %311
  %v313 = vsel %vm62, %v312, 0
  %315 = vmatprep.subr.mxu0 0.0
  %316 = vmatpush1.msra.mxu0 0.0
  %317 = vmatprep.subr.mxu0 0.0
  %318 = vmatpush1.msra.mxu0 0.0
  %319 = vmatprep.subr.mxu0 0.0
  %320 = vmatpush1.msra.mxu0 0.0
  %321 = vmatprep.subr.mxu0 0.0
  %322 = vmatpush1.msra.mxu0 0.0
  %323 = vmatprep.subr.mxu0 0.0
  %324 = vmatpush1.msra.mxu0 0.0
  %325 = vmatprep.subr.mxu0 0.0
  %326 = vmatpush1.msra.mxu0 0.0
  %327 = vmatprep.subr.mxu0 0.0
  %328 = vmatpush1.msra.mxu0 0.0
  %329 = vmatprep.subr.mxu0 0.0
  %330 = vmatpush1.msra.mxu0 0.0
  %331 = vmatprep.subr.mxu0 0.0
  %332 = vmatpush1.msra.mxu0 0.0
  %333 = vmatprep.subr.mxu0 0.0
  %334 = vmatpush1.msra.mxu0 0.0
  %335 = vmatprep.subr.mxu0 0.0
  %336 = vmatpush1.msra.mxu0 0.0
  %337 = vmatprep.subr.mxu0 0.0
  %338 = vmatpush1.msra.mxu0 0.0
  %339 = vmatprep.subr.mxu0 0.0
  %340 = vmatpush1.msra.mxu0 %v23
  %341 = vmatprep.subr.mxu0 0.0
  %342 = vmatpush1.msra.mxu0 %v22
  %343 = vmatprep.subr.mxu0 0.0
  %344 = vmatpush1.msra.mxu0 %v21
  %345 = vmatprep.subr.mxu0 0.0
  %346 = vmatpush1.msra.mxu0 %v20
  %347 = vmatprep.subr.mxu0 0.0
  %348 = vmatpush2.msra.mxu0 0.0
  %349 = vmatprep.subr.mxu0 0.0
  %350 = vmatpush2.msra.mxu0 0.0
  %351 = vmatprep.subr.mxu0 0.0
  %352 = vmatpush2.msra.mxu0 0.0
  %353 = vmatprep.subr.mxu0 0.0
  %354 = vmatpush2.msra.mxu0 0.0
  %355 = vmatprep.subr.mxu0 0.0
  %356 = vmatpush2.msra.mxu0 0.0
  %357 = vmatprep.subr.mxu0 0.0
  %358 = vmatpush2.msra.mxu0 0.0
  %359 = vmatprep.subr.mxu0 0.0
  %360 = vmatpush2.msra.mxu0 0.0
  %361 = vmatprep.subr.mxu0 0.0
  %362 = vmatpush2.msra.mxu0 0.0
  %363 = vmatprep.subr.mxu0 0.0
  %364 = vmatpush2.msra.mxu0 0.0
  %365 = vmatprep.subr.mxu0 0.0
  %366 = vmatpush2.msra.mxu0 0.0
  %367 = vmatprep.subr.mxu0 0.0
  %368 = vmatpush2.msra.mxu0 0.0
  %369 = vmatprep.subr.mxu0 0.0
  %370 = vmatpush2.msra.mxu0 0.0
  %371 = vmatprep.subr.mxu0 0.0
  %372 = vmatpush2.msra.mxu0 0.0
  %373 = vmatprep.subr.mxu0 0.0
  %374 = vmatpush2.msra.mxu0 0.0
  %375 = vmatprep.subr.mxu0 0.0
  %376 = vmatpush2.msra.mxu0 0.0
  %377 = vmatprep.subr.mxu0 0.0
  %378 = vmatpush2.msra.mxu0 0.0
  %379 = vmatprep.mubr.f32.mxu0 0.0
  %380 = vmatmul.mubr.f32.gmra.mxu0 %v313
  %v381 = vpop.f32.mrf.mxu0
  %v382 = vadd.f32 %v307, %v381
  %v383 = vpop.f32.mrf.mxu0
  %384 = vdwg.mxu0
  %v385 = vadd.f32 %v382, %v60
  %v386 = vxor.u32 %v385, 2147483648
  %v387 = vmul.f32 %v386, 1.442695
  %v388 = vpow.pop %v387
  %v389 = vadd.f32 %v388, 1.0
  %v390 = vrcp.pop %v389
  %v391 = vmul.f32 1.0, %v390
  %v392 = vmul.f32 %v391, 2.0
  %v393 = vsub.f32 %v392, 1.0
  %v394 = vmul.f32 %v391, 0.0
  %396 = vrot.lane.b32.xlu0 %v393, 64
  %v397 = vpop.permute.xlu0 %396
  %v399 = vmul.f32 %v391, %v397
  %401 = vrot.lane.b32.xlu0 %v399, 32
  %v402 = vpop.permute.xlu0 %401
  %v404 = vadd.f32 %v394, %v402
  %v405 = vtanh.pop %v404
  %407 = vrot.lane.b32.xlu0 %v405, 64
  %v408 = vpop.permute.xlu0 %407
  %v410 = vmul.f32 %v391, %v408
  %s411 = scalar_lea.vmem %s0, 2
  %v412 = vld [vmem:[%s411] sm:$0x3]
  %413 = vmatprep.subr.mxu0 0.0
  %414 = vmatpush1.msra.mxu0 0.0
  %415 = vmatprep.subr.mxu0 0.0
  %416 = vmatpush1.msra.mxu0 0.0
  %417 = vmatprep.subr.mxu0 0.0
  %418 = vmatpush1.msra.mxu0 0.0
  %419 = vmatprep.subr.mxu0 0.0
  %420 = vmatpush1.msra.mxu0 0.0
  %421 = vmatprep.subr.mxu0 0.0
  %422 = vmatpush1.msra.mxu0 0.0
  %423 = vmatprep.subr.mxu0 0.0
  %424 = vmatpush1.msra.mxu0 0.0
  %425 = vmatprep.subr.mxu0 0.0
  %426 = vmatpush1.msra.mxu0 0.0
  %427 = vmatprep.subr.mxu0 0.0
  %428 = vmatpush1.msra.mxu0 0.0
  %429 = vmatprep.subr.mxu0 0.0
  %430 = vmatpush1.msra.mxu0 0.0
  %431 = vmatprep.subr.mxu0 0.0
  %432 = vmatpush1.msra.mxu0 0.0
  %433 = vmatprep.subr.mxu0 0.0
  %434 = vmatpush1.msra.mxu0 0.0
  %435 = vmatprep.subr.mxu0 0.0
  %436 = vmatpush1.msra.mxu0 0.0
  %437 = vmatprep.subr.mxu0 0.0
  %438 = vmatpush1.msra.mxu0 %v18
  %439 = vmatprep.subr.mxu0 0.0
  %440 = vmatpush1.msra.mxu0 %v17
  %441 = vmatprep.subr.mxu0 0.0
  %442 = vmatpush1.msra.mxu0 %v16
  %443 = vmatprep.subr.mxu0 0.0
  %444 = vmatpush1.msra.mxu0 %v15
  %445 = vmatprep.subr.mxu0 0.0
  %446 = vmatpush2.msra.mxu0 0.0
  %447 = vmatprep.subr.mxu0 0.0
  %448 = vmatpush2.msra.mxu0 0.0
  %449 = vmatprep.subr.mxu0 0.0
  %450 = vmatpush2.msra.mxu0 0.0
  %451 = vmatprep.subr.mxu0 0.0
  %452 = vmatpush2.msra.mxu0 0.0
  %453 = vmatprep.subr.mxu0 0.0
  %454 = vmatpush2.msra.mxu0 0.0
  %455 = vmatprep.subr.mxu0 0.0
  %456 = vmatpush2.msra.mxu0 0.0
  %457 = vmatprep.subr.mxu0 0.0
  %458 = vmatpush2.msra.mxu0 0.0
  %459 = vmatprep.subr.mxu0 0.0
  %460 = vmatpush2.msra.mxu0 0.0
  %461 = vmatprep.subr.mxu0 0.0
  %462 = vmatpush2.msra.mxu0 0.0
  %463 = vmatprep.subr.mxu0 0.0
  %464 = vmatpush2.msra.mxu0 0.0
  %465 = vmatprep.subr.mxu0 0.0
  %466 = vmatpush2.msra.mxu0 0.0
  %467 = vmatprep.subr.mxu0 0.0
  %468 = vmatpush2.msra.mxu0 0.0
  %469 = vmatprep.subr.mxu0 0.0
  %470 = vmatpush2.msra.mxu0 0.0
  %471 = vmatprep.subr.mxu0 0.0
  %472 = vmatpush2.msra.mxu0 0.0
  %473 = vmatprep.subr.mxu0 0.0
  %474 = vmatpush2.msra.mxu0 0.0
  %475 = vmatprep.subr.mxu0 0.0
  %476 = vmatpush2.msra.mxu0 0.0
  %477 = vmatprep.mubr.f32.mxu0 0.0
  %478 = vmatmul.mubr.f32.gmra.mxu0 %v313
  %v479 = vpop.f32.mrf.mxu0
  %v480 = vadd.f32 0.0, %v479
  %v481 = vpop.f32.mrf.mxu0
  %482 = vdwg.mxu0
  %v484 = vsel %vm136, %v412, 0
  %486 = vmatprep.subr.mxu0 0.0
  %487 = vmatpush1.msra.mxu0 0.0
  %488 = vmatprep.subr.mxu0 0.0
  %489 = vmatpush1.msra.mxu0 0.0
  %490 = vmatprep.subr.mxu0 0.0
  %491 = vmatpush1.msra.mxu0 0.0
  %492 = vmatprep.subr.mxu0 0.0
  %493 = vmatpush1.msra.mxu0 0.0
  %494 = vmatprep.subr.mxu0 0.0
  %495 = vmatpush1.msra.mxu0 0.0
  %496 = vmatprep.subr.mxu0 0.0
  %497 = vmatpush1.msra.mxu0 0.0
  %498 = vmatprep.subr.mxu0 0.0
  %499 = vmatpush1.msra.mxu0 0.0
  %500 = vmatprep.subr.mxu0 0.0
  %501 = vmatpush1.msra.mxu0 0.0
  %502 = vmatprep.subr.mxu0 0.0
  %503 = vmatpush1.msra.mxu0 0.0
  %504 = vmatprep.subr.mxu0 0.0
  %505 = vmatpush1.msra.mxu0 0.0
  %506 = vmatprep.subr.mxu0 0.0
  %507 = vmatpush1.msra.mxu0 0.0
  %508 = vmatprep.subr.mxu0 0.0
  %509 = vmatpush1.msra.mxu0 0.0
  %510 = vmatprep.subr.mxu0 0.0
  %511 = vmatpush1.msra.mxu0 0.0
  %512 = vmatprep.subr.mxu0 0.0
  %513 = vmatpush1.msra.mxu0 0.0
  %514 = vmatprep.subr.mxu0 0.0
  %515 = vmatpush1.msra.mxu0 0.0
  %516 = vmatprep.subr.mxu0 0.0
  %517 = vmatpush1.msra.mxu0 %v142
  %518 = vmatprep.subr.mxu0 0.0
  %519 = vmatpush2.msra.mxu0 0.0
  %520 = vmatprep.subr.mxu0 0.0
  %521 = vmatpush2.msra.mxu0 0.0
  %522 = vmatprep.subr.mxu0 0.0
  %523 = vmatpush2.msra.mxu0 0.0
  %524 = vmatprep.subr.mxu0 0.0
  %525 = vmatpush2.msra.mxu0 0.0
  %526 = vmatprep.subr.mxu0 0.0
  %527 = vmatpush2.msra.mxu0 0.0
  %528 = vmatprep.subr.mxu0 0.0
  %529 = vmatpush2.msra.mxu0 0.0
  %530 = vmatprep.subr.mxu0 0.0
  %531 = vmatpush2.msra.mxu0 0.0
  %532 = vmatprep.subr.mxu0 0.0
  %533 = vmatpush2.msra.mxu0 0.0
  %534 = vmatprep.subr.mxu0 0.0
  %535 = vmatpush2.msra.mxu0 0.0
  %536 = vmatprep.subr.mxu0 0.0
  %537 = vmatpush2.msra.mxu0 0.0
  %538 = vmatprep.subr.mxu0 0.0
  %539 = vmatpush2.msra.mxu0 0.0
  %540 = vmatprep.subr.mxu0 0.0
  %541 = vmatpush2.msra.mxu0 0.0
  %542 = vmatprep.subr.mxu0 0.0
  %543 = vmatpush2.msra.mxu0 0.0
  %544 = vmatprep.subr.mxu0 0.0
  %545 = vmatpush2.msra.mxu0 0.0
  %546 = vmatprep.subr.mxu0 0.0
  %547 = vmatpush2.msra.mxu0 0.0
  %548 = vmatprep.subr.mxu0 0.0
  %549 = vmatpush2.msra.mxu0 0.0
  %550 = vmatprep.mubr.f32.mxu0 0.0
  %551 = vmatmul.mubr.f32.gmra.mxu0 %v484
  %v552 = vpop.f32.mrf.mxu0
  %v553 = vadd.f32 %v480, %v552
  %v554 = vpop.f32.mrf.mxu0
  %555 = vdwg.mxu0
  %v556 = vadd.f32 %v553, %v56
  %v557 = vxor.u32 %v556, 2147483648
  %v558 = vmul.f32 %v557, 1.442695
  %v559 = vpow.pop %v558
  %v560 = vadd.f32 %v559, 1.0
  %v561 = vrcp.pop %v560
  %v562 = vmul.f32 1.0, %v561
  %v563 = vmul.f32 %v562, 2.0
  %v564 = vsub.f32 %v563, 1.0
  %v565 = vmul.f32 %v562, %v233
  %567 = vrot.lane.b32.xlu0 %v564, 64
  %v568 = vpop.permute.xlu0 %567
  %v570 = vmul.f32 %v562, %v568
  %572 = vrot.lane.b32.xlu0 %v570, 32
  %v573 = vpop.permute.xlu0 %572
  %v575 = vadd.f32 %v565, %v573
  %v576 = vtanh.pop %v575
  %578 = vrot.lane.b32.xlu0 %v576, 64
  %v579 = vpop.permute.xlu0 %578
  %v581 = vmul.f32 %v562, %v579
  %583 = vrot.lane.b32.xlu0 %v410, 32
  %v584 = vpop.permute.xlu0 %583
  %v585 = vsel %vm62, %v584, 0
  %587 = vmatprep.subr.mxu0 0.0
  %588 = vmatpush1.msra.mxu0 0.0
  %589 = vmatprep.subr.mxu0 0.0
  %590 = vmatpush1.msra.mxu0 0.0
  %591 = vmatprep.subr.mxu0 0.0
  %592 = vmatpush1.msra.mxu0 0.0
  %593 = vmatprep.subr.mxu0 0.0
  %594 = vmatpush1.msra.mxu0 0.0
  %595 = vmatprep.subr.mxu0 0.0
  %596 = vmatpush1.msra.mxu0 0.0
  %597 = vmatprep.subr.mxu0 0.0
  %598 = vmatpush1.msra.mxu0 0.0
  %599 = vmatprep.subr.mxu0 0.0
  %600 = vmatpush1.msra.mxu0 0.0
  %601 = vmatprep.subr.mxu0 0.0
  %602 = vmatpush1.msra.mxu0 0.0
  %603 = vmatprep.subr.mxu0 0.0
  %604 = vmatpush1.msra.mxu0 0.0
  %605 = vmatprep.subr.mxu0 0.0
  %606 = vmatpush1.msra.mxu0 0.0
  %607 = vmatprep.subr.mxu0 0.0
  %608 = vmatpush1.msra.mxu0 0.0
  %609 = vmatprep.subr.mxu0 0.0
  %610 = vmatpush1.msra.mxu0 0.0
  %611 = vmatprep.subr.mxu0 0.0
  %612 = vmatpush1.msra.mxu0 %v27
  %613 = vmatprep.subr.mxu0 0.0
  %614 = vmatpush1.msra.mxu0 %v26
  %615 = vmatprep.subr.mxu0 0.0
  %616 = vmatpush1.msra.mxu0 %v25
  %617 = vmatprep.subr.mxu0 0.0
  %618 = vmatpush1.msra.mxu0 %v24
  %619 = vmatprep.subr.mxu0 0.0
  %620 = vmatpush2.msra.mxu0 0.0
  %621 = vmatprep.subr.mxu0 0.0
  %622 = vmatpush2.msra.mxu0 0.0
  %623 = vmatprep.subr.mxu0 0.0
  %624 = vmatpush2.msra.mxu0 0.0
  %625 = vmatprep.subr.mxu0 0.0
  %626 = vmatpush2.msra.mxu0 0.0
  %627 = vmatprep.subr.mxu0 0.0
  %628 = vmatpush2.msra.mxu0 0.0
  %629 = vmatprep.subr.mxu0 0.0
  %630 = vmatpush2.msra.mxu0 0.0
  %631 = vmatprep.subr.mxu0 0.0
  %632 = vmatpush2.msra.mxu0 0.0
  %633 = vmatprep.subr.mxu0 0.0
  %634 = vmatpush2.msra.mxu0 0.0
  %635 = vmatprep.subr.mxu0 0.0
  %636 = vmatpush2.msra.mxu0 0.0
  %637 = vmatprep.subr.mxu0 0.0
  %638 = vmatpush2.msra.mxu0 0.0
  %639 = vmatprep.subr.mxu0 0.0
  %640 = vmatpush2.msra.mxu0 0.0
  %641 = vmatprep.subr.mxu0 0.0
  %642 = vmatpush2.msra.mxu0 0.0
  %643 = vmatprep.subr.mxu0 0.0
  %644 = vmatpush2.msra.mxu0 0.0
  %645 = vmatprep.subr.mxu0 0.0
  %646 = vmatpush2.msra.mxu0 0.0
  %647 = vmatprep.subr.mxu0 0.0
  %648 = vmatpush2.msra.mxu0 0.0
  %649 = vmatprep.subr.mxu0 0.0
  %650 = vmatpush2.msra.mxu0 0.0
  %651 = vmatprep.mubr.f32.mxu0 0.0
  %652 = vmatmul.mubr.f32.gmra.mxu0 %v585
  %v653 = vpop.f32.mrf.mxu0
  %v654 = vadd.f32 0.0, %v653
  %v655 = vpop.f32.mrf.mxu0
  %656 = vdwg.mxu0
  %658 = vrot.lane.b32.xlu0 %v581, 32
  %v659 = vpop.permute.xlu0 %658
  %v660 = vsel %vm62, %v659, 0
  %662 = vmatprep.subr.mxu0 0.0
  %663 = vmatpush1.msra.mxu0 0.0
  %664 = vmatprep.subr.mxu0 0.0
  %665 = vmatpush1.msra.mxu0 0.0
  %666 = vmatprep.subr.mxu0 0.0
  %667 = vmatpush1.msra.mxu0 0.0
  %668 = vmatprep.subr.mxu0 0.0
  %669 = vmatpush1.msra.mxu0 0.0
  %670 = vmatprep.subr.mxu0 0.0
  %671 = vmatpush1.msra.mxu0 0.0
  %672 = vmatprep.subr.mxu0 0.0
  %673 = vmatpush1.msra.mxu0 0.0
  %674 = vmatprep.subr.mxu0 0.0
  %675 = vmatpush1.msra.mxu0 0.0
  %676 = vmatprep.subr.mxu0 0.0
  %677 = vmatpush1.msra.mxu0 0.0
  %678 = vmatprep.subr.mxu0 0.0
  %679 = vmatpush1.msra.mxu0 0.0
  %680 = vmatprep.subr.mxu0 0.0
  %681 = vmatpush1.msra.mxu0 0.0
  %682 = vmatprep.subr.mxu0 0.0
  %683 = vmatpush1.msra.mxu0 0.0
  %684 = vmatprep.subr.mxu0 0.0
  %685 = vmatpush1.msra.mxu0 0.0
  %686 = vmatprep.subr.mxu0 0.0
  %687 = vmatpush1.msra.mxu0 %v23
  %688 = vmatprep.subr.mxu0 0.0
  %689 = vmatpush1.msra.mxu0 %v22
  %690 = vmatprep.subr.mxu0 0.0
  %691 = vmatpush1.msra.mxu0 %v21
  %692 = vmatprep.subr.mxu0 0.0
  %693 = vmatpush1.msra.mxu0 %v20
  %694 = vmatprep.subr.mxu0 0.0
  %695 = vmatpush2.msra.mxu0 0.0
  %696 = vmatprep.subr.mxu0 0.0
  %697 = vmatpush2.msra.mxu0 0.0
  %698 = vmatprep.subr.mxu0 0.0
  %699 = vmatpush2.msra.mxu0 0.0
  %700 = vmatprep.subr.mxu0 0.0
  %701 = vmatpush2.msra.mxu0 0.0
  %702 = vmatprep.subr.mxu0 0.0
  %703 = vmatpush2.msra.mxu0 0.0
  %704 = vmatprep.subr.mxu0 0.0
  %705 = vmatpush2.msra.mxu0 0.0
  %706 = vmatprep.subr.mxu0 0.0
  %707 = vmatpush2.msra.mxu0 0.0
  %708 = vmatprep.subr.mxu0 0.0
  %709 = vmatpush2.msra.mxu0 0.0
  %710 = vmatprep.subr.mxu0 0.0
  %711 = vmatpush2.msra.mxu0 0.0
  %712 = vmatprep.subr.mxu0 0.0
  %713 = vmatpush2.msra.mxu0 0.0
  %714 = vmatprep.subr.mxu0 0.0
  %715 = vmatpush2.msra.mxu0 0.0
  %716 = vmatprep.subr.mxu0 0.0
  %717 = vmatpush2.msra.mxu0 0.0
  %718 = vmatprep.subr.mxu0 0.0
  %719 = vmatpush2.msra.mxu0 0.0
  %720 = vmatprep.subr.mxu0 0.0
  %721 = vmatpush2.msra.mxu0 0.0
  %722 = vmatprep.subr.mxu0 0.0
  %723 = vmatpush2.msra.mxu0 0.0
  %724 = vmatprep.subr.mxu0 0.0
  %725 = vmatpush2.msra.mxu0 0.0
  %726 = vmatprep.mubr.f32.mxu0 0.0
  %727 = vmatmul.mubr.f32.gmra.mxu0 %v660
  %v728 = vpop.f32.mrf.mxu0
  %v729 = vadd.f32 %v654, %v728
  %v730 = vpop.f32.mrf.mxu0
  %731 = vdwg.mxu0
  %v732 = vadd.f32 %v729, %v60
  %v733 = vxor.u32 %v732, 2147483648
  %v734 = vmul.f32 %v733, 1.442695
  %v735 = vpow.pop %v734
  %v736 = vadd.f32 %v735, 1.0
  %v737 = vrcp.pop %v736
  %v738 = vmul.f32 1.0, %v737
  %v739 = vmul.f32 %v738, 2.0
  %v740 = vsub.f32 %v739, 1.0
  %v741 = vmul.f32 %v738, %v404
  %743 = vrot.lane.b32.xlu0 %v740, 64
  %v744 = vpop.permute.xlu0 %743
  %v746 = vmul.f32 %v738, %v744
  %748 = vrot.lane.b32.xlu0 %v746, 32
  %v749 = vpop.permute.xlu0 %748
  %v751 = vadd.f32 %v741, %v749
  %v752 = vtanh.pop %v751
  %754 = vrot.lane.b32.xlu0 %v752, 64
  %v755 = vpop.permute.xlu0 %754
  %v757 = vmul.f32 %v738, %v755
  %s758 = scalar_lea.vmem %s0, 4
  %v759 = vld [vmem:[%s758] sm:$0x3]
  %760 = vmatprep.subr.mxu0 0.0
  %761 = vmatpush1.msra.mxu0 0.0
  %762 = vmatprep.subr.mxu0 0.0
  %763 = vmatpush1.msra.mxu0 0.0
  %764 = vmatprep.subr.mxu0 0.0
  %765 = vmatpush1.msra.mxu0 0.0
  %766 = vmatprep.subr.mxu0 0.0
  %767 = vmatpush1.msra.mxu0 0.0
  %768 = vmatprep.subr.mxu0 0.0
  %769 = vmatpush1.msra.mxu0 0.0
  %770 = vmatprep.subr.mxu0 0.0
  %771 = vmatpush1.msra.mxu0 0.0
  %772 = vmatprep.subr.mxu0 0.0
  %773 = vmatpush1.msra.mxu0 0.0
  %774 = vmatprep.subr.mxu0 0.0
  %775 = vmatpush1.msra.mxu0 0.0
  %776 = vmatprep.subr.mxu0 0.0
  %777 = vmatpush1.msra.mxu0 0.0
  %778 = vmatprep.subr.mxu0 0.0
  %779 = vmatpush1.msra.mxu0 0.0
  %780 = vmatprep.subr.mxu0 0.0
  %781 = vmatpush1.msra.mxu0 0.0
  %782 = vmatprep.subr.mxu0 0.0
  %783 = vmatpush1.msra.mxu0 0.0
  %784 = vmatprep.subr.mxu0 0.0
  %785 = vmatpush1.msra.mxu0 %v18
  %786 = vmatprep.subr.mxu0 0.0
  %787 = vmatpush1.msra.mxu0 %v17
  %788 = vmatprep.subr.mxu0 0.0
  %789 = vmatpush1.msra.mxu0 %v16
  %790 = vmatprep.subr.mxu0 0.0
  %791 = vmatpush1.msra.mxu0 %v15
  %792 = vmatprep.subr.mxu0 0.0
  %793 = vmatpush2.msra.mxu0 0.0
  %794 = vmatprep.subr.mxu0 0.0
  %795 = vmatpush2.msra.mxu0 0.0
  %796 = vmatprep.subr.mxu0 0.0
  %797 = vmatpush2.msra.mxu0 0.0
  %798 = vmatprep.subr.mxu0 0.0
  %799 = vmatpush2.msra.mxu0 0.0
  %800 = vmatprep.subr.mxu0 0.0
  %801 = vmatpush2.msra.mxu0 0.0
  %802 = vmatprep.subr.mxu0 0.0
  %803 = vmatpush2.msra.mxu0 0.0
  %804 = vmatprep.subr.mxu0 0.0
  %805 = vmatpush2.msra.mxu0 0.0
  %806 = vmatprep.subr.mxu0 0.0
  %807 = vmatpush2.msra.mxu0 0.0
  %808 = vmatprep.subr.mxu0 0.0
  %809 = vmatpush2.msra.mxu0 0.0
  %810 = vmatprep.subr.mxu0 0.0
  %811 = vmatpush2.msra.mxu0 0.0
  %812 = vmatprep.subr.mxu0 0.0
  %813 = vmatpush2.msra.mxu0 0.0
  %814 = vmatprep.subr.mxu0 0.0
  %815 = vmatpush2.msra.mxu0 0.0
  %816 = vmatprep.subr.mxu0 0.0
  %817 = vmatpush2.msra.mxu0 0.0
  %818 = vmatprep.subr.mxu0 0.0
  %819 = vmatpush2.msra.mxu0 0.0
  %820 = vmatprep.subr.mxu0 0.0
  %821 = vmatpush2.msra.mxu0 0.0
  %822 = vmatprep.subr.mxu0 0.0
  %823 = vmatpush2.msra.mxu0 0.0
  %824 = vmatprep.mubr.f32.mxu0 0.0
  %825 = vmatmul.mubr.f32.gmra.mxu0 %v660
  %v826 = vpop.f32.mrf.mxu0
  %v827 = vadd.f32 0.0, %v826
  %v828 = vpop.f32.mrf.mxu0
  %829 = vdwg.mxu0
  %v831 = vsel %vm136, %v759, 0
  %833 = vmatprep.subr.mxu0 0.0
  %834 = vmatpush1.msra.mxu0 0.0
  %835 = vmatprep.subr.mxu0 0.0
  %836 = vmatpush1.msra.mxu0 0.0
  %837 = vmatprep.subr.mxu0 0.0
  %838 = vmatpush1.msra.mxu0 0.0
  %839 = vmatprep.subr.mxu0 0.0
  %840 = vmatpush1.msra.mxu0 0.0
  %841 = vmatprep.subr.mxu0 0.0
  %842 = vmatpush1.msra.mxu0 0.0
  %843 = vmatprep.subr.mxu0 0.0
  %844 = vmatpush1.msra.mxu0 0.0
  %845 = vmatprep.subr.mxu0 0.0
  %846 = vmatpush1.msra.mxu0 0.0
  %847 = vmatprep.subr.mxu0 0.0
  %848 = vmatpush1.msra.mxu0 0.0
  %849 = vmatprep.subr.mxu0 0.0
  %850 = vmatpush1.msra.mxu0 0.0
  %851 = vmatprep.subr.mxu0 0.0
  %852 = vmatpush1.msra.mxu0 0.0
  %853 = vmatprep.subr.mxu0 0.0
  %854 = vmatpush1.msra.mxu0 0.0
  %855 = vmatprep.subr.mxu0 0.0
  %856 = vmatpush1.msra.mxu0 0.0
  %857 = vmatprep.subr.mxu0 0.0
  %858 = vmatpush1.msra.mxu0 0.0
  %859 = vmatprep.subr.mxu0 0.0
  %860 = vmatpush1.msra.mxu0 0.0
  %861 = vmatprep.subr.mxu0 0.0
  %862 = vmatpush1.msra.mxu0 0.0
  %863 = vmatprep.subr.mxu0 0.0
  %864 = vmatpush1.msra.mxu0 %v142
  %865 = vmatprep.subr.mxu0 0.0
  %866 = vmatpush2.msra.mxu0 0.0
  %867 = vmatprep.subr.mxu0 0.0
  %868 = vmatpush2.msra.mxu0 0.0
  %869 = vmatprep.subr.mxu0 0.0
  %870 = vmatpush2.msra.mxu0 0.0
  %871 = vmatprep.subr.mxu0 0.0
  %872 = vmatpush2.msra.mxu0 0.0
  %873 = vmatprep.subr.mxu0 0.0
  %874 = vmatpush2.msra.mxu0 0.0
  %875 = vmatprep.subr.mxu0 0.0
  %876 = vmatpush2.msra.mxu0 0.0
  %877 = vmatprep.subr.mxu0 0.0
  %878 = vmatpush2.msra.mxu0 0.0
  %879 = vmatprep.subr.mxu0 0.0
  %880 = vmatpush2.msra.mxu0 0.0
  %881 = vmatprep.subr.mxu0 0.0
  %882 = vmatpush2.msra.mxu0 0.0
  %883 = vmatprep.subr.mxu0 0.0
  %884 = vmatpush2.msra.mxu0 0.0
  %885 = vmatprep.subr.mxu0 0.0
  %886 = vmatpush2.msra.mxu0 0.0
  %887 = vmatprep.subr.mxu0 0.0
  %888 = vmatpush2.msra.mxu0 0.0
  %889 = vmatprep.subr.mxu0 0.0
  %890 = vmatpush2.msra.mxu0 0.0
  %891 = vmatprep.subr.mxu0 0.0
  %892 = vmatpush2.msra.mxu0 0.0
  %893 = vmatprep.subr.mxu0 0.0
  %894 = vmatpush2.msra.mxu0 0.0
  %895 = vmatprep.subr.mxu0 0.0
  %896 = vmatpush2.msra.mxu0 0.0
  %897 = vmatprep.mubr.f32.mxu0 0.0
  %898 = vmatmul.mubr.f32.gmra.mxu0 %v831
  %v899 = vpop.f32.mrf.mxu0
  %v900 = vadd.f32 %v827, %v899
  %v901 = vpop.f32.mrf.mxu0
  %902 = vdwg.mxu0
  %v903 = vadd.f32 %v900, %v56
  %v904 = vxor.u32 %v903, 2147483648
  %v905 = vmul.f32 %v904, 1.442695
  %v906 = vpow.pop %v905
  %v907 = vadd.f32 %v906, 1.0
  %v908 = vrcp.pop %v907
  %v909 = vmul.f32 1.0, %v908
  %v910 = vmul.f32 %v909, 2.0
  %v911 = vsub.f32 %v910, 1.0
  %v912 = vmul.f32 %v909, %v575
  %914 = vrot.lane.b32.xlu0 %v911, 64
  %v915 = vpop.permute.xlu0 %914
  %v917 = vmul.f32 %v909, %v915
  %919 = vrot.lane.b32.xlu0 %v917, 32
  %v920 = vpop.permute.xlu0 %919
  %v922 = vadd.f32 %v912, %v920
  %v923 = vtanh.pop %v922
  %925 = vrot.lane.b32.xlu0 %v923, 64
  %v926 = vpop.permute.xlu0 %925
  %v928 = vmul.f32 %v909, %v926
  %930 = vrot.lane.b32.xlu0 %v757, 32
  %v931 = vpop.permute.xlu0 %930
  %v932 = vsel %vm62, %v931, 0
  %934 = vmatprep.subr.mxu0 0.0
  %935 = vmatpush1.msra.mxu0 0.0
  %936 = vmatprep.subr.mxu0 0.0
  %937 = vmatpush1.msra.mxu0 0.0
  %938 = vmatprep.subr.mxu0 0.0
  %939 = vmatpush1.msra.mxu0 0.0
  %940 = vmatprep.subr.mxu0 0.0
  %941 = vmatpush1.msra.mxu0 0.0
  %942 = vmatprep.subr.mxu0 0.0
  %943 = vmatpush1.msra.mxu0 0.0
  %944 = vmatprep.subr.mxu0 0.0
  %945 = vmatpush1.msra.mxu0 0.0
  %946 = vmatprep.subr.mxu0 0.0
  %947 = vmatpush1.msra.mxu0 0.0
  %948 = vmatprep.subr.mxu0 0.0
  %949 = vmatpush1.msra.mxu0 0.0
  %950 = vmatprep.subr.mxu0 0.0
  %951 = vmatpush1.msra.mxu0 0.0
  %952 = vmatprep.subr.mxu0 0.0
  %953 = vmatpush1.msra.mxu0 0.0
  %954 = vmatprep.subr.mxu0 0.0
  %955 = vmatpush1.msra.mxu0 0.0
  %956 = vmatprep.subr.mxu0 0.0
  %957 = vmatpush1.msra.mxu0 0.0
  %958 = vmatprep.subr.mxu0 0.0
  %959 = vmatpush1.msra.mxu0 %v27
  %960 = vmatprep.subr.mxu0 0.0
  %961 = vmatpush1.msra.mxu0 %v26
  %962 = vmatprep.subr.mxu0 0.0
  %963 = vmatpush1.msra.mxu0 %v25
  %964 = vmatprep.subr.mxu0 0.0
  %965 = vmatpush1.msra.mxu0 %v24
  %966 = vmatprep.subr.mxu0 0.0
  %967 = vmatpush2.msra.mxu0 0.0
  %968 = vmatprep.subr.mxu0 0.0
  %969 = vmatpush2.msra.mxu0 0.0
  %970 = vmatprep.subr.mxu0 0.0
  %971 = vmatpush2.msra.mxu0 0.0
  %972 = vmatprep.subr.mxu0 0.0
  %973 = vmatpush2.msra.mxu0 0.0
  %974 = vmatprep.subr.mxu0 0.0
  %975 = vmatpush2.msra.mxu0 0.0
  %976 = vmatprep.subr.mxu0 0.0
  %977 = vmatpush2.msra.mxu0 0.0
  %978 = vmatprep.subr.mxu0 0.0
  %979 = vmatpush2.msra.mxu0 0.0
  %980 = vmatprep.subr.mxu0 0.0
  %981 = vmatpush2.msra.mxu0 0.0
  %982 = vmatprep.subr.mxu0 0.0
  %983 = vmatpush2.msra.mxu0 0.0
  %984 = vmatprep.subr.mxu0 0.0
  %985 = vmatpush2.msra.mxu0 0.0
  %986 = vmatprep.subr.mxu0 0.0
  %987 = vmatpush2.msra.mxu0 0.0
  %988 = vmatprep.subr.mxu0 0.0
  %989 = vmatpush2.msra.mxu0 0.0
  %990 = vmatprep.subr.mxu0 0.0
  %991 = vmatpush2.msra.mxu0 0.0
  %992 = vmatprep.subr.mxu0 0.0
  %993 = vmatpush2.msra.mxu0 0.0
  %994 = vmatprep.subr.mxu0 0.0
  %995 = vmatpush2.msra.mxu0 0.0
  %996 = vmatprep.subr.mxu0 0.0
  %997 = vmatpush2.msra.mxu0 0.0
  %998 = vmatprep.mubr.f32.mxu0 0.0
  %999 = vmatmul.mubr.f32.gmra.mxu0 %v932
  %v1000 = vpop.f32.mrf.mxu0
  %v1001 = vadd.f32 0.0, %v1000
  %v1002 = vpop.f32.mrf.mxu0
  %1003 = vdwg.mxu0
  %1005 = vrot.lane.b32.xlu0 %v928, 32
  %v1006 = vpop.permute.xlu0 %1005
  %v1007 = vsel %vm62, %v1006, 0
  %1009 = vmatprep.subr.mxu0 0.0
  %1010 = vmatpush1.msra.mxu0 0.0
  %1011 = vmatprep.subr.mxu0 0.0
  %1012 = vmatpush1.msra.mxu0 0.0
  %1013 = vmatprep.subr.mxu0 0.0
  %1014 = vmatpush1.msra.mxu0 0.0
  %1015 = vmatprep.subr.mxu0 0.0
  %1016 = vmatpush1.msra.mxu0 0.0
  %1017 = vmatprep.subr.mxu0 0.0
  %1018 = vmatpush1.msra.mxu0 0.0
  %1019 = vmatprep.subr.mxu0 0.0
  %1020 = vmatpush1.msra.mxu0 0.0
  %1021 = vmatprep.subr.mxu0 0.0
  %1022 = vmatpush1.msra.mxu0 0.0
  %1023 = vmatprep.subr.mxu0 0.0
  %1024 = vmatpush1.msra.mxu0 0.0
  %1025 = vmatprep.subr.mxu0 0.0
  %1026 = vmatpush1.msra.mxu0 0.0
  %1027 = vmatprep.subr.mxu0 0.0
  %1028 = vmatpush1.msra.mxu0 0.0
  %1029 = vmatprep.subr.mxu0 0.0
  %1030 = vmatpush1.msra.mxu0 0.0
  %1031 = vmatprep.subr.mxu0 0.0
  %1032 = vmatpush1.msra.mxu0 0.0
  %1033 = vmatprep.subr.mxu0 0.0
  %1034 = vmatpush1.msra.mxu0 %v23
  %1035 = vmatprep.subr.mxu0 0.0
  %1036 = vmatpush1.msra.mxu0 %v22
  %1037 = vmatprep.subr.mxu0 0.0
  %1038 = vmatpush1.msra.mxu0 %v21
  %1039 = vmatprep.subr.mxu0 0.0
  %1040 = vmatpush1.msra.mxu0 %v20
  %1041 = vmatprep.subr.mxu0 0.0
  %1042 = vmatpush2.msra.mxu0 0.0
  %1043 = vmatprep.subr.mxu0 0.0
  %1044 = vmatpush2.msra.mxu0 0.0
  %1045 = vmatprep.subr.mxu0 0.0
  %1046 = vmatpush2.msra.mxu0 0.0
  %1047 = vmatprep.subr.mxu0 0.0
  %1048 = vmatpush2.msra.mxu0 0.0
  %1049 = vmatprep.subr.mxu0 0.0
  %1050 = vmatpush2.msra.mxu0 0.0
  %1051 = vmatprep.subr.mxu0 0.0
  %1052 = vmatpush2.msra.mxu0 0.0
  %1053 = vmatprep.subr.mxu0 0.0
  %1054 = vmatpush2.msra.mxu0 0.0
  %1055 = vmatprep.subr.mxu0 0.0
  %1056 = vmatpush2.msra.mxu0 0.0
  %1057 = vmatprep.subr.mxu0 0.0
  %1058 = vmatpush2.msra.mxu0 0.0
  %1059 = vmatprep.subr.mxu0 0.0
  %1060 = vmatpush2.msra.mxu0 0.0
  %1061 = vmatprep.subr.mxu0 0.0
  %1062 = vmatpush2.msra.mxu0 0.0
  %1063 = vmatprep.subr.mxu0 0.0
  %1064 = vmatpush2.msra.mxu0 0.0
  %1065 = vmatprep.subr.mxu0 0.0
  %1066 = vmatpush2.msra.mxu0 0.0
  %1067 = vmatprep.subr.mxu0 0.0
  %1068 = vmatpush2.msra.mxu0 0.0
  %1069 = vmatprep.subr.mxu0 0.0
  %1070 = vmatpush2.msra.mxu0 0.0
  %1071 = vmatprep.subr.mxu0 0.0
  %1072 = vmatpush2.msra.mxu0 0.0
  %1073 = vmatprep.mubr.f32.mxu0 0.0
  %1074 = vmatmul.mubr.f32.gmra.mxu0 %v1007
  %v1075 = vpop.f32.mrf.mxu0
  %v1076 = vadd.f32 %v1001, %v1075
  %v1077 = vpop.f32.mrf.mxu0
  %1078 = vdwg.mxu0
  %v1079 = vadd.f32 %v1076, %v60
  %v1080 = vxor.u32 %v1079, 2147483648
  %v1081 = vmul.f32 %v1080, 1.442695
  %v1082 = vpow.pop %v1081
  %v1083 = vadd.f32 %v1082, 1.0
  %v1084 = vrcp.pop %v1083
  %v1085 = vmul.f32 1.0, %v1084
  %v1086 = vmul.f32 %v1085, 2.0
  %v1087 = vsub.f32 %v1086, 1.0
  %v1088 = vmul.f32 %v1085, %v751
  %1090 = vrot.lane.b32.xlu0 %v1087, 64
  %v1091 = vpop.permute.xlu0 %1090
  %v1093 = vmul.f32 %v1085, %v1091
  %1095 = vrot.lane.b32.xlu0 %v1093, 32
  %v1096 = vpop.permute.xlu0 %1095
  %v1098 = vadd.f32 %v1088, %v1096
  %v1099 = vtanh.pop %v1098
  %1101 = vrot.lane.b32.xlu0 %v1099, 64
  %v1102 = vpop.permute.xlu0 %1101
  %v1104 = vmul.f32 %v1085, %v1102
  %s1105 = scalar_lea.vmem %s0, 6
  %v1106 = vld [vmem:[%s1105] sm:$0x3]
  %1107 = vmatprep.subr.mxu0 0.0
  %1108 = vmatpush1.msra.mxu0 0.0
  %1109 = vmatprep.subr.mxu0 0.0
  %1110 = vmatpush1.msra.mxu0 0.0
  %1111 = vmatprep.subr.mxu0 0.0
  %1112 = vmatpush1.msra.mxu0 0.0
  %1113 = vmatprep.subr.mxu0 0.0
  %1114 = vmatpush1.msra.mxu0 0.0
  %1115 = vmatprep.subr.mxu0 0.0
  %1116 = vmatpush1.msra.mxu0 0.0
  %1117 = vmatprep.subr.mxu0 0.0
  %1118 = vmatpush1.msra.mxu0 0.0
  %1119 = vmatprep.subr.mxu0 0.0
  %1120 = vmatpush1.msra.mxu0 0.0
  %1121 = vmatprep.subr.mxu0 0.0
  %1122 = vmatpush1.msra.mxu0 0.0
  %1123 = vmatprep.subr.mxu0 0.0
  %1124 = vmatpush1.msra.mxu0 0.0
  %1125 = vmatprep.subr.mxu0 0.0
  %1126 = vmatpush1.msra.mxu0 0.0
  %1127 = vmatprep.subr.mxu0 0.0
  %1128 = vmatpush1.msra.mxu0 0.0
  %1129 = vmatprep.subr.mxu0 0.0
  %1130 = vmatpush1.msra.mxu0 0.0
  %1131 = vmatprep.subr.mxu0 0.0
  %1132 = vmatpush1.msra.mxu0 %v18
  %1133 = vmatprep.subr.mxu0 0.0
  %1134 = vmatpush1.msra.mxu0 %v17
  %1135 = vmatprep.subr.mxu0 0.0
  %1136 = vmatpush1.msra.mxu0 %v16
  %1137 = vmatprep.subr.mxu0 0.0
  %1138 = vmatpush1.msra.mxu0 %v15
  %1139 = vmatprep.subr.mxu0 0.0
  %1140 = vmatpush2.msra.mxu0 0.0
  %1141 = vmatprep.subr.mxu0 0.0
  %1142 = vmatpush2.msra.mxu0 0.0
  %1143 = vmatprep.subr.mxu0 0.0
  %1144 = vmatpush2.msra.mxu0 0.0
  %1145 = vmatprep.subr.mxu0 0.0
  %1146 = vmatpush2.msra.mxu0 0.0
  %1147 = vmatprep.subr.mxu0 0.0
  %1148 = vmatpush2.msra.mxu0 0.0
  %1149 = vmatprep.subr.mxu0 0.0
  %1150 = vmatpush2.msra.mxu0 0.0
  %1151 = vmatprep.subr.mxu0 0.0
  %1152 = vmatpush2.msra.mxu0 0.0
  %1153 = vmatprep.subr.mxu0 0.0
  %1154 = vmatpush2.msra.mxu0 0.0
  %1155 = vmatprep.subr.mxu0 0.0
  %1156 = vmatpush2.msra.mxu0 0.0
  %1157 = vmatprep.subr.mxu0 0.0
  %1158 = vmatpush2.msra.mxu0 0.0
  %1159 = vmatprep.subr.mxu0 0.0
  %1160 = vmatpush2.msra.mxu0 0.0
  %1161 = vmatprep.subr.mxu0 0.0
  %1162 = vmatpush2.msra.mxu0 0.0
  %1163 = vmatprep.subr.mxu0 0.0
  %1164 = vmatpush2.msra.mxu0 0.0
  %1165 = vmatprep.subr.mxu0 0.0
  %1166 = vmatpush2.msra.mxu0 0.0
  %1167 = vmatprep.subr.mxu0 0.0
  %1168 = vmatpush2.msra.mxu0 0.0
  %1169 = vmatprep.subr.mxu0 0.0
  %1170 = vmatpush2.msra.mxu0 0.0
  %1171 = vmatprep.mubr.f32.mxu0 0.0
  %1172 = vmatmul.mubr.f32.gmra.mxu0 %v1007
  %v1173 = vpop.f32.mrf.mxu0
  %v1174 = vadd.f32 0.0, %v1173
  %v1175 = vpop.f32.mrf.mxu0
  %1176 = vdwg.mxu0
  %v1178 = vsel %vm136, %v1106, 0
  %1180 = vmatprep.subr.mxu0 0.0
  %1181 = vmatpush1.msra.mxu0 0.0
  %1182 = vmatprep.subr.mxu0 0.0
  %1183 = vmatpush1.msra.mxu0 0.0
  %1184 = vmatprep.subr.mxu0 0.0
  %1185 = vmatpush1.msra.mxu0 0.0
  %1186 = vmatprep.subr.mxu0 0.0
  %1187 = vmatpush1.msra.mxu0 0.0
  %1188 = vmatprep.subr.mxu0 0.0
  %1189 = vmatpush1.msra.mxu0 0.0
  %1190 = vmatprep.subr.mxu0 0.0
  %1191 = vmatpush1.msra.mxu0 0.0
  %1192 = vmatprep.subr.mxu0 0.0
  %1193 = vmatpush1.msra.mxu0 0.0
  %1194 = vmatprep.subr.mxu0 0.0
  %1195 = vmatpush1.msra.mxu0 0.0
  %1196 = vmatprep.subr.mxu0 0.0
  %1197 = vmatpush1.msra.mxu0 0.0
  %1198 = vmatprep.subr.mxu0 0.0
  %1199 = vmatpush1.msra.mxu0 0.0
  %1200 = vmatprep.subr.mxu0 0.0
  %1201 = vmatpush1.msra.mxu0 0.0
  %1202 = vmatprep.subr.mxu0 0.0
  %1203 = vmatpush1.msra.mxu0 0.0
  %1204 = vmatprep.subr.mxu0 0.0
  %1205 = vmatpush1.msra.mxu0 0.0
  %1206 = vmatprep.subr.mxu0 0.0
  %1207 = vmatpush1.msra.mxu0 0.0
  %1208 = vmatprep.subr.mxu0 0.0
  %1209 = vmatpush1.msra.mxu0 0.0
  %1210 = vmatprep.subr.mxu0 0.0
  %1211 = vmatpush1.msra.mxu0 %v142
  %1212 = vmatprep.subr.mxu0 0.0
  %1213 = vmatpush2.msra.mxu0 0.0
  %1214 = vmatprep.subr.mxu0 0.0
  %1215 = vmatpush2.msra.mxu0 0.0
  %1216 = vmatprep.subr.mxu0 0.0
  %1217 = vmatpush2.msra.mxu0 0.0
  %1218 = vmatprep.subr.mxu0 0.0
  %1219 = vmatpush2.msra.mxu0 0.0
  %1220 = vmatprep.subr.mxu0 0.0
  %1221 = vmatpush2.msra.mxu0 0.0
  %1222 = vmatprep.subr.mxu0 0.0
  %1223 = vmatpush2.msra.mxu0 0.0
  %1224 = vmatprep.subr.mxu0 0.0
  %1225 = vmatpush2.msra.mxu0 0.0
  %1226 = vmatprep.subr.mxu0 0.0
  %1227 = vmatpush2.msra.mxu0 0.0
  %1228 = vmatprep.subr.mxu0 0.0
  %1229 = vmatpush2.msra.mxu0 0.0
  %1230 = vmatprep.subr.mxu0 0.0
  %1231 = vmatpush2.msra.mxu0 0.0
  %1232 = vmatprep.subr.mxu0 0.0
  %1233 = vmatpush2.msra.mxu0 0.0
  %1234 = vmatprep.subr.mxu0 0.0
  %1235 = vmatpush2.msra.mxu0 0.0
  %1236 = vmatprep.subr.mxu0 0.0
  %1237 = vmatpush2.msra.mxu0 0.0
  %1238 = vmatprep.subr.mxu0 0.0
  %1239 = vmatpush2.msra.mxu0 0.0
  %1240 = vmatprep.subr.mxu0 0.0
  %1241 = vmatpush2.msra.mxu0 0.0
  %1242 = vmatprep.subr.mxu0 0.0
  %1243 = vmatpush2.msra.mxu0 0.0
  %1244 = vmatprep.mubr.f32.mxu0 0.0
  %1245 = vmatmul.mubr.f32.gmra.mxu0 %v1178
  %v1246 = vpop.f32.mrf.mxu0
  %v1247 = vadd.f32 %v1174, %v1246
  %v1248 = vpop.f32.mrf.mxu0
  %1249 = vdwg.mxu0
  %v1250 = vadd.f32 %v1247, %v56
  %v1251 = vxor.u32 %v1250, 2147483648
  %v1252 = vmul.f32 %v1251, 1.442695
  %v1253 = vpow.pop %v1252
  %v1254 = vadd.f32 %v1253, 1.0
  %v1255 = vrcp.pop %v1254
  %v1256 = vmul.f32 1.0, %v1255
  %v1257 = vmul.f32 %v1256, 2.0
  %v1258 = vsub.f32 %v1257, 1.0
  %v1259 = vmul.f32 %v1256, %v922
  %1261 = vrot.lane.b32.xlu0 %v1258, 64
  %v1262 = vpop.permute.xlu0 %1261
  %v1264 = vmul.f32 %v1256, %v1262
  %1266 = vrot.lane.b32.xlu0 %v1264, 32
  %v1267 = vpop.permute.xlu0 %1266
  %v1269 = vadd.f32 %v1259, %v1267
  %v1270 = vtanh.pop %v1269
  %1272 = vrot.lane.b32.xlu0 %v1270, 64
  %v1273 = vpop.permute.xlu0 %1272
  %v1275 = vmul.f32 %v1256, %v1273
  %1277 = vrot.lane.b32.xlu0 %v1104, 32
  %v1278 = vpop.permute.xlu0 %1277
  %v1279 = vsel %vm62, %v1278, 0
  %1281 = vmatprep.subr.mxu0 0.0
  %1282 = vmatpush1.msra.mxu0 0.0
  %1283 = vmatprep.subr.mxu0 0.0
  %1284 = vmatpush1.msra.mxu0 0.0
  %1285 = vmatprep.subr.mxu0 0.0
  %1286 = vmatpush1.msra.mxu0 0.0
  %1287 = vmatprep.subr.mxu0 0.0
  %1288 = vmatpush1.msra.mxu0 0.0
  %1289 = vmatprep.subr.mxu0 0.0
  %1290 = vmatpush1.msra.mxu0 0.0
  %1291 = vmatprep.subr.mxu0 0.0
  %1292 = vmatpush1.msra.mxu0 0.0
  %1293 = vmatprep.subr.mxu0 0.0
  %1294 = vmatpush1.msra.mxu0 0.0
  %1295 = vmatprep.subr.mxu0 0.0
  %1296 = vmatpush1.msra.mxu0 0.0
  %1297 = vmatprep.subr.mxu0 0.0
  %1298 = vmatpush1.msra.mxu0 0.0
  %1299 = vmatprep.subr.mxu0 0.0
  %1300 = vmatpush1.msra.mxu0 0.0
  %1301 = vmatprep.subr.mxu0 0.0
  %1302 = vmatpush1.msra.mxu0 0.0
  %1303 = vmatprep.subr.mxu0 0.0
  %1304 = vmatpush1.msra.mxu0 0.0
  %1305 = vmatprep.subr.mxu0 0.0
  %1306 = vmatpush1.msra.mxu0 %v27
  %1307 = vmatprep.subr.mxu0 0.0
  %1308 = vmatpush1.msra.mxu0 %v26
  %1309 = vmatprep.subr.mxu0 0.0
  %1310 = vmatpush1.msra.mxu0 %v25
  %1311 = vmatprep.subr.mxu0 0.0
  %1312 = vmatpush1.msra.mxu0 %v24
  %1313 = vmatprep.subr.mxu0 0.0
  %1314 = vmatpush2.msra.mxu0 0.0
  %1315 = vmatprep.subr.mxu0 0.0
  %1316 = vmatpush2.msra.mxu0 0.0
  %1317 = vmatprep.subr.mxu0 0.0
  %1318 = vmatpush2.msra.mxu0 0.0
  %1319 = vmatprep.subr.mxu0 0.0
  %1320 = vmatpush2.msra.mxu0 0.0
  %1321 = vmatprep.subr.mxu0 0.0
  %1322 = vmatpush2.msra.mxu0 0.0
  %1323 = vmatprep.subr.mxu0 0.0
  %1324 = vmatpush2.msra.mxu0 0.0
  %1325 = vmatprep.subr.mxu0 0.0
  %1326 = vmatpush2.msra.mxu0 0.0
  %1327 = vmatprep.subr.mxu0 0.0
  %1328 = vmatpush2.msra.mxu0 0.0
  %1329 = vmatprep.subr.mxu0 0.0
  %1330 = vmatpush2.msra.mxu0 0.0
  %1331 = vmatprep.subr.mxu0 0.0
  %1332 = vmatpush2.msra.mxu0 0.0
  %1333 = vmatprep.subr.mxu0 0.0
  %1334 = vmatpush2.msra.mxu0 0.0
  %1335 = vmatprep.subr.mxu0 0.0
  %1336 = vmatpush2.msra.mxu0 0.0
  %1337 = vmatprep.subr.mxu0 0.0
  %1338 = vmatpush2.msra.mxu0 0.0
  %1339 = vmatprep.subr.mxu0 0.0
  %1340 = vmatpush2.msra.mxu0 0.0
  %1341 = vmatprep.subr.mxu0 0.0
  %1342 = vmatpush2.msra.mxu0 0.0
  %1343 = vmatprep.subr.mxu0 0.0
  %1344 = vmatpush2.msra.mxu0 0.0
  %1345 = vmatprep.mubr.f32.mxu0 0.0
  %1346 = vmatmul.mubr.f32.gmra.mxu0 %v1279
  %v1347 = vpop.f32.mrf.mxu0
  %v1348 = vadd.f32 0.0, %v1347
  %v1349 = vpop.f32.mrf.mxu0
  %1350 = vdwg.mxu0
  %1352 = vrot.lane.b32.xlu0 %v1275, 32
  %v1353 = vpop.permute.xlu0 %1352
  %v1354 = vsel %vm62, %v1353, 0
  %1356 = vmatprep.subr.mxu0 0.0
  %1357 = vmatpush1.msra.mxu0 0.0
  %1358 = vmatprep.subr.mxu0 0.0
  %1359 = vmatpush1.msra.mxu0 0.0
  %1360 = vmatprep.subr.mxu0 0.0
  %1361 = vmatpush1.msra.mxu0 0.0
  %1362 = vmatprep.subr.mxu0 0.0
  %1363 = vmatpush1.msra.mxu0 0.0
  %1364 = vmatprep.subr.mxu0 0.0
  %1365 = vmatpush1.msra.mxu0 0.0
  %1366 = vmatprep.subr.mxu0 0.0
  %1367 = vmatpush1.msra.mxu0 0.0
  %1368 = vmatprep.subr.mxu0 0.0
  %1369 = vmatpush1.msra.mxu0 0.0
  %1370 = vmatprep.subr.mxu0 0.0
  %1371 = vmatpush1.msra.mxu0 0.0
  %1372 = vmatprep.subr.mxu0 0.0
  %1373 = vmatpush1.msra.mxu0 0.0
  %1374 = vmatprep.subr.mxu0 0.0
  %1375 = vmatpush1.msra.mxu0 0.0
  %1376 = vmatprep.subr.mxu0 0.0
  %1377 = vmatpush1.msra.mxu0 0.0
  %1378 = vmatprep.subr.mxu0 0.0
  %1379 = vmatpush1.msra.mxu0 0.0
  %1380 = vmatprep.subr.mxu0 0.0
  %1381 = vmatpush1.msra.mxu0 %v23
  %1382 = vmatprep.subr.mxu0 0.0
  %1383 = vmatpush1.msra.mxu0 %v22
  %1384 = vmatprep.subr.mxu0 0.0
  %1385 = vmatpush1.msra.mxu0 %v21
  %1386 = vmatprep.subr.mxu0 0.0
  %1387 = vmatpush1.msra.mxu0 %v20
  %1388 = vmatprep.subr.mxu0 0.0
  %1389 = vmatpush2.msra.mxu0 0.0
  %1390 = vmatprep.subr.mxu0 0.0
  %1391 = vmatpush2.msra.mxu0 0.0
  %1392 = vmatprep.subr.mxu0 0.0
  %1393 = vmatpush2.msra.mxu0 0.0
  %1394 = vmatprep.subr.mxu0 0.0
  %1395 = vmatpush2.msra.mxu0 0.0
  %1396 = vmatprep.subr.mxu0 0.0
  %1397 = vmatpush2.msra.mxu0 0.0
  %1398 = vmatprep.subr.mxu0 0.0
  %1399 = vmatpush2.msra.mxu0 0.0
  %1400 = vmatprep.subr.mxu0 0.0
  %1401 = vmatpush2.msra.mxu0 0.0
  %1402 = vmatprep.subr.mxu0 0.0
  %1403 = vmatpush2.msra.mxu0 0.0
  %1404 = vmatprep.subr.mxu0 0.0
  %1405 = vmatpush2.msra.mxu0 0.0
  %1406 = vmatprep.subr.mxu0 0.0
  %1407 = vmatpush2.msra.mxu0 0.0
  %1408 = vmatprep.subr.mxu0 0.0
  %1409 = vmatpush2.msra.mxu0 0.0
  %1410 = vmatprep.subr.mxu0 0.0
  %1411 = vmatpush2.msra.mxu0 0.0
  %1412 = vmatprep.subr.mxu0 0.0
  %1413 = vmatpush2.msra.mxu0 0.0
  %1414 = vmatprep.subr.mxu0 0.0
  %1415 = vmatpush2.msra.mxu0 0.0
  %1416 = vmatprep.subr.mxu0 0.0
  %1417 = vmatpush2.msra.mxu0 0.0
  %1418 = vmatprep.subr.mxu0 0.0
  %1419 = vmatpush2.msra.mxu0 0.0
  %1420 = vmatprep.mubr.f32.mxu0 0.0
  %1421 = vmatmul.mubr.f32.gmra.mxu0 %v1354
  %v1422 = vpop.f32.mrf.mxu0
  %v1423 = vadd.f32 %v1348, %v1422
  %v1424 = vpop.f32.mrf.mxu0
  %1425 = vdwg.mxu0
  %v1426 = vadd.f32 %v1423, %v60
  %v1427 = vxor.u32 %v1426, 2147483648
  %v1428 = vmul.f32 %v1427, 1.442695
  %v1429 = vpow.pop %v1428
  %v1430 = vadd.f32 %v1429, 1.0
  %v1431 = vrcp.pop %v1430
  %v1432 = vmul.f32 1.0, %v1431
  %v1433 = vmul.f32 %v1432, 2.0
  %v1434 = vsub.f32 %v1433, 1.0
  %v1435 = vmul.f32 %v1432, %v1098
  %1437 = vrot.lane.b32.xlu0 %v1434, 64
  %v1438 = vpop.permute.xlu0 %1437
  %v1440 = vmul.f32 %v1432, %v1438
  %1442 = vrot.lane.b32.xlu0 %v1440, 32
  %v1443 = vpop.permute.xlu0 %1442
  %v1445 = vadd.f32 %v1435, %v1443
  %v1446 = vtanh.pop %v1445
  %1448 = vrot.lane.b32.xlu0 %v1446, 64
  %v1449 = vpop.permute.xlu0 %1448
  %v1451 = vmul.f32 %v1432, %v1449
  %s1452 = scalar_lea.vmem %s0, 8
  %v1453 = vld [vmem:[%s1452] sm:$0x3]
  %1454 = vmatprep.subr.mxu0 0.0
  %1455 = vmatpush1.msra.mxu0 0.0
  %1456 = vmatprep.subr.mxu0 0.0
  %1457 = vmatpush1.msra.mxu0 0.0
  %1458 = vmatprep.subr.mxu0 0.0
  %1459 = vmatpush1.msra.mxu0 0.0
  %1460 = vmatprep.subr.mxu0 0.0
  %1461 = vmatpush1.msra.mxu0 0.0
  %1462 = vmatprep.subr.mxu0 0.0
  %1463 = vmatpush1.msra.mxu0 0.0
  %1464 = vmatprep.subr.mxu0 0.0
  %1465 = vmatpush1.msra.mxu0 0.0
  %1466 = vmatprep.subr.mxu0 0.0
  %1467 = vmatpush1.msra.mxu0 0.0
  %1468 = vmatprep.subr.mxu0 0.0
  %1469 = vmatpush1.msra.mxu0 0.0
  %1470 = vmatprep.subr.mxu0 0.0
  %1471 = vmatpush1.msra.mxu0 0.0
  %1472 = vmatprep.subr.mxu0 0.0
  %1473 = vmatpush1.msra.mxu0 0.0
  %1474 = vmatprep.subr.mxu0 0.0
  %1475 = vmatpush1.msra.mxu0 0.0
  %1476 = vmatprep.subr.mxu0 0.0
  %1477 = vmatpush1.msra.mxu0 0.0
  %1478 = vmatprep.subr.mxu0 0.0
  %1479 = vmatpush1.msra.mxu0 %v18
  %1480 = vmatprep.subr.mxu0 0.0
  %1481 = vmatpush1.msra.mxu0 %v17
  %1482 = vmatprep.subr.mxu0 0.0
  %1483 = vmatpush1.msra.mxu0 %v16
  %1484 = vmatprep.subr.mxu0 0.0
  %1485 = vmatpush1.msra.mxu0 %v15
  %1486 = vmatprep.subr.mxu0 0.0
  %1487 = vmatpush2.msra.mxu0 0.0
  %1488 = vmatprep.subr.mxu0 0.0
  %1489 = vmatpush2.msra.mxu0 0.0
  %1490 = vmatprep.subr.mxu0 0.0
  %1491 = vmatpush2.msra.mxu0 0.0
  %1492 = vmatprep.subr.mxu0 0.0
  %1493 = vmatpush2.msra.mxu0 0.0
  %1494 = vmatprep.subr.mxu0 0.0
  %1495 = vmatpush2.msra.mxu0 0.0
  %1496 = vmatprep.subr.mxu0 0.0
  %1497 = vmatpush2.msra.mxu0 0.0
  %1498 = vmatprep.subr.mxu0 0.0
  %1499 = vmatpush2.msra.mxu0 0.0
  %1500 = vmatprep.subr.mxu0 0.0
  %1501 = vmatpush2.msra.mxu0 0.0
  %1502 = vmatprep.subr.mxu0 0.0
  %1503 = vmatpush2.msra.mxu0 0.0
  %1504 = vmatprep.subr.mxu0 0.0
  %1505 = vmatpush2.msra.mxu0 0.0
  %1506 = vmatprep.subr.mxu0 0.0
  %1507 = vmatpush2.msra.mxu0 0.0
  %1508 = vmatprep.subr.mxu0 0.0
  %1509 = vmatpush2.msra.mxu0 0.0
  %1510 = vmatprep.subr.mxu0 0.0
  %1511 = vmatpush2.msra.mxu0 0.0
  %1512 = vmatprep.subr.mxu0 0.0
  %1513 = vmatpush2.msra.mxu0 0.0
  %1514 = vmatprep.subr.mxu0 0.0
  %1515 = vmatpush2.msra.mxu0 0.0
  %1516 = vmatprep.subr.mxu0 0.0
  %1517 = vmatpush2.msra.mxu0 0.0
  %1518 = vmatprep.mubr.f32.mxu0 0.0
  %1519 = vmatmul.mubr.f32.gmra.mxu0 %v1354
  %v1520 = vpop.f32.mrf.mxu0
  %v1521 = vadd.f32 0.0, %v1520
  %v1522 = vpop.f32.mrf.mxu0
  %1523 = vdwg.mxu0
  %v1525 = vsel %vm136, %v1453, 0
  %1527 = vmatprep.subr.mxu0 0.0
  %1528 = vmatpush1.msra.mxu0 0.0
  %1529 = vmatprep.subr.mxu0 0.0
  %1530 = vmatpush1.msra.mxu0 0.0
  %1531 = vmatprep.subr.mxu0 0.0
  %1532 = vmatpush1.msra.mxu0 0.0
  %1533 = vmatprep.subr.mxu0 0.0
  %1534 = vmatpush1.msra.mxu0 0.0
  %1535 = vmatprep.subr.mxu0 0.0
  %1536 = vmatpush1.msra.mxu0 0.0
  %1537 = vmatprep.subr.mxu0 0.0
  %1538 = vmatpush1.msra.mxu0 0.0
  %1539 = vmatprep.subr.mxu0 0.0
  %1540 = vmatpush1.msra.mxu0 0.0
  %1541 = vmatprep.subr.mxu0 0.0
  %1542 = vmatpush1.msra.mxu0 0.0
  %1543 = vmatprep.subr.mxu0 0.0
  %1544 = vmatpush1.msra.mxu0 0.0
  %1545 = vmatprep.subr.mxu0 0.0
  %1546 = vmatpush1.msra.mxu0 0.0
  %1547 = vmatprep.subr.mxu0 0.0
  %1548 = vmatpush1.msra.mxu0 0.0
  %1549 = vmatprep.subr.mxu0 0.0
  %1550 = vmatpush1.msra.mxu0 0.0
  %1551 = vmatprep.subr.mxu0 0.0
  %1552 = vmatpush1.msra.mxu0 0.0
  %1553 = vmatprep.subr.mxu0 0.0
  %1554 = vmatpush1.msra.mxu0 0.0
  %1555 = vmatprep.subr.mxu0 0.0
  %1556 = vmatpush1.msra.mxu0 0.0
  %1557 = vmatprep.subr.mxu0 0.0
  %1558 = vmatpush1.msra.mxu0 %v142
  %1559 = vmatprep.subr.mxu0 0.0
  %1560 = vmatpush2.msra.mxu0 0.0
  %1561 = vmatprep.subr.mxu0 0.0
  %1562 = vmatpush2.msra.mxu0 0.0
  %1563 = vmatprep.subr.mxu0 0.0
  %1564 = vmatpush2.msra.mxu0 0.0
  %1565 = vmatprep.subr.mxu0 0.0
  %1566 = vmatpush2.msra.mxu0 0.0
  %1567 = vmatprep.subr.mxu0 0.0
  %1568 = vmatpush2.msra.mxu0 0.0
  %1569 = vmatprep.subr.mxu0 0.0
  %1570 = vmatpush2.msra.mxu0 0.0
  %1571 = vmatprep.subr.mxu0 0.0
  %1572 = vmatpush2.msra.mxu0 0.0
  %1573 = vmatprep.subr.mxu0 0.0
  %1574 = vmatpush2.msra.mxu0 0.0
  %1575 = vmatprep.subr.mxu0 0.0
  %1576 = vmatpush2.msra.mxu0 0.0
  %1577 = vmatprep.subr.mxu0 0.0
  %1578 = vmatpush2.msra.mxu0 0.0
  %1579 = vmatprep.subr.mxu0 0.0
  %1580 = vmatpush2.msra.mxu0 0.0
  %1581 = vmatprep.subr.mxu0 0.0
  %1582 = vmatpush2.msra.mxu0 0.0
  %1583 = vmatprep.subr.mxu0 0.0
  %1584 = vmatpush2.msra.mxu0 0.0
  %1585 = vmatprep.subr.mxu0 0.0
  %1586 = vmatpush2.msra.mxu0 0.0
  %1587 = vmatprep.subr.mxu0 0.0
  %1588 = vmatpush2.msra.mxu0 0.0
  %1589 = vmatprep.subr.mxu0 0.0
  %1590 = vmatpush2.msra.mxu0 0.0
  %1591 = vmatprep.mubr.f32.mxu0 0.0
  %1592 = vmatmul.mubr.f32.gmra.mxu0 %v1525
  %v1593 = vpop.f32.mrf.mxu0
  %v1594 = vadd.f32 %v1521, %v1593
  %v1595 = vpop.f32.mrf.mxu0
  %1596 = vdwg.mxu0
  %v1597 = vadd.f32 %v1594, %v56
  %v1598 = vxor.u32 %v1597, 2147483648
  %v1599 = vmul.f32 %v1598, 1.442695
  %v1600 = vpow.pop %v1599
  %v1601 = vadd.f32 %v1600, 1.0
  %v1602 = vrcp.pop %v1601
  %v1603 = vmul.f32 1.0, %v1602
  %v1604 = vmul.f32 %v1603, 2.0
  %v1605 = vsub.f32 %v1604, 1.0
  %v1606 = vmul.f32 %v1603, %v1269
  %1608 = vrot.lane.b32.xlu0 %v1605, 64
  %v1609 = vpop.permute.xlu0 %1608
  %v1611 = vmul.f32 %v1603, %v1609
  %1613 = vrot.lane.b32.xlu0 %v1611, 32
  %v1614 = vpop.permute.xlu0 %1613
  %v1616 = vadd.f32 %v1606, %v1614
  %v1617 = vtanh.pop %v1616
  %1619 = vrot.lane.b32.xlu0 %v1617, 64
  %v1620 = vpop.permute.xlu0 %1619
  %v1622 = vmul.f32 %v1603, %v1620
  %1624 = vrot.lane.b32.xlu0 %v1451, 32
  %v1625 = vpop.permute.xlu0 %1624
  %v1626 = vsel %vm62, %v1625, 0
  %1628 = vmatprep.subr.mxu0 0.0
  %1629 = vmatpush1.msra.mxu0 0.0
  %1630 = vmatprep.subr.mxu0 0.0
  %1631 = vmatpush1.msra.mxu0 0.0
  %1632 = vmatprep.subr.mxu0 0.0
  %1633 = vmatpush1.msra.mxu0 0.0
  %1634 = vmatprep.subr.mxu0 0.0
  %1635 = vmatpush1.msra.mxu0 0.0
  %1636 = vmatprep.subr.mxu0 0.0
  %1637 = vmatpush1.msra.mxu0 0.0
  %1638 = vmatprep.subr.mxu0 0.0
  %1639 = vmatpush1.msra.mxu0 0.0
  %1640 = vmatprep.subr.mxu0 0.0
  %1641 = vmatpush1.msra.mxu0 0.0
  %1642 = vmatprep.subr.mxu0 0.0
  %1643 = vmatpush1.msra.mxu0 0.0
  %1644 = vmatprep.subr.mxu0 0.0
  %1645 = vmatpush1.msra.mxu0 0.0
  %1646 = vmatprep.subr.mxu0 0.0
  %1647 = vmatpush1.msra.mxu0 0.0
  %1648 = vmatprep.subr.mxu0 0.0
  %1649 = vmatpush1.msra.mxu0 0.0
  %1650 = vmatprep.subr.mxu0 0.0
  %1651 = vmatpush1.msra.mxu0 0.0
  %1652 = vmatprep.subr.mxu0 0.0
  %1653 = vmatpush1.msra.mxu0 %v27
  %1654 = vmatprep.subr.mxu0 0.0
  %1655 = vmatpush1.msra.mxu0 %v26
  %1656 = vmatprep.subr.mxu0 0.0
  %1657 = vmatpush1.msra.mxu0 %v25
  %1658 = vmatprep.subr.mxu0 0.0
  %1659 = vmatpush1.msra.mxu0 %v24
  %1660 = vmatprep.subr.mxu0 0.0
  %1661 = vmatpush2.msra.mxu0 0.0
  %1662 = vmatprep.subr.mxu0 0.0
  %1663 = vmatpush2.msra.mxu0 0.0
  %1664 = vmatprep.subr.mxu0 0.0
  %1665 = vmatpush2.msra.mxu0 0.0
  %1666 = vmatprep.subr.mxu0 0.0
  %1667 = vmatpush2.msra.mxu0 0.0
  %1668 = vmatprep.subr.mxu0 0.0
  %1669 = vmatpush2.msra.mxu0 0.0
  %1670 = vmatprep.subr.mxu0 0.0
  %1671 = vmatpush2.msra.mxu0 0.0
  %1672 = vmatprep.subr.mxu0 0.0
  %1673 = vmatpush2.msra.mxu0 0.0
  %1674 = vmatprep.subr.mxu0 0.0
  %1675 = vmatpush2.msra.mxu0 0.0
  %1676 = vmatprep.subr.mxu0 0.0
  %1677 = vmatpush2.msra.mxu0 0.0
  %1678 = vmatprep.subr.mxu0 0.0
  %1679 = vmatpush2.msra.mxu0 0.0
  %1680 = vmatprep.subr.mxu0 0.0
  %1681 = vmatpush2.msra.mxu0 0.0
  %1682 = vmatprep.subr.mxu0 0.0
  %1683 = vmatpush2.msra.mxu0 0.0
  %1684 = vmatprep.subr.mxu0 0.0
  %1685 = vmatpush2.msra.mxu0 0.0
  %1686 = vmatprep.subr.mxu0 0.0
  %1687 = vmatpush2.msra.mxu0 0.0
  %1688 = vmatprep.subr.mxu0 0.0
  %1689 = vmatpush2.msra.mxu0 0.0
  %1690 = vmatprep.subr.mxu0 0.0
  %1691 = vmatpush2.msra.mxu0 0.0
  %1692 = vmatprep.mubr.f32.mxu0 0.0
  %1693 = vmatmul.mubr.f32.gmra.mxu0 %v1626
  %v1694 = vpop.f32.mrf.mxu0
  %v1695 = vadd.f32 0.0, %v1694
  %v1696 = vpop.f32.mrf.mxu0
  %1697 = vdwg.mxu0
  %1699 = vrot.lane.b32.xlu0 %v1622, 32
  %v1700 = vpop.permute.xlu0 %1699
  %v1701 = vsel %vm62, %v1700, 0
  %1703 = vmatprep.subr.mxu0 0.0
  %1704 = vmatpush1.msra.mxu0 0.0
  %1705 = vmatprep.subr.mxu0 0.0
  %1706 = vmatpush1.msra.mxu0 0.0
  %1707 = vmatprep.subr.mxu0 0.0
  %1708 = vmatpush1.msra.mxu0 0.0
  %1709 = vmatprep.subr.mxu0 0.0
  %1710 = vmatpush1.msra.mxu0 0.0
  %1711 = vmatprep.subr.mxu0 0.0
  %1712 = vmatpush1.msra.mxu0 0.0
  %1713 = vmatprep.subr.mxu0 0.0
  %1714 = vmatpush1.msra.mxu0 0.0
  %1715 = vmatprep.subr.mxu0 0.0
  %1716 = vmatpush1.msra.mxu0 0.0
  %1717 = vmatprep.subr.mxu0 0.0
  %1718 = vmatpush1.msra.mxu0 0.0
  %1719 = vmatprep.subr.mxu0 0.0
  %1720 = vmatpush1.msra.mxu0 0.0
  %1721 = vmatprep.subr.mxu0 0.0
  %1722 = vmatpush1.msra.mxu0 0.0
  %1723 = vmatprep.subr.mxu0 0.0
  %1724 = vmatpush1.msra.mxu0 0.0
  %1725 = vmatprep.subr.mxu0 0.0
  %1726 = vmatpush1.msra.mxu0 0.0
  %1727 = vmatprep.subr.mxu0 0.0
  %1728 = vmatpush1.msra.mxu0 %v23
  %1729 = vmatprep.subr.mxu0 0.0
  %1730 = vmatpush1.msra.mxu0 %v22
  %1731 = vmatprep.subr.mxu0 0.0
  %1732 = vmatpush1.msra.mxu0 %v21
  %1733 = vmatprep.subr.mxu0 0.0
  %1734 = vmatpush1.msra.mxu0 %v20
  %1735 = vmatprep.subr.mxu0 0.0
  %1736 = vmatpush2.msra.mxu0 0.0
  %1737 = vmatprep.subr.mxu0 0.0
  %1738 = vmatpush2.msra.mxu0 0.0
  %1739 = vmatprep.subr.mxu0 0.0
  %1740 = vmatpush2.msra.mxu0 0.0
  %1741 = vmatprep.subr.mxu0 0.0
  %1742 = vmatpush2.msra.mxu0 0.0
  %1743 = vmatprep.subr.mxu0 0.0
  %1744 = vmatpush2.msra.mxu0 0.0
  %1745 = vmatprep.subr.mxu0 0.0
  %1746 = vmatpush2.msra.mxu0 0.0
  %1747 = vmatprep.subr.mxu0 0.0
  %1748 = vmatpush2.msra.mxu0 0.0
  %1749 = vmatprep.subr.mxu0 0.0
  %1750 = vmatpush2.msra.mxu0 0.0
  %1751 = vmatprep.subr.mxu0 0.0
  %1752 = vmatpush2.msra.mxu0 0.0
  %1753 = vmatprep.subr.mxu0 0.0
  %1754 = vmatpush2.msra.mxu0 0.0
  %1755 = vmatprep.subr.mxu0 0.0
  %1756 = vmatpush2.msra.mxu0 0.0
  %1757 = vmatprep.subr.mxu0 0.0
  %1758 = vmatpush2.msra.mxu0 0.0
  %1759 = vmatprep.subr.mxu0 0.0
  %1760 = vmatpush2.msra.mxu0 0.0
  %1761 = vmatprep.subr.mxu0 0.0
  %1762 = vmatpush2.msra.mxu0 0.0
  %1763 = vmatprep.subr.mxu0 0.0
  %1764 = vmatpush2.msra.mxu0 0.0
  %1765 = vmatprep.subr.mxu0 0.0
  %1766 = vmatpush2.msra.mxu0 0.0
  %1767 = vmatprep.mubr.f32.mxu0 0.0
  %1768 = vmatmul.mubr.f32.gmra.mxu0 %v1701
  %v1769 = vpop.f32.mrf.mxu0
  %v1770 = vadd.f32 %v1695, %v1769
  %v1771 = vpop.f32.mrf.mxu0
  %1772 = vdwg.mxu0
  %v1773 = vadd.f32 %v1770, %v60
  %v1774 = vxor.u32 %v1773, 2147483648
  %v1775 = vmul.f32 %v1774, 1.442695
  %v1776 = vpow.pop %v1775
  %v1777 = vadd.f32 %v1776, 1.0
  %v1778 = vrcp.pop %v1777
  %v1779 = vmul.f32 1.0, %v1778
  %v1780 = vmul.f32 %v1779, 2.0
  %v1781 = vsub.f32 %v1780, 1.0
  %v1782 = vmul.f32 %v1779, %v1445
  %1784 = vrot.lane.b32.xlu0 %v1781, 64
  %v1785 = vpop.permute.xlu0 %1784
  %v1787 = vmul.f32 %v1779, %v1785
  %1789 = vrot.lane.b32.xlu0 %v1787, 32
  %v1790 = vpop.permute.xlu0 %1789
  %v1792 = vadd.f32 %v1782, %v1790
  %v1793 = vtanh.pop %v1792
  %1795 = vrot.lane.b32.xlu0 %v1793, 64
  %v1796 = vpop.permute.xlu0 %1795
  %v1798 = vmul.f32 %v1779, %v1796
  %s1799 = scalar_lea.vmem %s0, 10
  %v1800 = vld [vmem:[%s1799] sm:$0x3]
  %1801 = vmatprep.subr.mxu0 0.0
  %1802 = vmatpush1.msra.mxu0 0.0
  %1803 = vmatprep.subr.mxu0 0.0
  %1804 = vmatpush1.msra.mxu0 0.0
  %1805 = vmatprep.subr.mxu0 0.0
  %1806 = vmatpush1.msra.mxu0 0.0
  %1807 = vmatprep.subr.mxu0 0.0
  %1808 = vmatpush1.msra.mxu0 0.0
  %1809 = vmatprep.subr.mxu0 0.0
  %1810 = vmatpush1.msra.mxu0 0.0
  %1811 = vmatprep.subr.mxu0 0.0
  %1812 = vmatpush1.msra.mxu0 0.0
  %1813 = vmatprep.subr.mxu0 0.0
  %1814 = vmatpush1.msra.mxu0 0.0
  %1815 = vmatprep.subr.mxu0 0.0
  %1816 = vmatpush1.msra.mxu0 0.0
  %1817 = vmatprep.subr.mxu0 0.0
  %1818 = vmatpush1.msra.mxu0 0.0
  %1819 = vmatprep.subr.mxu0 0.0
  %1820 = vmatpush1.msra.mxu0 0.0
  %1821 = vmatprep.subr.mxu0 0.0
  %1822 = vmatpush1.msra.mxu0 0.0
  %1823 = vmatprep.subr.mxu0 0.0
  %1824 = vmatpush1.msra.mxu0 0.0
  %1825 = vmatprep.subr.mxu0 0.0
  %1826 = vmatpush1.msra.mxu0 %v18
  %1827 = vmatprep.subr.mxu0 0.0
  %1828 = vmatpush1.msra.mxu0 %v17
  %1829 = vmatprep.subr.mxu0 0.0
  %1830 = vmatpush1.msra.mxu0 %v16
  %1831 = vmatprep.subr.mxu0 0.0
  %1832 = vmatpush1.msra.mxu0 %v15
  %1833 = vmatprep.subr.mxu0 0.0
  %1834 = vmatpush2.msra.mxu0 0.0
  %1835 = vmatprep.subr.mxu0 0.0
  %1836 = vmatpush2.msra.mxu0 0.0
  %1837 = vmatprep.subr.mxu0 0.0
  %1838 = vmatpush2.msra.mxu0 0.0
  %1839 = vmatprep.subr.mxu0 0.0
  %1840 = vmatpush2.msra.mxu0 0.0
  %1841 = vmatprep.subr.mxu0 0.0
  %1842 = vmatpush2.msra.mxu0 0.0
  %1843 = vmatprep.subr.mxu0 0.0
  %1844 = vmatpush2.msra.mxu0 0.0
  %1845 = vmatprep.subr.mxu0 0.0
  %1846 = vmatpush2.msra.mxu0 0.0
  %1847 = vmatprep.subr.mxu0 0.0
  %1848 = vmatpush2.msra.mxu0 0.0
  %1849 = vmatprep.subr.mxu0 0.0
  %1850 = vmatpush2.msra.mxu0 0.0
  %1851 = vmatprep.subr.mxu0 0.0
  %1852 = vmatpush2.msra.mxu0 0.0
  %1853 = vmatprep.subr.mxu0 0.0
  %1854 = vmatpush2.msra.mxu0 0.0
  %1855 = vmatprep.subr.mxu0 0.0
  %1856 = vmatpush2.msra.mxu0 0.0
  %1857 = vmatprep.subr.mxu0 0.0
  %1858 = vmatpush2.msra.mxu0 0.0
  %1859 = vmatprep.subr.mxu0 0.0
  %1860 = vmatpush2.msra.mxu0 0.0
  %1861 = vmatprep.subr.mxu0 0.0
  %1862 = vmatpush2.msra.mxu0 0.0
  %1863 = vmatprep.subr.mxu0 0.0
  %1864 = vmatpush2.msra.mxu0 0.0
  %1865 = vmatprep.mubr.f32.mxu0 0.0
  %1866 = vmatmul.mubr.f32.gmra.mxu0 %v1701
  %v1867 = vpop.f32.mrf.mxu0
  %v1868 = vadd.f32 0.0, %v1867
  %v1869 = vpop.f32.mrf.mxu0
  %1870 = vdwg.mxu0
  %v1872 = vsel %vm136, %v1800, 0
  %1874 = vmatprep.subr.mxu0 0.0
  %1875 = vmatpush1.msra.mxu0 0.0
  %1876 = vmatprep.subr.mxu0 0.0
  %1877 = vmatpush1.msra.mxu0 0.0
  %1878 = vmatprep.subr.mxu0 0.0
  %1879 = vmatpush1.msra.mxu0 0.0
  %1880 = vmatprep.subr.mxu0 0.0
  %1881 = vmatpush1.msra.mxu0 0.0
  %1882 = vmatprep.subr.mxu0 0.0
  %1883 = vmatpush1.msra.mxu0 0.0
  %1884 = vmatprep.subr.mxu0 0.0
  %1885 = vmatpush1.msra.mxu0 0.0
  %1886 = vmatprep.subr.mxu0 0.0
  %1887 = vmatpush1.msra.mxu0 0.0
  %1888 = vmatprep.subr.mxu0 0.0
  %1889 = vmatpush1.msra.mxu0 0.0
  %1890 = vmatprep.subr.mxu0 0.0
  %1891 = vmatpush1.msra.mxu0 0.0
  %1892 = vmatprep.subr.mxu0 0.0
  %1893 = vmatpush1.msra.mxu0 0.0
  %1894 = vmatprep.subr.mxu0 0.0
  %1895 = vmatpush1.msra.mxu0 0.0
  %1896 = vmatprep.subr.mxu0 0.0
  %1897 = vmatpush1.msra.mxu0 0.0
  %1898 = vmatprep.subr.mxu0 0.0
  %1899 = vmatpush1.msra.mxu0 0.0
  %1900 = vmatprep.subr.mxu0 0.0
  %1901 = vmatpush1.msra.mxu0 0.0
  %1902 = vmatprep.subr.mxu0 0.0
  %1903 = vmatpush1.msra.mxu0 0.0
  %1904 = vmatprep.subr.mxu0 0.0
  %1905 = vmatpush1.msra.mxu0 %v142
  %1906 = vmatprep.subr.mxu0 0.0
  %1907 = vmatpush2.msra.mxu0 0.0
  %1908 = vmatprep.subr.mxu0 0.0
  %1909 = vmatpush2.msra.mxu0 0.0
  %1910 = vmatprep.subr.mxu0 0.0
  %1911 = vmatpush2.msra.mxu0 0.0
  %1912 = vmatprep.subr.mxu0 0.0
  %1913 = vmatpush2.msra.mxu0 0.0
  %1914 = vmatprep.subr.mxu0 0.0
  %1915 = vmatpush2.msra.mxu0 0.0
  %1916 = vmatprep.subr.mxu0 0.0
  %1917 = vmatpush2.msra.mxu0 0.0
  %1918 = vmatprep.subr.mxu0 0.0
  %1919 = vmatpush2.msra.mxu0 0.0
  %1920 = vmatprep.subr.mxu0 0.0
  %1921 = vmatpush2.msra.mxu0 0.0
  %1922 = vmatprep.subr.mxu0 0.0
  %1923 = vmatpush2.msra.mxu0 0.0
  %1924 = vmatprep.subr.mxu0 0.0
  %1925 = vmatpush2.msra.mxu0 0.0
  %1926 = vmatprep.subr.mxu0 0.0
  %1927 = vmatpush2.msra.mxu0 0.0
  %1928 = vmatprep.subr.mxu0 0.0
  %1929 = vmatpush2.msra.mxu0 0.0
  %1930 = vmatprep.subr.mxu0 0.0
  %1931 = vmatpush2.msra.mxu0 0.0
  %1932 = vmatprep.subr.mxu0 0.0
  %1933 = vmatpush2.msra.mxu0 0.0
  %1934 = vmatprep.subr.mxu0 0.0
  %1935 = vmatpush2.msra.mxu0 0.0
  %1936 = vmatprep.subr.mxu0 0.0
  %1937 = vmatpush2.msra.mxu0 0.0
  %1938 = vmatprep.mubr.f32.mxu0 0.0
  %1939 = vmatmul.mubr.f32.gmra.mxu0 %v1872
  %v1940 = vpop.f32.mrf.mxu0
  %v1941 = vadd.f32 %v1868, %v1940
  %v1942 = vpop.f32.mrf.mxu0
  %1943 = vdwg.mxu0
  %v1944 = vadd.f32 %v1941, %v56
  %v1945 = vxor.u32 %v1944, 2147483648
  %v1946 = vmul.f32 %v1945, 1.442695
  %v1947 = vpow.pop %v1946
  %v1948 = vadd.f32 %v1947, 1.0
  %v1949 = vrcp.pop %v1948
  %v1950 = vmul.f32 1.0, %v1949
  %v1951 = vmul.f32 %v1950, 2.0
  %v1952 = vsub.f32 %v1951, 1.0
  %v1953 = vmul.f32 %v1950, %v1616
  %1955 = vrot.lane.b32.xlu0 %v1952, 64
  %v1956 = vpop.permute.xlu0 %1955
  %v1958 = vmul.f32 %v1950, %v1956
  %1960 = vrot.lane.b32.xlu0 %v1958, 32
  %v1961 = vpop.permute.xlu0 %1960
  %v1963 = vadd.f32 %v1953, %v1961
  %v1964 = vtanh.pop %v1963
  %1966 = vrot.lane.b32.xlu0 %v1964, 64
  %v1967 = vpop.permute.xlu0 %1966
  %v1969 = vmul.f32 %v1950, %v1967
  %1971 = vrot.lane.b32.xlu0 %v1798, 32
  %v1972 = vpop.permute.xlu0 %1971
  %v1973 = vsel %vm62, %v1972, 0
  %1975 = vmatprep.subr.mxu0 0.0
  %1976 = vmatpush1.msra.mxu0 0.0
  %1977 = vmatprep.subr.mxu0 0.0
  %1978 = vmatpush1.msra.mxu0 0.0
  %1979 = vmatprep.subr.mxu0 0.0
  %1980 = vmatpush1.msra.mxu0 0.0
  %1981 = vmatprep.subr.mxu0 0.0
  %1982 = vmatpush1.msra.mxu0 0.0
  %1983 = vmatprep.subr.mxu0 0.0
  %1984 = vmatpush1.msra.mxu0 0.0
  %1985 = vmatprep.subr.mxu0 0.0
  %1986 = vmatpush1.msra.mxu0 0.0
  %1987 = vmatprep.subr.mxu0 0.0
  %1988 = vmatpush1.msra.mxu0 0.0
  %1989 = vmatprep.subr.mxu0 0.0
  %1990 = vmatpush1.msra.mxu0 0.0
  %1991 = vmatprep.subr.mxu0 0.0
  %1992 = vmatpush1.msra.mxu0 0.0
  %1993 = vmatprep.subr.mxu0 0.0
  %1994 = vmatpush1.msra.mxu0 0.0
  %1995 = vmatprep.subr.mxu0 0.0
  %1996 = vmatpush1.msra.mxu0 0.0
  %1997 = vmatprep.subr.mxu0 0.0
  %1998 = vmatpush1.msra.mxu0 0.0
  %1999 = vmatprep.subr.mxu0 0.0
  %2000 = vmatpush1.msra.mxu0 %v27
  %2001 = vmatprep.subr.mxu0 0.0
  %2002 = vmatpush1.msra.mxu0 %v26
  %2003 = vmatprep.subr.mxu0 0.0
  %2004 = vmatpush1.msra.mxu0 %v25
  %2005 = vmatprep.subr.mxu0 0.0
  %2006 = vmatpush1.msra.mxu0 %v24
  %2007 = vmatprep.subr.mxu0 0.0
  %2008 = vmatpush2.msra.mxu0 0.0
  %2009 = vmatprep.subr.mxu0 0.0
  %2010 = vmatpush2.msra.mxu0 0.0
  %2011 = vmatprep.subr.mxu0 0.0
  %2012 = vmatpush2.msra.mxu0 0.0
  %2013 = vmatprep.subr.mxu0 0.0
  %2014 = vmatpush2.msra.mxu0 0.0
  %2015 = vmatprep.subr.mxu0 0.0
  %2016 = vmatpush2.msra.mxu0 0.0
  %2017 = vmatprep.subr.mxu0 0.0
  %2018 = vmatpush2.msra.mxu0 0.0
  %2019 = vmatprep.subr.mxu0 0.0
  %2020 = vmatpush2.msra.mxu0 0.0
  %2021 = vmatprep.subr.mxu0 0.0
  %2022 = vmatpush2.msra.mxu0 0.0
  %2023 = vmatprep.subr.mxu0 0.0
  %2024 = vmatpush2.msra.mxu0 0.0
  %2025 = vmatprep.subr.mxu0 0.0
  %2026 = vmatpush2.msra.mxu0 0.0
  %2027 = vmatprep.subr.mxu0 0.0
  %2028 = vmatpush2.msra.mxu0 0.0
  %2029 = vmatprep.subr.mxu0 0.0
  %2030 = vmatpush2.msra.mxu0 0.0
  %2031 = vmatprep.subr.mxu0 0.0
  %2032 = vmatpush2.msra.mxu0 0.0
  %2033 = vmatprep.subr.mxu0 0.0
  %2034 = vmatpush2.msra.mxu0 0.0
  %2035 = vmatprep.subr.mxu0 0.0
  %2036 = vmatpush2.msra.mxu0 0.0
  %2037 = vmatprep.subr.mxu0 0.0
  %2038 = vmatpush2.msra.mxu0 0.0
  %2039 = vmatprep.mubr.f32.mxu0 0.0
  %2040 = vmatmul.mubr.f32.gmra.mxu0 %v1973
  %v2041 = vpop.f32.mrf.mxu0
  %v2042 = vadd.f32 0.0, %v2041
  %v2043 = vpop.f32.mrf.mxu0
  %2044 = vdwg.mxu0
  %2046 = vrot.lane.b32.xlu0 %v1969, 32
  %v2047 = vpop.permute.xlu0 %2046
  %v2048 = vsel %vm62, %v2047, 0
  %2050 = vmatprep.subr.mxu0 0.0
  %2051 = vmatpush1.msra.mxu0 0.0
  %2052 = vmatprep.subr.mxu0 0.0
  %2053 = vmatpush1.msra.mxu0 0.0
  %2054 = vmatprep.subr.mxu0 0.0
  %2055 = vmatpush1.msra.mxu0 0.0
  %2056 = vmatprep.subr.mxu0 0.0
  %2057 = vmatpush1.msra.mxu0 0.0
  %2058 = vmatprep.subr.mxu0 0.0
  %2059 = vmatpush1.msra.mxu0 0.0
  %2060 = vmatprep.subr.mxu0 0.0
  %2061 = vmatpush1.msra.mxu0 0.0
  %2062 = vmatprep.subr.mxu0 0.0
  %2063 = vmatpush1.msra.mxu0 0.0
  %2064 = vmatprep.subr.mxu0 0.0
  %2065 = vmatpush1.msra.mxu0 0.0
  %2066 = vmatprep.subr.mxu0 0.0
  %2067 = vmatpush1.msra.mxu0 0.0
  %2068 = vmatprep.subr.mxu0 0.0
  %2069 = vmatpush1.msra.mxu0 0.0
  %2070 = vmatprep.subr.mxu0 0.0
  %2071 = vmatpush1.msra.mxu0 0.0
  %2072 = vmatprep.subr.mxu0 0.0
  %2073 = vmatpush1.msra.mxu0 0.0
  %2074 = vmatprep.subr.mxu0 0.0
  %2075 = vmatpush1.msra.mxu0 %v23
  %2076 = vmatprep.subr.mxu0 0.0
  %2077 = vmatpush1.msra.mxu0 %v22
  %2078 = vmatprep.subr.mxu0 0.0
  %2079 = vmatpush1.msra.mxu0 %v21
  %2080 = vmatprep.subr.mxu0 0.0
  %2081 = vmatpush1.msra.mxu0 %v20
  %2082 = vmatprep.subr.mxu0 0.0
  %2083 = vmatpush2.msra.mxu0 0.0
  %2084 = vmatprep.subr.mxu0 0.0
  %2085 = vmatpush2.msra.mxu0 0.0
  %2086 = vmatprep.subr.mxu0 0.0
  %2087 = vmatpush2.msra.mxu0 0.0
  %2088 = vmatprep.subr.mxu0 0.0
  %2089 = vmatpush2.msra.mxu0 0.0
  %2090 = vmatprep.subr.mxu0 0.0
  %2091 = vmatpush2.msra.mxu0 0.0
  %2092 = vmatprep.subr.mxu0 0.0
  %2093 = vmatpush2.msra.mxu0 0.0
  %2094 = vmatprep.subr.mxu0 0.0
  %2095 = vmatpush2.msra.mxu0 0.0
  %2096 = vmatprep.subr.mxu0 0.0
  %2097 = vmatpush2.msra.mxu0 0.0
  %2098 = vmatprep.subr.mxu0 0.0
  %2099 = vmatpush2.msra.mxu0 0.0
  %2100 = vmatprep.subr.mxu0 0.0
  %2101 = vmatpush2.msra.mxu0 0.0
  %2102 = vmatprep.subr.mxu0 0.0
  %2103 = vmatpush2.msra.mxu0 0.0
  %2104 = vmatprep.subr.mxu0 0.0
  %2105 = vmatpush2.msra.mxu0 0.0
  %2106 = vmatprep.subr.mxu0 0.0
  %2107 = vmatpush2.msra.mxu0 0.0
  %2108 = vmatprep.subr.mxu0 0.0
  %2109 = vmatpush2.msra.mxu0 0.0
  %2110 = vmatprep.subr.mxu0 0.0
  %2111 = vmatpush2.msra.mxu0 0.0
  %2112 = vmatprep.subr.mxu0 0.0
  %2113 = vmatpush2.msra.mxu0 0.0
  %2114 = vmatprep.mubr.f32.mxu0 0.0
  %2115 = vmatmul.mubr.f32.gmra.mxu0 %v2048
  %v2116 = vpop.f32.mrf.mxu0
  %v2117 = vadd.f32 %v2042, %v2116
  %v2118 = vpop.f32.mrf.mxu0
  %2119 = vdwg.mxu0
  %v2120 = vadd.f32 %v2117, %v60
  %v2121 = vxor.u32 %v2120, 2147483648
  %v2122 = vmul.f32 %v2121, 1.442695
  %v2123 = vpow.pop %v2122
  %v2124 = vadd.f32 %v2123, 1.0
  %v2125 = vrcp.pop %v2124
  %v2126 = vmul.f32 1.0, %v2125
  %v2127 = vmul.f32 %v2126, 2.0
  %v2128 = vsub.f32 %v2127, 1.0
  %v2129 = vmul.f32 %v2126, %v1792
  %2131 = vrot.lane.b32.xlu0 %v2128, 64
  %v2132 = vpop.permute.xlu0 %2131
  %v2134 = vmul.f32 %v2126, %v2132
  %2136 = vrot.lane.b32.xlu0 %v2134, 32
  %v2137 = vpop.permute.xlu0 %2136
  %v2139 = vadd.f32 %v2129, %v2137
  %v2140 = vtanh.pop %v2139
  %2142 = vrot.lane.b32.xlu0 %v2140, 64
  %v2143 = vpop.permute.xlu0 %2142
  %v2145 = vmul.f32 %v2126, %v2143
  %s2146 = scalar_lea.vmem %s0, 12
  %v2147 = vld [vmem:[%s2146] sm:$0x3]
  %2148 = vmatprep.subr.mxu0 0.0
  %2149 = vmatpush1.msra.mxu0 0.0
  %2150 = vmatprep.subr.mxu0 0.0
  %2151 = vmatpush1.msra.mxu0 0.0
  %2152 = vmatprep.subr.mxu0 0.0
  %2153 = vmatpush1.msra.mxu0 0.0
  %2154 = vmatprep.subr.mxu0 0.0
  %2155 = vmatpush1.msra.mxu0 0.0
  %2156 = vmatprep.subr.mxu0 0.0
  %2157 = vmatpush1.msra.mxu0 0.0
  %2158 = vmatprep.subr.mxu0 0.0
  %2159 = vmatpush1.msra.mxu0 0.0
  %2160 = vmatprep.subr.mxu0 0.0
  %2161 = vmatpush1.msra.mxu0 0.0
  %2162 = vmatprep.subr.mxu0 0.0
  %2163 = vmatpush1.msra.mxu0 0.0
  %2164 = vmatprep.subr.mxu0 0.0
  %2165 = vmatpush1.msra.mxu0 0.0
  %2166 = vmatprep.subr.mxu0 0.0
  %2167 = vmatpush1.msra.mxu0 0.0
  %2168 = vmatprep.subr.mxu0 0.0
  %2169 = vmatpush1.msra.mxu0 0.0
  %2170 = vmatprep.subr.mxu0 0.0
  %2171 = vmatpush1.msra.mxu0 0.0
  %2172 = vmatprep.subr.mxu0 0.0
  %2173 = vmatpush1.msra.mxu0 %v18
  %2174 = vmatprep.subr.mxu0 0.0
  %2175 = vmatpush1.msra.mxu0 %v17
  %2176 = vmatprep.subr.mxu0 0.0
  %2177 = vmatpush1.msra.mxu0 %v16
  %2178 = vmatprep.subr.mxu0 0.0
  %2179 = vmatpush1.msra.mxu0 %v15
  %2180 = vmatprep.subr.mxu0 0.0
  %2181 = vmatpush2.msra.mxu0 0.0
  %2182 = vmatprep.subr.mxu0 0.0
  %2183 = vmatpush2.msra.mxu0 0.0
  %2184 = vmatprep.subr.mxu0 0.0
  %2185 = vmatpush2.msra.mxu0 0.0
  %2186 = vmatprep.subr.mxu0 0.0
  %2187 = vmatpush2.msra.mxu0 0.0
  %2188 = vmatprep.subr.mxu0 0.0
  %2189 = vmatpush2.msra.mxu0 0.0
  %2190 = vmatprep.subr.mxu0 0.0
  %2191 = vmatpush2.msra.mxu0 0.0
  %2192 = vmatprep.subr.mxu0 0.0
  %2193 = vmatpush2.msra.mxu0 0.0
  %2194 = vmatprep.subr.mxu0 0.0
  %2195 = vmatpush2.msra.mxu0 0.0
  %2196 = vmatprep.subr.mxu0 0.0
  %2197 = vmatpush2.msra.mxu0 0.0
  %2198 = vmatprep.subr.mxu0 0.0
  %2199 = vmatpush2.msra.mxu0 0.0
  %2200 = vmatprep.subr.mxu0 0.0
  %2201 = vmatpush2.msra.mxu0 0.0
  %2202 = vmatprep.subr.mxu0 0.0
  %2203 = vmatpush2.msra.mxu0 0.0
  %2204 = vmatprep.subr.mxu0 0.0
  %2205 = vmatpush2.msra.mxu0 0.0
  %2206 = vmatprep.subr.mxu0 0.0
  %2207 = vmatpush2.msra.mxu0 0.0
  %2208 = vmatprep.subr.mxu0 0.0
  %2209 = vmatpush2.msra.mxu0 0.0
  %2210 = vmatprep.subr.mxu0 0.0
  %2211 = vmatpush2.msra.mxu0 0.0
  %2212 = vmatprep.mubr.f32.mxu0 0.0
  %2213 = vmatmul.mubr.f32.gmra.mxu0 %v2048
  %v2214 = vpop.f32.mrf.mxu0
  %v2215 = vadd.f32 0.0, %v2214
  %v2216 = vpop.f32.mrf.mxu0
  %2217 = vdwg.mxu0
  %v2219 = vsel %vm136, %v2147, 0
  %2221 = vmatprep.subr.mxu0 0.0
  %2222 = vmatpush1.msra.mxu0 0.0
  %2223 = vmatprep.subr.mxu0 0.0
  %2224 = vmatpush1.msra.mxu0 0.0
  %2225 = vmatprep.subr.mxu0 0.0
  %2226 = vmatpush1.msra.mxu0 0.0
  %2227 = vmatprep.subr.mxu0 0.0
  %2228 = vmatpush1.msra.mxu0 0.0
  %2229 = vmatprep.subr.mxu0 0.0
  %2230 = vmatpush1.msra.mxu0 0.0
  %2231 = vmatprep.subr.mxu0 0.0
  %2232 = vmatpush1.msra.mxu0 0.0
  %2233 = vmatprep.subr.mxu0 0.0
  %2234 = vmatpush1.msra.mxu0 0.0
  %2235 = vmatprep.subr.mxu0 0.0
  %2236 = vmatpush1.msra.mxu0 0.0
  %2237 = vmatprep.subr.mxu0 0.0
  %2238 = vmatpush1.msra.mxu0 0.0
  %2239 = vmatprep.subr.mxu0 0.0
  %2240 = vmatpush1.msra.mxu0 0.0
  %2241 = vmatprep.subr.mxu0 0.0
  %2242 = vmatpush1.msra.mxu0 0.0
  %2243 = vmatprep.subr.mxu0 0.0
  %2244 = vmatpush1.msra.mxu0 0.0
  %2245 = vmatprep.subr.mxu0 0.0
  %2246 = vmatpush1.msra.mxu0 0.0
  %2247 = vmatprep.subr.mxu0 0.0
  %2248 = vmatpush1.msra.mxu0 0.0
  %2249 = vmatprep.subr.mxu0 0.0
  %2250 = vmatpush1.msra.mxu0 0.0
  %2251 = vmatprep.subr.mxu0 0.0
  %2252 = vmatpush1.msra.mxu0 %v142
  %2253 = vmatprep.subr.mxu0 0.0
  %2254 = vmatpush2.msra.mxu0 0.0
  %2255 = vmatprep.subr.mxu0 0.0
  %2256 = vmatpush2.msra.mxu0 0.0
  %2257 = vmatprep.subr.mxu0 0.0
  %2258 = vmatpush2.msra.mxu0 0.0
  %2259 = vmatprep.subr.mxu0 0.0
  %2260 = vmatpush2.msra.mxu0 0.0
  %2261 = vmatprep.subr.mxu0 0.0
  %2262 = vmatpush2.msra.mxu0 0.0
  %2263 = vmatprep.subr.mxu0 0.0
  %2264 = vmatpush2.msra.mxu0 0.0
  %2265 = vmatprep.subr.mxu0 0.0
  %2266 = vmatpush2.msra.mxu0 0.0
  %2267 = vmatprep.subr.mxu0 0.0
  %2268 = vmatpush2.msra.mxu0 0.0
  %2269 = vmatprep.subr.mxu0 0.0
  %2270 = vmatpush2.msra.mxu0 0.0
  %2271 = vmatprep.subr.mxu0 0.0
  %2272 = vmatpush2.msra.mxu0 0.0
  %2273 = vmatprep.subr.mxu0 0.0
  %2274 = vmatpush2.msra.mxu0 0.0
  %2275 = vmatprep.subr.mxu0 0.0
  %2276 = vmatpush2.msra.mxu0 0.0
  %2277 = vmatprep.subr.mxu0 0.0
  %2278 = vmatpush2.msra.mxu0 0.0
  %2279 = vmatprep.subr.mxu0 0.0
  %2280 = vmatpush2.msra.mxu0 0.0
  %2281 = vmatprep.subr.mxu0 0.0
  %2282 = vmatpush2.msra.mxu0 0.0
  %2283 = vmatprep.subr.mxu0 0.0
  %2284 = vmatpush2.msra.mxu0 0.0
  %2285 = vmatprep.mubr.f32.mxu0 0.0
  %2286 = vmatmul.mubr.f32.gmra.mxu0 %v2219
  %v2287 = vpop.f32.mrf.mxu0
  %v2288 = vadd.f32 %v2215, %v2287
  %v2289 = vpop.f32.mrf.mxu0
  %2290 = vdwg.mxu0
  %v2291 = vadd.f32 %v2288, %v56
  %v2292 = vxor.u32 %v2291, 2147483648
  %v2293 = vmul.f32 %v2292, 1.442695
  %v2294 = vpow.pop %v2293
  %v2295 = vadd.f32 %v2294, 1.0
  %v2296 = vrcp.pop %v2295
  %v2297 = vmul.f32 1.0, %v2296
  %v2298 = vmul.f32 %v2297, 2.0
  %v2299 = vsub.f32 %v2298, 1.0
  %v2300 = vmul.f32 %v2297, %v1963
  %2302 = vrot.lane.b32.xlu0 %v2299, 64
  %v2303 = vpop.permute.xlu0 %2302
  %v2305 = vmul.f32 %v2297, %v2303
  %2307 = vrot.lane.b32.xlu0 %v2305, 32
  %v2308 = vpop.permute.xlu0 %2307
  %v2310 = vadd.f32 %v2300, %v2308
  %v2311 = vtanh.pop %v2310
  %2313 = vrot.lane.b32.xlu0 %v2311, 64
  %v2314 = vpop.permute.xlu0 %2313
  %v2316 = vmul.f32 %v2297, %v2314
  %2318 = vrot.lane.b32.xlu0 %v2145, 32
  %v2319 = vpop.permute.xlu0 %2318
  %v2320 = vsel %vm62, %v2319, 0
  %2322 = vmatprep.subr.mxu0 0.0
  %2323 = vmatpush1.msra.mxu0 0.0
  %2324 = vmatprep.subr.mxu0 0.0
  %2325 = vmatpush1.msra.mxu0 0.0
  %2326 = vmatprep.subr.mxu0 0.0
  %2327 = vmatpush1.msra.mxu0 0.0
  %2328 = vmatprep.subr.mxu0 0.0
  %2329 = vmatpush1.msra.mxu0 0.0
  %2330 = vmatprep.subr.mxu0 0.0
  %2331 = vmatpush1.msra.mxu0 0.0
  %2332 = vmatprep.subr.mxu0 0.0
  %2333 = vmatpush1.msra.mxu0 0.0
  %2334 = vmatprep.subr.mxu0 0.0
  %2335 = vmatpush1.msra.mxu0 0.0
  %2336 = vmatprep.subr.mxu0 0.0
  %2337 = vmatpush1.msra.mxu0 0.0
  %2338 = vmatprep.subr.mxu0 0.0
  %2339 = vmatpush1.msra.mxu0 0.0
  %2340 = vmatprep.subr.mxu0 0.0
  %2341 = vmatpush1.msra.mxu0 0.0
  %2342 = vmatprep.subr.mxu0 0.0
  %2343 = vmatpush1.msra.mxu0 0.0
  %2344 = vmatprep.subr.mxu0 0.0
  %2345 = vmatpush1.msra.mxu0 0.0
  %2346 = vmatprep.subr.mxu0 0.0
  %2347 = vmatpush1.msra.mxu0 %v27
  %2348 = vmatprep.subr.mxu0 0.0
  %2349 = vmatpush1.msra.mxu0 %v26
  %2350 = vmatprep.subr.mxu0 0.0
  %2351 = vmatpush1.msra.mxu0 %v25
  %2352 = vmatprep.subr.mxu0 0.0
  %2353 = vmatpush1.msra.mxu0 %v24
  %2354 = vmatprep.subr.mxu0 0.0
  %2355 = vmatpush2.msra.mxu0 0.0
  %2356 = vmatprep.subr.mxu0 0.0
  %2357 = vmatpush2.msra.mxu0 0.0
  %2358 = vmatprep.subr.mxu0 0.0
  %2359 = vmatpush2.msra.mxu0 0.0
  %2360 = vmatprep.subr.mxu0 0.0
  %2361 = vmatpush2.msra.mxu0 0.0
  %2362 = vmatprep.subr.mxu0 0.0
  %2363 = vmatpush2.msra.mxu0 0.0
  %2364 = vmatprep.subr.mxu0 0.0
  %2365 = vmatpush2.msra.mxu0 0.0
  %2366 = vmatprep.subr.mxu0 0.0
  %2367 = vmatpush2.msra.mxu0 0.0
  %2368 = vmatprep.subr.mxu0 0.0
  %2369 = vmatpush2.msra.mxu0 0.0
  %2370 = vmatprep.subr.mxu0 0.0
  %2371 = vmatpush2.msra.mxu0 0.0
  %2372 = vmatprep.subr.mxu0 0.0
  %2373 = vmatpush2.msra.mxu0 0.0
  %2374 = vmatprep.subr.mxu0 0.0
  %2375 = vmatpush2.msra.mxu0 0.0
  %2376 = vmatprep.subr.mxu0 0.0
  %2377 = vmatpush2.msra.mxu0 0.0
  %2378 = vmatprep.subr.mxu0 0.0
  %2379 = vmatpush2.msra.mxu0 0.0
  %2380 = vmatprep.subr.mxu0 0.0
  %2381 = vmatpush2.msra.mxu0 0.0
  %2382 = vmatprep.subr.mxu0 0.0
  %2383 = vmatpush2.msra.mxu0 0.0
  %2384 = vmatprep.subr.mxu0 0.0
  %2385 = vmatpush2.msra.mxu0 0.0
  %2386 = vmatprep.mubr.f32.mxu0 0.0
  %2387 = vmatmul.mubr.f32.gmra.mxu0 %v2320
  %v2388 = vpop.f32.mrf.mxu0
  %v2389 = vadd.f32 0.0, %v2388
  %v2390 = vpop.f32.mrf.mxu0
  %2391 = vdwg.mxu0
  %2393 = vrot.lane.b32.xlu0 %v2316, 32
  %v2394 = vpop.permute.xlu0 %2393
  %v2395 = vsel %vm62, %v2394, 0
  %2397 = vmatprep.subr.mxu0 0.0
  %2398 = vmatpush1.msra.mxu0 0.0
  %2399 = vmatprep.subr.mxu0 0.0
  %2400 = vmatpush1.msra.mxu0 0.0
  %2401 = vmatprep.subr.mxu0 0.0
  %2402 = vmatpush1.msra.mxu0 0.0
  %2403 = vmatprep.subr.mxu0 0.0
  %2404 = vmatpush1.msra.mxu0 0.0
  %2405 = vmatprep.subr.mxu0 0.0
  %2406 = vmatpush1.msra.mxu0 0.0
  %2407 = vmatprep.subr.mxu0 0.0
  %2408 = vmatpush1.msra.mxu0 0.0
  %2409 = vmatprep.subr.mxu0 0.0
  %2410 = vmatpush1.msra.mxu0 0.0
  %2411 = vmatprep.subr.mxu0 0.0
  %2412 = vmatpush1.msra.mxu0 0.0
  %2413 = vmatprep.subr.mxu0 0.0
  %2414 = vmatpush1.msra.mxu0 0.0
  %2415 = vmatprep.subr.mxu0 0.0
  %2416 = vmatpush1.msra.mxu0 0.0
  %2417 = vmatprep.subr.mxu0 0.0
  %2418 = vmatpush1.msra.mxu0 0.0
  %2419 = vmatprep.subr.mxu0 0.0
  %2420 = vmatpush1.msra.mxu0 0.0
  %2421 = vmatprep.subr.mxu0 0.0
  %2422 = vmatpush1.msra.mxu0 %v23
  %2423 = vmatprep.subr.mxu0 0.0
  %2424 = vmatpush1.msra.mxu0 %v22
  %2425 = vmatprep.subr.mxu0 0.0
  %2426 = vmatpush1.msra.mxu0 %v21
  %2427 = vmatprep.subr.mxu0 0.0
  %2428 = vmatpush1.msra.mxu0 %v20
  %2429 = vmatprep.subr.mxu0 0.0
  %2430 = vmatpush2.msra.mxu0 0.0
  %2431 = vmatprep.subr.mxu0 0.0
  %2432 = vmatpush2.msra.mxu0 0.0
  %2433 = vmatprep.subr.mxu0 0.0
  %2434 = vmatpush2.msra.mxu0 0.0
  %2435 = vmatprep.subr.mxu0 0.0
  %2436 = vmatpush2.msra.mxu0 0.0
  %2437 = vmatprep.subr.mxu0 0.0
  %2438 = vmatpush2.msra.mxu0 0.0
  %2439 = vmatprep.subr.mxu0 0.0
  %2440 = vmatpush2.msra.mxu0 0.0
  %2441 = vmatprep.subr.mxu0 0.0
  %2442 = vmatpush2.msra.mxu0 0.0
  %2443 = vmatprep.subr.mxu0 0.0
  %2444 = vmatpush2.msra.mxu0 0.0
  %2445 = vmatprep.subr.mxu0 0.0
  %2446 = vmatpush2.msra.mxu0 0.0
  %2447 = vmatprep.subr.mxu0 0.0
  %2448 = vmatpush2.msra.mxu0 0.0
  %2449 = vmatprep.subr.mxu0 0.0
  %2450 = vmatpush2.msra.mxu0 0.0
  %2451 = vmatprep.subr.mxu0 0.0
  %2452 = vmatpush2.msra.mxu0 0.0
  %2453 = vmatprep.subr.mxu0 0.0
  %2454 = vmatpush2.msra.mxu0 0.0
  %2455 = vmatprep.subr.mxu0 0.0
  %2456 = vmatpush2.msra.mxu0 0.0
  %2457 = vmatprep.subr.mxu0 0.0
  %2458 = vmatpush2.msra.mxu0 0.0
  %2459 = vmatprep.subr.mxu0 0.0
  %2460 = vmatpush2.msra.mxu0 0.0
  %2461 = vmatprep.mubr.f32.mxu0 0.0
  %2462 = vmatmul.mubr.f32.gmra.mxu0 %v2395
  %v2463 = vpop.f32.mrf.mxu0
  %v2464 = vadd.f32 %v2389, %v2463
  %v2465 = vpop.f32.mrf.mxu0
  %2466 = vdwg.mxu0
  %v2467 = vadd.f32 %v2464, %v60
  %v2468 = vxor.u32 %v2467, 2147483648
  %v2469 = vmul.f32 %v2468, 1.442695
  %v2470 = vpow.pop %v2469
  %v2471 = vadd.f32 %v2470, 1.0
  %v2472 = vrcp.pop %v2471
  %v2473 = vmul.f32 1.0, %v2472
  %v2474 = vmul.f32 %v2473, 2.0
  %v2475 = vsub.f32 %v2474, 1.0
  %v2476 = vmul.f32 %v2473, %v2139
  %2478 = vrot.lane.b32.xlu0 %v2475, 64
  %v2479 = vpop.permute.xlu0 %2478
  %v2481 = vmul.f32 %v2473, %v2479
  %2483 = vrot.lane.b32.xlu0 %v2481, 32
  %v2484 = vpop.permute.xlu0 %2483
  %v2486 = vadd.f32 %v2476, %v2484
  %v2487 = vtanh.pop %v2486
  %2489 = vrot.lane.b32.xlu0 %v2487, 64
  %v2490 = vpop.permute.xlu0 %2489
  %v2492 = vmul.f32 %v2473, %v2490
  %s2493 = scalar_lea.vmem %s0, 14
  %v2494 = vld [vmem:[%s2493] sm:$0x3]
  %2495 = vmatprep.subr.mxu0 0.0
  %2496 = vmatpush1.msra.mxu0 0.0
  %2497 = vmatprep.subr.mxu0 0.0
  %2498 = vmatpush1.msra.mxu0 0.0
  %2499 = vmatprep.subr.mxu0 0.0
  %2500 = vmatpush1.msra.mxu0 0.0
  %2501 = vmatprep.subr.mxu0 0.0
  %2502 = vmatpush1.msra.mxu0 0.0
  %2503 = vmatprep.subr.mxu0 0.0
  %2504 = vmatpush1.msra.mxu0 0.0
  %2505 = vmatprep.subr.mxu0 0.0
  %2506 = vmatpush1.msra.mxu0 0.0
  %2507 = vmatprep.subr.mxu0 0.0
  %2508 = vmatpush1.msra.mxu0 0.0
  %2509 = vmatprep.subr.mxu0 0.0
  %2510 = vmatpush1.msra.mxu0 0.0
  %2511 = vmatprep.subr.mxu0 0.0
  %2512 = vmatpush1.msra.mxu0 0.0
  %2513 = vmatprep.subr.mxu0 0.0
  %2514 = vmatpush1.msra.mxu0 0.0
  %2515 = vmatprep.subr.mxu0 0.0
  %2516 = vmatpush1.msra.mxu0 0.0
  %2517 = vmatprep.subr.mxu0 0.0
  %2518 = vmatpush1.msra.mxu0 0.0
  %2519 = vmatprep.subr.mxu0 0.0
  %2520 = vmatpush1.msra.mxu0 %v18
  %2521 = vmatprep.subr.mxu0 0.0
  %2522 = vmatpush1.msra.mxu0 %v17
  %2523 = vmatprep.subr.mxu0 0.0
  %2524 = vmatpush1.msra.mxu0 %v16
  %2525 = vmatprep.subr.mxu0 0.0
  %2526 = vmatpush1.msra.mxu0 %v15
  %2527 = vmatprep.subr.mxu0 0.0
  %2528 = vmatpush2.msra.mxu0 0.0
  %2529 = vmatprep.subr.mxu0 0.0
  %2530 = vmatpush2.msra.mxu0 0.0
  %2531 = vmatprep.subr.mxu0 0.0
  %2532 = vmatpush2.msra.mxu0 0.0
  %2533 = vmatprep.subr.mxu0 0.0
  %2534 = vmatpush2.msra.mxu0 0.0
  %2535 = vmatprep.subr.mxu0 0.0
  %2536 = vmatpush2.msra.mxu0 0.0
  %2537 = vmatprep.subr.mxu0 0.0
  %2538 = vmatpush2.msra.mxu0 0.0
  %2539 = vmatprep.subr.mxu0 0.0
  %2540 = vmatpush2.msra.mxu0 0.0
  %2541 = vmatprep.subr.mxu0 0.0
  %2542 = vmatpush2.msra.mxu0 0.0
  %2543 = vmatprep.subr.mxu0 0.0
  %2544 = vmatpush2.msra.mxu0 0.0
  %2545 = vmatprep.subr.mxu0 0.0
  %2546 = vmatpush2.msra.mxu0 0.0
  %2547 = vmatprep.subr.mxu0 0.0
  %2548 = vmatpush2.msra.mxu0 0.0
  %2549 = vmatprep.subr.mxu0 0.0
  %2550 = vmatpush2.msra.mxu0 0.0
  %2551 = vmatprep.subr.mxu0 0.0
  %2552 = vmatpush2.msra.mxu0 0.0
  %2553 = vmatprep.subr.mxu0 0.0
  %2554 = vmatpush2.msra.mxu0 0.0
  %2555 = vmatprep.subr.mxu0 0.0
  %2556 = vmatpush2.msra.mxu0 0.0
  %2557 = vmatprep.subr.mxu0 0.0
  %2558 = vmatpush2.msra.mxu0 0.0
  %2559 = vmatprep.mubr.f32.mxu0 0.0
  %2560 = vmatmul.mubr.f32.gmra.mxu0 %v2395
  %v2561 = vpop.f32.mrf.mxu0
  %v2562 = vadd.f32 0.0, %v2561
  %v2563 = vpop.f32.mrf.mxu0
  %2564 = vdwg.mxu0
  %v2566 = vsel %vm136, %v2494, 0
  %2568 = vmatprep.subr.mxu0 0.0
  %2569 = vmatpush1.msra.mxu0 0.0
  %2570 = vmatprep.subr.mxu0 0.0
  %2571 = vmatpush1.msra.mxu0 0.0
  %2572 = vmatprep.subr.mxu0 0.0
  %2573 = vmatpush1.msra.mxu0 0.0
  %2574 = vmatprep.subr.mxu0 0.0
  %2575 = vmatpush1.msra.mxu0 0.0
  %2576 = vmatprep.subr.mxu0 0.0
  %2577 = vmatpush1.msra.mxu0 0.0
  %2578 = vmatprep.subr.mxu0 0.0
  %2579 = vmatpush1.msra.mxu0 0.0
  %2580 = vmatprep.subr.mxu0 0.0
  %2581 = vmatpush1.msra.mxu0 0.0
  %2582 = vmatprep.subr.mxu0 0.0
  %2583 = vmatpush1.msra.mxu0 0.0
  %2584 = vmatprep.subr.mxu0 0.0
  %2585 = vmatpush1.msra.mxu0 0.0
  %2586 = vmatprep.subr.mxu0 0.0
  %2587 = vmatpush1.msra.mxu0 0.0
  %2588 = vmatprep.subr.mxu0 0.0
  %2589 = vmatpush1.msra.mxu0 0.0
  %2590 = vmatprep.subr.mxu0 0.0
  %2591 = vmatpush1.msra.mxu0 0.0
  %2592 = vmatprep.subr.mxu0 0.0
  %2593 = vmatpush1.msra.mxu0 0.0
  %2594 = vmatprep.subr.mxu0 0.0
  %2595 = vmatpush1.msra.mxu0 0.0
  %2596 = vmatprep.subr.mxu0 0.0
  %2597 = vmatpush1.msra.mxu0 0.0
  %2598 = vmatprep.subr.mxu0 0.0
  %2599 = vmatpush1.msra.mxu0 %v142
  %2600 = vmatprep.subr.mxu0 0.0
  %2601 = vmatpush2.msra.mxu0 0.0
  %2602 = vmatprep.subr.mxu0 0.0
  %2603 = vmatpush2.msra.mxu0 0.0
  %2604 = vmatprep.subr.mxu0 0.0
  %2605 = vmatpush2.msra.mxu0 0.0
  %2606 = vmatprep.subr.mxu0 0.0
  %2607 = vmatpush2.msra.mxu0 0.0
  %2608 = vmatprep.subr.mxu0 0.0
  %2609 = vmatpush2.msra.mxu0 0.0
  %2610 = vmatprep.subr.mxu0 0.0
  %2611 = vmatpush2.msra.mxu0 0.0
  %2612 = vmatprep.subr.mxu0 0.0
  %2613 = vmatpush2.msra.mxu0 0.0
  %2614 = vmatprep.subr.mxu0 0.0
  %2615 = vmatpush2.msra.mxu0 0.0
  %2616 = vmatprep.subr.mxu0 0.0
  %2617 = vmatpush2.msra.mxu0 0.0
  %2618 = vmatprep.subr.mxu0 0.0
  %2619 = vmatpush2.msra.mxu0 0.0
  %2620 = vmatprep.subr.mxu0 0.0
  %2621 = vmatpush2.msra.mxu0 0.0
  %2622 = vmatprep.subr.mxu0 0.0
  %2623 = vmatpush2.msra.mxu0 0.0
  %2624 = vmatprep.subr.mxu0 0.0
  %2625 = vmatpush2.msra.mxu0 0.0
  %2626 = vmatprep.subr.mxu0 0.0
  %2627 = vmatpush2.msra.mxu0 0.0
  %2628 = vmatprep.subr.mxu0 0.0
  %2629 = vmatpush2.msra.mxu0 0.0
  %2630 = vmatprep.subr.mxu0 0.0
  %2631 = vmatpush2.msra.mxu0 0.0
  %2632 = vmatprep.mubr.f32.mxu0 0.0
  %2633 = vmatmul.mubr.f32.gmra.mxu0 %v2566
  %v2634 = vpop.f32.mrf.mxu0
  %v2635 = vadd.f32 %v2562, %v2634
  %v2636 = vpop.f32.mrf.mxu0
  %2637 = vdwg.mxu0
  %v2638 = vadd.f32 %v2635, %v56
  %v2639 = vxor.u32 %v2638, 2147483648
  %v2640 = vmul.f32 %v2639, 1.442695
  %v2641 = vpow.pop %v2640
  %v2642 = vadd.f32 %v2641, 1.0
  %v2643 = vrcp.pop %v2642
  %v2644 = vmul.f32 1.0, %v2643
  %v2645 = vmul.f32 %v2644, 2.0
  %v2646 = vsub.f32 %v2645, 1.0
  %v2647 = vmul.f32 %v2644, %v2310
  %2649 = vrot.lane.b32.xlu0 %v2646, 64
  %v2650 = vpop.permute.xlu0 %2649
  %v2652 = vmul.f32 %v2644, %v2650
  %2654 = vrot.lane.b32.xlu0 %v2652, 32
  %v2655 = vpop.permute.xlu0 %2654
  %v2657 = vadd.f32 %v2647, %v2655
  %v2658 = vtanh.pop %v2657
  %2660 = vrot.lane.b32.xlu0 %v2658, 64
  %v2661 = vpop.permute.xlu0 %2660
  %v2663 = vmul.f32 %v2644, %v2661
  %2665 = vrot.lane.b32.xlu0 %v2492, 32
  %v2666 = vpop.permute.xlu0 %2665
  %v2667 = vsel %vm62, %v2666, 0
  %2669 = vmatprep.subr.mxu0 0.0
  %2670 = vmatpush1.msra.mxu0 0.0
  %2671 = vmatprep.subr.mxu0 0.0
  %2672 = vmatpush1.msra.mxu0 0.0
  %2673 = vmatprep.subr.mxu0 0.0
  %2674 = vmatpush1.msra.mxu0 0.0
  %2675 = vmatprep.subr.mxu0 0.0
  %2676 = vmatpush1.msra.mxu0 0.0
  %2677 = vmatprep.subr.mxu0 0.0
  %2678 = vmatpush1.msra.mxu0 0.0
  %2679 = vmatprep.subr.mxu0 0.0
  %2680 = vmatpush1.msra.mxu0 0.0
  %2681 = vmatprep.subr.mxu0 0.0
  %2682 = vmatpush1.msra.mxu0 0.0
  %2683 = vmatprep.subr.mxu0 0.0
  %2684 = vmatpush1.msra.mxu0 0.0
  %2685 = vmatprep.subr.mxu0 0.0
  %2686 = vmatpush1.msra.mxu0 0.0
  %2687 = vmatprep.subr.mxu0 0.0
  %2688 = vmatpush1.msra.mxu0 0.0
  %2689 = vmatprep.subr.mxu0 0.0
  %2690 = vmatpush1.msra.mxu0 0.0
  %2691 = vmatprep.subr.mxu0 0.0
  %2692 = vmatpush1.msra.mxu0 0.0
  %2693 = vmatprep.subr.mxu0 0.0
  %2694 = vmatpush1.msra.mxu0 %v27
  %2695 = vmatprep.subr.mxu0 0.0
  %2696 = vmatpush1.msra.mxu0 %v26
  %2697 = vmatprep.subr.mxu0 0.0
  %2698 = vmatpush1.msra.mxu0 %v25
  %2699 = vmatprep.subr.mxu0 0.0
  %2700 = vmatpush1.msra.mxu0 %v24
  %2701 = vmatprep.subr.mxu0 0.0
  %2702 = vmatpush2.msra.mxu0 0.0
  %2703 = vmatprep.subr.mxu0 0.0
  %2704 = vmatpush2.msra.mxu0 0.0
  %2705 = vmatprep.subr.mxu0 0.0
  %2706 = vmatpush2.msra.mxu0 0.0
  %2707 = vmatprep.subr.mxu0 0.0
  %2708 = vmatpush2.msra.mxu0 0.0
  %2709 = vmatprep.subr.mxu0 0.0
  %2710 = vmatpush2.msra.mxu0 0.0
  %2711 = vmatprep.subr.mxu0 0.0
  %2712 = vmatpush2.msra.mxu0 0.0
  %2713 = vmatprep.subr.mxu0 0.0
  %2714 = vmatpush2.msra.mxu0 0.0
  %2715 = vmatprep.subr.mxu0 0.0
  %2716 = vmatpush2.msra.mxu0 0.0
  %2717 = vmatprep.subr.mxu0 0.0
  %2718 = vmatpush2.msra.mxu0 0.0
  %2719 = vmatprep.subr.mxu0 0.0
  %2720 = vmatpush2.msra.mxu0 0.0
  %2721 = vmatprep.subr.mxu0 0.0
  %2722 = vmatpush2.msra.mxu0 0.0
  %2723 = vmatprep.subr.mxu0 0.0
  %2724 = vmatpush2.msra.mxu0 0.0
  %2725 = vmatprep.subr.mxu0 0.0
  %2726 = vmatpush2.msra.mxu0 0.0
  %2727 = vmatprep.subr.mxu0 0.0
  %2728 = vmatpush2.msra.mxu0 0.0
  %2729 = vmatprep.subr.mxu0 0.0
  %2730 = vmatpush2.msra.mxu0 0.0
  %2731 = vmatprep.subr.mxu0 0.0
  %2732 = vmatpush2.msra.mxu0 0.0
  %2733 = vmatprep.mubr.f32.mxu0 0.0
  %2734 = vmatmul.mubr.f32.gmra.mxu0 %v2667
  %v2735 = vpop.f32.mrf.mxu0
  %v2736 = vadd.f32 0.0, %v2735
  %v2737 = vpop.f32.mrf.mxu0
  %2738 = vdwg.mxu0
  %2740 = vrot.lane.b32.xlu0 %v2663, 32
  %v2741 = vpop.permute.xlu0 %2740
  %v2742 = vsel %vm62, %v2741, 0
  %2744 = vmatprep.subr.mxu0 0.0
  %2745 = vmatpush1.msra.mxu0 0.0
  %2746 = vmatprep.subr.mxu0 0.0
  %2747 = vmatpush1.msra.mxu0 0.0
  %2748 = vmatprep.subr.mxu0 0.0
  %2749 = vmatpush1.msra.mxu0 0.0
  %2750 = vmatprep.subr.mxu0 0.0
  %2751 = vmatpush1.msra.mxu0 0.0
  %2752 = vmatprep.subr.mxu0 0.0
  %2753 = vmatpush1.msra.mxu0 0.0
  %2754 = vmatprep.subr.mxu0 0.0
  %2755 = vmatpush1.msra.mxu0 0.0
  %2756 = vmatprep.subr.mxu0 0.0
  %2757 = vmatpush1.msra.mxu0 0.0
  %2758 = vmatprep.subr.mxu0 0.0
  %2759 = vmatpush1.msra.mxu0 0.0
  %2760 = vmatprep.subr.mxu0 0.0
  %2761 = vmatpush1.msra.mxu0 0.0
  %2762 = vmatprep.subr.mxu0 0.0
  %2763 = vmatpush1.msra.mxu0 0.0
  %2764 = vmatprep.subr.mxu0 0.0
  %2765 = vmatpush1.msra.mxu0 0.0
  %2766 = vmatprep.subr.mxu0 0.0
  %2767 = vmatpush1.msra.mxu0 0.0
  %2768 = vmatprep.subr.mxu0 0.0
  %2769 = vmatpush1.msra.mxu0 %v23
  %2770 = vmatprep.subr.mxu0 0.0
  %2771 = vmatpush1.msra.mxu0 %v22
  %2772 = vmatprep.subr.mxu0 0.0
  %2773 = vmatpush1.msra.mxu0 %v21
  %2774 = vmatprep.subr.mxu0 0.0
  %2775 = vmatpush1.msra.mxu0 %v20
  %2776 = vmatprep.subr.mxu0 0.0
  %2777 = vmatpush2.msra.mxu0 0.0
  %2778 = vmatprep.subr.mxu0 0.0
  %2779 = vmatpush2.msra.mxu0 0.0
  %2780 = vmatprep.subr.mxu0 0.0
  %2781 = vmatpush2.msra.mxu0 0.0
  %2782 = vmatprep.subr.mxu0 0.0
  %2783 = vmatpush2.msra.mxu0 0.0
  %2784 = vmatprep.subr.mxu0 0.0
  %2785 = vmatpush2.msra.mxu0 0.0
  %2786 = vmatprep.subr.mxu0 0.0
  %2787 = vmatpush2.msra.mxu0 0.0
  %2788 = vmatprep.subr.mxu0 0.0
  %2789 = vmatpush2.msra.mxu0 0.0
  %2790 = vmatprep.subr.mxu0 0.0
  %2791 = vmatpush2.msra.mxu0 0.0
  %2792 = vmatprep.subr.mxu0 0.0
  %2793 = vmatpush2.msra.mxu0 0.0
  %2794 = vmatprep.subr.mxu0 0.0
  %2795 = vmatpush2.msra.mxu0 0.0
  %2796 = vmatprep.subr.mxu0 0.0
  %2797 = vmatpush2.msra.mxu0 0.0
  %2798 = vmatprep.subr.mxu0 0.0
  %2799 = vmatpush2.msra.mxu0 0.0
  %2800 = vmatprep.subr.mxu0 0.0
  %2801 = vmatpush2.msra.mxu0 0.0
  %2802 = vmatprep.subr.mxu0 0.0
  %2803 = vmatpush2.msra.mxu0 0.0
  %2804 = vmatprep.subr.mxu0 0.0
  %2805 = vmatpush2.msra.mxu0 0.0
  %2806 = vmatprep.subr.mxu0 0.0
  %2807 = vmatpush2.msra.mxu0 0.0
  %2808 = vmatprep.mubr.f32.mxu0 0.0
  %2809 = vmatmul.mubr.f32.gmra.mxu0 %v2742
  %v2810 = vpop.f32.mrf.mxu0
  %v2811 = vadd.f32 %v2736, %v2810
  %v2812 = vpop.f32.mrf.mxu0
  %2813 = vdwg.mxu0
  %v2814 = vadd.f32 %v2811, %v60
  %v2815 = vxor.u32 %v2814, 2147483648
  %v2816 = vmul.f32 %v2815, 1.442695
  %v2817 = vpow.pop %v2816
  %v2818 = vadd.f32 %v2817, 1.0
  %v2819 = vrcp.pop %v2818
  %v2820 = vmul.f32 1.0, %v2819
  %v2821 = vmul.f32 %v2820, 2.0
  %v2822 = vsub.f32 %v2821, 1.0
  %v2823 = vmul.f32 %v2820, %v2486
  %2825 = vrot.lane.b32.xlu0 %v2822, 64
  %v2826 = vpop.permute.xlu0 %2825
  %v2828 = vmul.f32 %v2820, %v2826
  %2830 = vrot.lane.b32.xlu0 %v2828, 32
  %v2831 = vpop.permute.xlu0 %2830
  %v2833 = vadd.f32 %v2823, %v2831
  %v2834 = vtanh.pop %v2833
  %2836 = vrot.lane.b32.xlu0 %v2834, 64
  %v2837 = vpop.permute.xlu0 %2836
  %v2839 = vmul.f32 %v2820, %v2837
  %v2840 = vrot.slane %v757, 6
  %v2842 = vrot.slane %v1104, 4
  %v2844 = vrot.slane %v1451, 2
  %v2846 = vrot.slane %v2145, 6
  %v2848 = vrot.slane %v2492, 4
  %v2851 = vrot.slane %v2839, 2
  %v2853 = vsel %vm140, %v410, %v2840
  %vm2854 = vcmask 1043456
  %v2855 = vsel %vm2854, %v2853, %v2842
  %vm2856 = vcmask 1045504
  %v2857 = vsel %vm2856, %v2855, %v2844
  %v2858 = vsel %vm140, %v1798, %v2846
  %v2859 = vsel %vm2854, %v2858, %v2848
  %v2860 = vsel %vm2856, %v2859, %v2851
  %v2861 = vlaneseq
  %v2862 = vshrl.u32 %v2861, 7
  %v2863 = vsub.s32 0, %v2862
  %v2864 = vrot.slane %v33, %v2863
  %2867 = vrot.lane.b32.xlu0 %v2857, 32
  %v2868 = vpop.permute.xlu0 %2867
  %2869 = vrot.lane.b32.xlu0 %v2860, 32
  %v2870 = vpop.permute.xlu0 %2869
  %v2871 = vsel %vm62, %v2868, 0
  %v2873 = vsel %vm62, %v2870, 0
  %2875 = vmatprep.subr.mxu0 0.0
  %2876 = vmatpush1.msra.mxu0 0.0
  %2877 = vmatprep.subr.mxu0 0.0
  %2878 = vmatpush1.msra.mxu0 0.0
  %2879 = vmatprep.subr.mxu0 0.0
  %2880 = vmatpush1.msra.mxu0 0.0
  %2881 = vmatprep.subr.mxu0 0.0
  %2882 = vmatpush1.msra.mxu0 0.0
  %2883 = vmatprep.subr.mxu0 0.0
  %2884 = vmatpush1.msra.mxu0 0.0
  %2885 = vmatprep.subr.mxu0 0.0
  %2886 = vmatpush1.msra.mxu0 0.0
  %2887 = vmatprep.subr.mxu0 0.0
  %2888 = vmatpush1.msra.mxu0 0.0
  %2889 = vmatprep.subr.mxu0 0.0
  %2890 = vmatpush1.msra.mxu0 0.0
  %2891 = vmatprep.subr.mxu0 0.0
  %2892 = vmatpush1.msra.mxu0 0.0
  %2893 = vmatprep.subr.mxu0 0.0
  %2894 = vmatpush1.msra.mxu0 0.0
  %2895 = vmatprep.subr.mxu0 0.0
  %2896 = vmatpush1.msra.mxu0 0.0
  %2897 = vmatprep.subr.mxu0 0.0
  %2898 = vmatpush1.msra.mxu0 0.0
  %2899 = vmatprep.subr.mxu0 0.0
  %2900 = vmatpush1.msra.mxu0 %v32
  %2901 = vmatprep.subr.mxu0 0.0
  %2902 = vmatpush1.msra.mxu0 %v31
  %2903 = vmatprep.subr.mxu0 0.0
  %2904 = vmatpush1.msra.mxu0 %v30
  %2905 = vmatprep.subr.mxu0 0.0
  %2906 = vmatpush1.msra.mxu0 %v29
  %2907 = vmatprep.subr.mxu0 0.0
  %2908 = vmatpush2.msra.mxu0 0.0
  %2909 = vmatprep.subr.mxu0 0.0
  %2910 = vmatpush2.msra.mxu0 0.0
  %2911 = vmatprep.subr.mxu0 0.0
  %2912 = vmatpush2.msra.mxu0 0.0
  %2913 = vmatprep.subr.mxu0 0.0
  %2914 = vmatpush2.msra.mxu0 0.0
  %2915 = vmatprep.subr.mxu0 0.0
  %2916 = vmatpush2.msra.mxu0 0.0
  %2917 = vmatprep.subr.mxu0 0.0
  %2918 = vmatpush2.msra.mxu0 0.0
  %2919 = vmatprep.subr.mxu0 0.0
  %2920 = vmatpush2.msra.mxu0 0.0
  %2921 = vmatprep.subr.mxu0 0.0
  %2922 = vmatpush2.msra.mxu0 0.0
  %2923 = vmatprep.subr.mxu0 0.0
  %2924 = vmatpush2.msra.mxu0 0.0
  %2925 = vmatprep.subr.mxu0 0.0
  %2926 = vmatpush2.msra.mxu0 0.0
  %2927 = vmatprep.subr.mxu0 0.0
  %2928 = vmatpush2.msra.mxu0 0.0
  %2929 = vmatprep.subr.mxu0 0.0
  %2930 = vmatpush2.msra.mxu0 0.0
  %2931 = vmatprep.subr.mxu0 0.0
  %2932 = vmatpush2.msra.mxu0 0.0
  %2933 = vmatprep.subr.mxu0 0.0
  %2934 = vmatpush2.msra.mxu0 0.0
  %2935 = vmatprep.subr.mxu0 0.0
  %2936 = vmatpush2.msra.mxu0 0.0
  %2937 = vmatprep.subr.mxu0 0.0
  %2938 = vmatpush2.msra.mxu0 0.0
  %2939 = vmatprep.mubr.f32.mxu0 0.0
  %2940 = vmatmul.mubr.f32.gmra.mxu0 %v2871
  %v2941 = vpop.f32.mrf.mxu0
  %v2942 = vadd.f32 %v2864, %v2941
  %v2943 = vpop.f32.mrf.mxu0
  %2944 = vmatprep.mubr.f32.mxu0 0.0
  %2945 = vmatmul.mubr.f32.gmra.mxu0 %v2873
  %v2946 = vpop.f32.mrf.mxu0
  %v2947 = vadd.f32 %v2864, %v2946
  %v2948 = vpop.f32.mrf.mxu0
  %2949 = vdwg.mxu0
  %2950 = vst [vmem:[%s3] sm:$0xff] %v2942
  %2951 = vst [vmem:[%s3 + $0x8] sm:$0xff] %v2947
  %v2952 = vlaneseq
  %v2953 = vshrl.u32 %v2952, 7
  %v2954 = vsub.s32 0, %v2953
  %v2955 = vrot.slane %v43, %v2954
  %2956 = vrot.lane.b32.xlu0 %v2839, 32
  %v2957 = vpop.permute.xlu0 %2956
  %v2958 = vsel %vm62, %v2957, 0
  %2960 = vmatprep.subr.mxu0 0.0
  %2961 = vmatpush1.msra.mxu0 0.0
  %2962 = vmatprep.subr.mxu0 0.0
  %2963 = vmatpush1.msra.mxu0 0.0
  %2964 = vmatprep.subr.mxu0 0.0
  %2965 = vmatpush1.msra.mxu0 0.0
  %2966 = vmatprep.subr.mxu0 0.0
  %2967 = vmatpush1.msra.mxu0 0.0
  %2968 = vmatprep.subr.mxu0 0.0
  %2969 = vmatpush1.msra.mxu0 0.0
  %2970 = vmatprep.subr.mxu0 0.0
  %2971 = vmatpush1.msra.mxu0 0.0
  %2972 = vmatprep.subr.mxu0 0.0
  %2973 = vmatpush1.msra.mxu0 0.0
  %2974 = vmatprep.subr.mxu0 0.0
  %2975 = vmatpush1.msra.mxu0 0.0
  %2976 = vmatprep.subr.mxu0 0.0
  %2977 = vmatpush1.msra.mxu0 0.0
  %2978 = vmatprep.subr.mxu0 0.0
  %2979 = vmatpush1.msra.mxu0 0.0
  %2980 = vmatprep.subr.mxu0 0.0
  %2981 = vmatpush1.msra.mxu0 0.0
  %2982 = vmatprep.subr.mxu0 0.0
  %2983 = vmatpush1.msra.mxu0 0.0
  %2984 = vmatprep.subr.mxu0 0.0
  %2985 = vmatpush1.msra.mxu0 %v42
  %2986 = vmatprep.subr.mxu0 0.0
  %2987 = vmatpush1.msra.mxu0 %v41
  %2988 = vmatprep.subr.mxu0 0.0
  %2989 = vmatpush1.msra.mxu0 %v40
  %2990 = vmatprep.subr.mxu0 0.0
  %2991 = vmatpush1.msra.mxu0 %v39
  %2992 = vmatprep.subr.mxu0 0.0
  %2993 = vmatpush2.msra.mxu0 0.0
  %2994 = vmatprep.subr.mxu0 0.0
  %2995 = vmatpush2.msra.mxu0 0.0
  %2996 = vmatprep.subr.mxu0 0.0
  %2997 = vmatpush2.msra.mxu0 0.0
  %2998 = vmatprep.subr.mxu0 0.0
  %2999 = vmatpush2.msra.mxu0 0.0
  %3000 = vmatprep.subr.mxu0 0.0
  %3001 = vmatpush2.msra.mxu0 0.0
  %3002 = vmatprep.subr.mxu0 0.0
  %3003 = vmatpush2.msra.mxu0 0.0
  %3004 = vmatprep.subr.mxu0 0.0
  %3005 = vmatpush2.msra.mxu0 0.0
  %3006 = vmatprep.subr.mxu0 0.0
  %3007 = vmatpush2.msra.mxu0 0.0
  %3008 = vmatprep.subr.mxu0 0.0
  %3009 = vmatpush2.msra.mxu0 0.0
  %3010 = vmatprep.subr.mxu0 0.0
  %3011 = vmatpush2.msra.mxu0 0.0
  %3012 = vmatprep.subr.mxu0 0.0
  %3013 = vmatpush2.msra.mxu0 0.0
  %3014 = vmatprep.subr.mxu0 0.0
  %3015 = vmatpush2.msra.mxu0 0.0
  %3016 = vmatprep.subr.mxu0 0.0
  %3017 = vmatpush2.msra.mxu0 0.0
  %3018 = vmatprep.subr.mxu0 0.0
  %3019 = vmatpush2.msra.mxu0 0.0
  %3020 = vmatprep.subr.mxu0 0.0
  %3021 = vmatpush2.msra.mxu0 0.0
  %3022 = vmatprep.subr.mxu0 0.0
  %3023 = vmatpush2.msra.mxu0 0.0
  %3024 = vmatprep.mubr.f32.mxu0 0.0
  %3025 = vmatmul.mubr.f32.gmra.mxu0 %v2958
  %v3026 = vpop.f32.mrf.mxu0
  %v3027 = vadd.f32 %v2955, %v3026
  %v3028 = vpop.f32.mrf.mxu0
  %3029 = vdwg.mxu0
  %v3030 = vmax.f32 %v3027, 0.0
  %vm3031 = vcmask 254976
  %v3032 = vsel %vm3031, %v3030, 0.0
  %v3033 = vrot.slane %v3032, 4
  %v3034 = vadd.f32 %v3032, %v3033
  %v3035 = vrot.slane %v3034, 2
  %v3036 = vadd.f32 %v3034, %v3035
  %v3037 = vrot.slane %v3036, 1
  %v3038 = vadd.f32 %v3036, %v3037
  %v3039 = vrcp.pop 2.0
  %v3040 = vmul.f32 %v3038, %v3039
  %v3041 = vsub.f32 %v3030, %v3040
  %v3042 = vmul.f32 %v3041, %v3041
  %v3043 = vsel %vm3031, %v3042, 0.0
  %v3044 = vrot.slane %v3043, 4
  %v3045 = vadd.f32 %v3043, %v3044
  %v3046 = vrot.slane %v3045, 2
  %v3047 = vadd.f32 %v3045, %v3046
  %v3048 = vrot.slane %v3047, 1
  %v3049 = vadd.f32 %v3047, %v3048
  %v3050 = vmul.f32 %v3049, %v3039
  %v3051 = vadd.f32 %v3050, 1e-05
  %v3052 = vrsqrt.pop %v3051
  %v3053 = vmul.f32 %v3041, %v3052
  %v3054 = vlaneseq
  %v3055 = vshrl.u32 %v3054, 7
  %v3056 = vsub.s32 0, %v3055
  %v3057 = vrot.slane %v44, %v3056
  %v3058 = vmul.f32 %v3053, %v3057
  %v3059 = vlaneseq
  %v3060 = vshrl.u32 %v3059, 7
  %v3061 = vsub.s32 0, %v3060
  %v3062 = vrot.slane %v45, %v3061
  %v3063 = vadd.f32 %v3058, %v3062
  %v3064 = vlaneseq
  %v3065 = vshrl.u32 %v3064, 7
  %v3066 = vsub.s32 0, %v3065
  %v3067 = vrot.slane %v50, %v3066
  %v3069 = vsel %vm62, %v3063, 0
  %3071 = vmatprep.subr.mxu0 0.0
  %3072 = vmatpush1.msra.mxu0 0.0
  %3073 = vmatprep.subr.mxu0 0.0
  %3074 = vmatpush1.msra.mxu0 0.0
  %3075 = vmatprep.subr.mxu0 0.0
  %3076 = vmatpush1.msra.mxu0 0.0
  %3077 = vmatprep.subr.mxu0 0.0
  %3078 = vmatpush1.msra.mxu0 0.0
  %3079 = vmatprep.subr.mxu0 0.0
  %3080 = vmatpush1.msra.mxu0 0.0
  %3081 = vmatprep.subr.mxu0 0.0
  %3082 = vmatpush1.msra.mxu0 0.0
  %3083 = vmatprep.subr.mxu0 0.0
  %3084 = vmatpush1.msra.mxu0 0.0
  %3085 = vmatprep.subr.mxu0 0.0
  %3086 = vmatpush1.msra.mxu0 0.0
  %3087 = vmatprep.subr.mxu0 0.0
  %3088 = vmatpush1.msra.mxu0 0.0
  %3089 = vmatprep.subr.mxu0 0.0
  %3090 = vmatpush1.msra.mxu0 0.0
  %3091 = vmatprep.subr.mxu0 0.0
  %3092 = vmatpush1.msra.mxu0 0.0
  %3093 = vmatprep.subr.mxu0 0.0
  %3094 = vmatpush1.msra.mxu0 0.0
  %3095 = vmatprep.subr.mxu0 0.0
  %3096 = vmatpush1.msra.mxu0 %v49
  %3097 = vmatprep.subr.mxu0 0.0
  %3098 = vmatpush1.msra.mxu0 %v48
  %3099 = vmatprep.subr.mxu0 0.0
  %3100 = vmatpush1.msra.mxu0 %v47
  %3101 = vmatprep.subr.mxu0 0.0
  %3102 = vmatpush1.msra.mxu0 %v46
  %3103 = vmatprep.subr.mxu0 0.0
  %3104 = vmatpush2.msra.mxu0 0.0
  %3105 = vmatprep.subr.mxu0 0.0
  %3106 = vmatpush2.msra.mxu0 0.0
  %3107 = vmatprep.subr.mxu0 0.0
  %3108 = vmatpush2.msra.mxu0 0.0
  %3109 = vmatprep.subr.mxu0 0.0
  %3110 = vmatpush2.msra.mxu0 0.0
  %3111 = vmatprep.subr.mxu0 0.0
  %3112 = vmatpush2.msra.mxu0 0.0
  %3113 = vmatprep.subr.mxu0 0.0
  %3114 = vmatpush2.msra.mxu0 0.0
  %3115 = vmatprep.subr.mxu0 0.0
  %3116 = vmatpush2.msra.mxu0 0.0
  %3117 = vmatprep.subr.mxu0 0.0
  %3118 = vmatpush2.msra.mxu0 0.0
  %3119 = vmatprep.subr.mxu0 0.0
  %3120 = vmatpush2.msra.mxu0 0.0
  %3121 = vmatprep.subr.mxu0 0.0
  %3122 = vmatpush2.msra.mxu0 0.0
  %3123 = vmatprep.subr.mxu0 0.0
  %3124 = vmatpush2.msra.mxu0 0.0
  %3125 = vmatprep.subr.mxu0 0.0
  %3126 = vmatpush2.msra.mxu0 0.0
  %3127 = vmatprep.subr.mxu0 0.0
  %3128 = vmatpush2.msra.mxu0 0.0
  %3129 = vmatprep.subr.mxu0 0.0
  %3130 = vmatpush2.msra.mxu0 0.0
  %3131 = vmatprep.subr.mxu0 0.0
  %3132 = vmatpush2.msra.mxu0 0.0
  %3133 = vmatprep.subr.mxu0 0.0
  %3134 = vmatpush2.msra.mxu0 0.0
  %3135 = vmatprep.mubr.f32.mxu0 0.0
  %3136 = vmatmul.mubr.f32.gmra.mxu0 %v3069
  %v3137 = vpop.f32.mrf.mxu0
  %v3138 = vadd.f32 %v3067, %v3137
  %v3139 = vpop.f32.mrf.mxu0
  %3140 = vdwg.mxu0
  %v3141 = vmax.f32 %v3138, 0.0
  %v3142 = vsel %vm3031, %v3141, 0.0
  %v3143 = vrot.slane %v3142, 4
  %v3144 = vadd.f32 %v3142, %v3143
  %v3145 = vrot.slane %v3144, 2
  %v3146 = vadd.f32 %v3144, %v3145
  %v3147 = vrot.slane %v3146, 1
  %v3148 = vadd.f32 %v3146, %v3147
  %v3149 = vmul.f32 %v3148, %v3039
  %v3150 = vsub.f32 %v3141, %v3149
  %v3151 = vmul.f32 %v3150, %v3150
  %v3152 = vsel %vm3031, %v3151, 0.0
  %v3153 = vrot.slane %v3152, 4
  %v3154 = vadd.f32 %v3152, %v3153
  %v3155 = vrot.slane %v3154, 2
  %v3156 = vadd.f32 %v3154, %v3155
  %v3157 = vrot.slane %v3156, 1
  %v3158 = vadd.f32 %v3156, %v3157
  %v3159 = vmul.f32 %v3158, %v3039
  %v3160 = vadd.f32 %v3159, 1e-05
  %v3161 = vrsqrt.pop %v3160
  %v3162 = vmul.f32 %v3150, %v3161
  %v3163 = vlaneseq
  %v3164 = vshrl.u32 %v3163, 7
  %v3165 = vsub.s32 0, %v3164
  %v3166 = vrot.slane %v51, %v3165
  %v3167 = vmul.f32 %v3162, %v3166
  %v3168 = vlaneseq
  %v3169 = vshrl.u32 %v3168, 7
  %v3170 = vsub.s32 0, %v3169
  %v3171 = vrot.slane %v52, %v3170
  %v3172 = vadd.f32 %v3167, %v3171
  %v3173 = vlaneseq
  %v3174 = vshrl.u32 %v3173, 7
  %v3175 = vsub.s32 0, %v3174
  %v3176 = vrot.slane %v38, %v3175
  %v3178 = vsel %vm62, %v3172, 0
  %3180 = vmatprep.subr.mxu0 0.0
  %3181 = vmatpush1.msra.mxu0 0.0
  %3182 = vmatprep.subr.mxu0 0.0
  %3183 = vmatpush1.msra.mxu0 0.0
  %3184 = vmatprep.subr.mxu0 0.0
  %3185 = vmatpush1.msra.mxu0 0.0
  %3186 = vmatprep.subr.mxu0 0.0
  %3187 = vmatpush1.msra.mxu0 0.0
  %3188 = vmatprep.subr.mxu0 0.0
  %3189 = vmatpush1.msra.mxu0 0.0
  %3190 = vmatprep.subr.mxu0 0.0
  %3191 = vmatpush1.msra.mxu0 0.0
  %3192 = vmatprep.subr.mxu0 0.0
  %3193 = vmatpush1.msra.mxu0 0.0
  %3194 = vmatprep.subr.mxu0 0.0
  %3195 = vmatpush1.msra.mxu0 0.0
  %3196 = vmatprep.subr.mxu0 0.0
  %3197 = vmatpush1.msra.mxu0 0.0
  %3198 = vmatprep.subr.mxu0 0.0
  %3199 = vmatpush1.msra.mxu0 0.0
  %3200 = vmatprep.subr.mxu0 0.0
  %3201 = vmatpush1.msra.mxu0 0.0
  %3202 = vmatprep.subr.mxu0 0.0
  %3203 = vmatpush1.msra.mxu0 0.0
  %3204 = vmatprep.subr.mxu0 0.0
  %3205 = vmatpush1.msra.mxu0 %v37
  %3206 = vmatprep.subr.mxu0 0.0
  %3207 = vmatpush1.msra.mxu0 %v36
  %3208 = vmatprep.subr.mxu0 0.0
  %3209 = vmatpush1.msra.mxu0 %v35
  %3210 = vmatprep.subr.mxu0 0.0
  %3211 = vmatpush1.msra.mxu0 %v34
  %3212 = vmatprep.subr.mxu0 0.0
  %3213 = vmatpush2.msra.mxu0 0.0
  %3214 = vmatprep.subr.mxu0 0.0
  %3215 = vmatpush2.msra.mxu0 0.0
  %3216 = vmatprep.subr.mxu0 0.0
  %3217 = vmatpush2.msra.mxu0 0.0
  %3218 = vmatprep.subr.mxu0 0.0
  %3219 = vmatpush2.msra.mxu0 0.0
  %3220 = vmatprep.subr.mxu0 0.0
  %3221 = vmatpush2.msra.mxu0 0.0
  %3222 = vmatprep.subr.mxu0 0.0
  %3223 = vmatpush2.msra.mxu0 0.0
  %3224 = vmatprep.subr.mxu0 0.0
  %3225 = vmatpush2.msra.mxu0 0.0
  %3226 = vmatprep.subr.mxu0 0.0
  %3227 = vmatpush2.msra.mxu0 0.0
  %3228 = vmatprep.subr.mxu0 0.0
  %3229 = vmatpush2.msra.mxu0 0.0
  %3230 = vmatprep.subr.mxu0 0.0
  %3231 = vmatpush2.msra.mxu0 0.0
  %3232 = vmatprep.subr.mxu0 0.0
  %3233 = vmatpush2.msra.mxu0 0.0
  %3234 = vmatprep.subr.mxu0 0.0
  %3235 = vmatpush2.msra.mxu0 0.0
  %3236 = vmatprep.subr.mxu0 0.0
  %3237 = vmatpush2.msra.mxu0 0.0
  %3238 = vmatprep.subr.mxu0 0.0
  %3239 = vmatpush2.msra.mxu0 0.0
  %3240 = vmatprep.subr.mxu0 0.0
  %3241 = vmatpush2.msra.mxu0 0.0
  %3242 = vmatprep.subr.mxu0 0.0
  %3243 = vmatpush2.msra.mxu0 0.0
  %3244 = vmatprep.mubr.f32.mxu0 0.0
  %3245 = vmatmul.mubr.f32.gmra.mxu0 %v3178
  %v3246 = vpop.f32.mrf.mxu0
  %v3247 = vadd.f32 %v3176, %v3246
  %v3248 = vpop.f32.mrf.mxu0
  %3249 = vdwg.mxu0
  %v3250 = vsel %vm140, %v3247, 0.0
  %3251 = vst [vmem:[%s3 + $0x10] sm:$0xff] %v3250
  // Predicated region
  $region14: #{dae6_forward.1} parent=0 // pred_check
    _
  $region15: #{dae6_forward.1} parent=0 // pred_check_branch
    %3253 = sbr.rel (0) target = $region17
  $region16: #{dae6_forward.1} parent=0 // pred_region
    _
  $region17: #{dae6_forward.1} parent=0 // pred_fallthru
    _
  // Predicated region
  $region18: #{dae6_forward.1} parent=0 // pred_check
    _
  $region19: #{dae6_forward.1} parent=0 // pred_check_branch
    %3255 = sbr.rel (0) target = $region21
  $region20: #{dae6_forward.1} parent=0 // pred_region
    _
  $region21: #{dae6_forward.1} parent=0 // pred_fallthru
    _

</llo_original>
